<compile_context>
chip_gen: v7x
topology: tpu7x:2x2x1
jax: 0.10.0
libtpu: 0.0.40
codegen_flags: <defaults>
</compile_context>

<pallas_src>
import math
import numpy as np
import jax
import jax.numpy as jnp
from jax.experimental import pallas as pl
from jax.experimental.pallas import tpu as pltpu


# --------------------------- tiling helpers ---------------------------------

def _round_up(x, m):
    return (x + m - 1) // m * m


def _pick_tile(d, align, cap):
    """Largest tile <= cap that is a multiple of `align` and divides
    round_up(d, align)."""
    dp = _round_up(d, align)
    if dp <= cap:
        return dp
    t = cap
    while dp % t != 0:
        t -= align
    return t


def _pick_batch_block(B, L, target_rows=256):
    """Largest divisor of B such that Bblk*L <= target_rows (feeds MXU M dim)."""
    best = 1
    for d in range(1, B + 1):
        if B % d == 0 and d * L <= target_rows:
            best = d
    return best


# --------------------------- tiled linear (matmul) ---------------------------

def _matmul_kernel(x_ref, w_ref, b_ref, o_ref, acc_ref):
    k = pl.program_id(2)

    @pl.when(k == 0)
    def _():
        acc_ref[...] = jnp.zeros_like(acc_ref)

    acc_ref[...] += jnp.dot(x_ref[...], w_ref[...],
                            preferred_element_type=jnp.float32)

    @pl.when(k == pl.num_programs(2) - 1)
    def _():
        o_ref[...] = (acc_ref[...] + b_ref[...]).astype(o_ref.dtype)


def linear(x, packed):
    """x: (M, K) fp32.  packed = {'w': (Kp, Np) bf16 pre-padded,
    'b': (1, Np) fp32 pre-padded, 'n': logical N}.  Returns (M, n) fp32."""
    w, b, n = packed['w'], packed['b'], packed['n']
    M, K = x.shape
    Kp, Np = w.shape
    tm = _pick_tile(M, 8, 256)
    tk = _pick_tile(Kp, 128, 512)
    tn = _pick_tile(Np, 128, 512)
    Mp = _round_up(M, tm)

    xb = x.astype(jnp.bfloat16)
    if (Mp, Kp) != (M, K):
        xb = jnp.pad(xb, ((0, Mp - M), (0, Kp - K)))

    out = pl.pallas_call(
        _matmul_kernel,
        out_shape=jax.ShapeDtypeStruct((Mp, Np), jnp.float32),
        grid=(Mp // tm, Np // tn, Kp // tk),
        in_specs=[pl.BlockSpec((tm, tk), lambda i, j, k: (i, k)),
                  pl.BlockSpec((tk, tn), lambda i, j, k: (k, j)),
                  pl.BlockSpec((1, tn), lambda i, j, k: (0, j))],
        out_specs=pl.BlockSpec((tm, tn), lambda i, j, k: (i, j)),
        scratch_shapes=[pltpu.VMEM((tm, tn), jnp.float32)],
        compiler_params=pltpu.CompilerParams(
            dimension_semantics=("parallel", "parallel", "arbitrary")),
    )(xb, w, b)
    if (Mp, Np) != (M, n):
        out = out[:M, :n]
    return out


# ---------------- fused attention block (norm+mod+attn+proj+residual) --------

def _attn_block_kernel(x_ref, sh_ref, sc_ref, g_ref,
                       wqkv_ref, bqkv_ref, qn_ref, kn_ref, pw_ref, pb_ref,
                       o_ref):
    Bb, L, C = x_ref.shape
    D = qn_ref.shape[1]
    H = C // D

    x = x_ref[...].astype(jnp.float32)                               # (Bb,L,C)
    # RMSNorm (no affine) + adaLN modulate
    xn = x * jax.lax.rsqrt(jnp.mean(x * x, axis=-1, keepdims=True) + 1e-6)
    xm = (xn * (1.0 + sc_ref[...]) + sh_ref[...]).astype(jnp.bfloat16)
    xm2 = xm.reshape(Bb * L, C)                                      # (M, C)

    # Fused QKV projection: one lane-dense matmul, fp32 accumulate.
    qkv = jnp.dot(xm2, wqkv_ref[...],
                  preferred_element_type=jnp.float32) + bqkv_ref[...]
    q = qkv[:, :C].reshape(Bb, L, C)
    k = qkv[:, C:2 * C].reshape(Bb, L, C)
    v = qkv[:, 2 * C:].reshape(Bb, L, C)

    qnw = qn_ref[...]                                                # (1, D)
    knw = kn_ref[...]
    scale = 1.0 / math.sqrt(D)

    heads = []
    for h in range(H):                 # static unroll; only score/PV per head
        qh = q[:, :, h * D:(h + 1) * D]
        kh = k[:, :, h * D:(h + 1) * D]
        vh = v[:, :, h * D:(h + 1) * D].astype(jnp.bfloat16)
        # per-head QK-RMSNorm (affine weight shared across heads)
        qh = qh * jax.lax.rsqrt(jnp.mean(qh * qh, -1, keepdims=True) + 1e-6) * qnw
        kh = kh * jax.lax.rsqrt(jnp.mean(kh * kh, -1, keepdims=True) + 1e-6) * knw
        s = jnp.einsum('bld,bmd->blm', qh.astype(jnp.bfloat16),
                       kh.astype(jnp.bfloat16),
                       preferred_element_type=jnp.float32) * scale
        s = s - jnp.max(s, axis=-1, keepdims=True)
        p = jnp.exp(s)
        p = p * pl.reciprocal(jnp.sum(p, axis=-1, keepdims=True), approx=True)
        heads.append(jnp.einsum('blm,bmd->bld', p.astype(jnp.bfloat16), vh,
                                preferred_element_type=jnp.float32))

    # Concatenate heads -> single lane-dense output projection.
    o = jnp.concatenate(heads, axis=-1).reshape(Bb * L, C)
    attn = jnp.dot(o.astype(jnp.bfloat16), pw_ref[...],
                   preferred_element_type=jnp.float32) + pb_ref[...]
    out = x + g_ref[...] * attn.reshape(Bb, L, C)
    o_ref[...] = out.astype(o_ref.dtype)


def attn_block(x, shift, scale, gate, wqkv, bqkv, qnw, knw, pw, pb, bblk):
    B, L, C = x.shape
    D = qnw.shape[1]
    nb = B // bblk
    # NOTE(v7x): weights have constant block indices -> not re-DMA'd across
    # consecutive steps; with >1 batch block the "parallel" axis feeds both TCs.
    return pl.pallas_call(
        _attn_block_kernel,
        out_shape=jax.ShapeDtypeStruct((B, L, C), jnp.bfloat16),
        grid=(nb,),
        in_specs=[
            pl.BlockSpec((bblk, L, C), lambda b: (b, 0, 0)),
            pl.BlockSpec((bblk, 1, C), lambda b: (b, 0, 0)),
            pl.BlockSpec((bblk, 1, C), lambda b: (b, 0, 0)),
            pl.BlockSpec((bblk, 1, C), lambda b: (b, 0, 0)),
            pl.BlockSpec((C, 3 * C), lambda b: (0, 0)),
            pl.BlockSpec((1, 3 * C), lambda b: (0, 0)),
            pl.BlockSpec((1, D), lambda b: (0, 0)),
            pl.BlockSpec((1, D), lambda b: (0, 0)),
            pl.BlockSpec((C, C), lambda b: (0, 0)),
            pl.BlockSpec((1, C), lambda b: (0, 0)),
        ],
        out_specs=pl.BlockSpec((bblk, L, C), lambda b: (b, 0, 0)),
        compiler_params=pltpu.CompilerParams(dimension_semantics=("parallel",)),
    )(x, shift, scale, gate, wqkv, bqkv, qnw, knw, pw, pb)


# ---------------- fused MLP block (norm+mod+SwiGLU+residual) -----------------

def _mlp_block_kernel(x_ref, sh_ref, sc_ref, g_ref, w1_ref, w3_ref, w2_ref,
                      o_ref, xm_ref, acc_ref):
    h = pl.program_id(1)
    Bb, L, C = x_ref.shape

    @pl.when(h == 0)
    def _():
        x = x_ref[...].astype(jnp.float32)
        xn = x * jax.lax.rsqrt(jnp.mean(x * x, axis=-1, keepdims=True) + 1e-6)
        xm = xn * (1.0 + sc_ref[...]) + sh_ref[...]
        xm_ref[...] = xm.reshape(Bb * L, C).astype(xm_ref.dtype)
        acc_ref[...] = jnp.zeros_like(acc_ref)

    xm = xm_ref[...]                                                # (M, C) bf16
    h1 = jnp.dot(xm, w1_ref[...], preferred_element_type=jnp.float32)
    h3 = jnp.dot(xm, w3_ref[...], preferred_element_type=jnp.float32)
    gact = (h1 * jax.nn.sigmoid(h1)) * h3                           # silu(w1x)*(w3x)
    acc_ref[...] += jnp.dot(gact.astype(jnp.bfloat16), w2_ref[...],
                            preferred_element_type=jnp.float32)

    @pl.when(h == pl.num_programs(1) - 1)
    def _():
        x = x_ref[...].astype(jnp.float32)
        out = x + g_ref[...] * acc_ref[...].reshape(Bb, L, C)
        o_ref[...] = out.astype(o_ref.dtype)


def mlp_block(x, shift, scale, gate, w1, w3, w2, bblk):
    B, L, C = x.shape
    Hd = w1.shape[1]
    # NOTE(v7x): for large C, drop this cap to 512 to stay within 64 MiB VMEM
    # (double-buffered weight tiles); at these sizes 1024 is fine everywhere.
    th = _pick_tile(Hd, 128, 1024)
    nb = B // bblk
    return pl.pallas_call(
        _mlp_block_kernel,
        out_shape=jax.ShapeDtypeStruct((B, L, C), jnp.bfloat16),
        grid=(nb, Hd // th),
        in_specs=[
            pl.BlockSpec((bblk, L, C), lambda b, h: (b, 0, 0)),
            pl.BlockSpec((bblk, 1, C), lambda b, h: (b, 0, 0)),
            pl.BlockSpec((bblk, 1, C), lambda b, h: (b, 0, 0)),
            pl.BlockSpec((bblk, 1, C), lambda b, h: (b, 0, 0)),
            pl.BlockSpec((C, th), lambda b, h: (0, h)),
            pl.BlockSpec((C, th), lambda b, h: (0, h)),
            pl.BlockSpec((th, C), lambda b, h: (h, 0)),
        ],
        out_specs=pl.BlockSpec((bblk, L, C), lambda b, h: (b, 0, 0)),
        scratch_shapes=[pltpu.VMEM((bblk * L, C), jnp.bfloat16),
                        pltpu.VMEM((bblk * L, C), jnp.float32)],
        compiler_params=pltpu.CompilerParams(
            dimension_semantics=("parallel", "arbitrary")),
    )(x, shift, scale, gate, w1, w3, w2)


# ---------------- final layer: fused norm + modulate + linear ----------------

def _final_kernel(x_ref, sh_ref, sc_ref, w_ref, b_ref, o_ref):
    B, L, C = x_ref.shape
    Np = w_ref.shape[1]
    x = x_ref[...].astype(jnp.float32)
    xn = x * jax.lax.rsqrt(jnp.mean(x * x, axis=-1, keepdims=True) + 1e-6)
    xm = (xn * (1.0 + sc_ref[...]) + sh_ref[...]).astype(jnp.bfloat16)
    y = jnp.dot(xm.reshape(B * L, C), w_ref[...],
                preferred_element_type=jnp.float32) + b_ref[...]
    o_ref[...] = y.reshape(B, L, Np).astype(o_ref.dtype)


def final_norm_mod_linear(x, shift, scale, w_pad, b_pad):
    """Output last dim is padded to 128 lanes (lane-dense stores); caller slices."""
    B, L, C = x.shape
    Np = w_pad.shape[1]
    return pl.pallas_call(
        _final_kernel,
        out_shape=jax.ShapeDtypeStruct((B, L, Np), jnp.float32),
        grid=(1,),
        in_specs=[
            pl.BlockSpec((B, L, C), lambda i: (0, 0, 0)),
            pl.BlockSpec((B, 1, C), lambda i: (0, 0, 0)),
            pl.BlockSpec((B, 1, C), lambda i: (0, 0, 0)),
            pl.BlockSpec((C, Np), lambda i: (0, 0)),
            pl.BlockSpec((1, Np), lambda i: (0, 0)),
        ],
        out_specs=pl.BlockSpec((B, L, Np), lambda i: (0, 0, 0)),
        compiler_params=pltpu.CompilerParams(dimension_semantics=("arbitrary",)),
    )(x, shift, scale, w_pad, b_pad)


# ------------------------------ JAX glue ------------------------------------

def get_1d_sincos_pos_embed(embed_dim, grid_size):
    pos = np.arange(grid_size, dtype=np.float32).reshape(-1)
    omega = np.arange(embed_dim // 2, dtype=np.float64) / (embed_dim / 2.0)
    omega = 1.0 / 10000 ** omega
    out = np.einsum('m,d->md', pos, omega)
    return np.concatenate([np.sin(out), np.cos(out)], axis=1)       # (M, D)


def timestep_embedding(t, dim, max_period=10000):
    half = dim // 2
    freqs = jnp.exp(-math.log(max_period)
                    * jnp.arange(half, dtype=jnp.float32) / half)
    args = t[:, None].astype(jnp.float32) * freqs[None]
    emb = jnp.concatenate([jnp.cos(args), jnp.sin(args)], axis=-1)
    if dim % 2:
        emb = jnp.concatenate([emb, jnp.zeros_like(emb[:, :1])], axis=-1)
    return emb


def init_params(key, cfg):
    hid = cfg['hidden_size']
    p = cfg['patch_size']
    cin = cfg['in_channels']
    H = cfg['num_heads']
    D = hid // H
    T = cfg['input_size'] // p
    depth = cfg['depth']

    def nrm(k, shape, std=0.02):
        return std * jax.random.normal(k, shape, jnp.float32)

    def prepack(w, b):
        # pre-pad K/N to 128 and pre-cast to bf16 once at init (no per-call pads)
        K, N = w.shape
        Kp, Np = _round_up(K, 128), _round_up(N, 128)
        wp = jnp.pad(w, ((0, Kp - K), (0, Np - N))).astype(jnp.bfloat16)
        bp = jnp.pad(b.reshape(1, N), ((0, 0), (0, Np - N))).astype(jnp.float32)
        return dict(w=wp, b=bp, n=N)

    keys = iter(jax.random.split(key, 64))
    params = {}
    params['patch'] = prepack(nrm(next(keys), (cin * p, hid)),
                              jnp.zeros((hid,), jnp.float32))
    params['pos_embed'] = jnp.asarray(
        get_1d_sincos_pos_embed(hid, T), jnp.float32)[None]           # (1,T,hid)
    params['t_w1'] = nrm(next(keys), (cfg['freq_dim'], hid))
    params['t_b1'] = jnp.zeros((hid,), jnp.float32)
    params['t_w2'] = nrm(next(keys), (hid, hid))
    params['t_b2'] = jnp.zeros((hid,), jnp.float32)
    params['y_table'] = nrm(next(keys), (cfg['num_classes'] + 1, hid))

    # SwiGLU hidden-dim rule from the PyTorch module (multiple_of=256)
    mlp_hidden = int(hid * cfg['mlp_ratio'])
    hdim = int(2 * mlp_hidden / 3)
    hdim = 256 * ((hdim + 255) // 256)

    ada_ws, ada_bs = [], []
    blocks = []
    for _ in range(depth):
        ada_ws.append(nrm(next(keys), (hid, 6 * hid)))
        ada_bs.append(jnp.zeros((6 * hid,), jnp.float32))
        blocks.append(dict(
            # fused qkv: (C, 3C) == qkv.weight.T; q/k/v thirds, heads along lanes
            wqkv=nrm(next(keys), (hid, 3 * hid)).astype(jnp.bfloat16),
            bqkv=jnp.zeros((1, 3 * hid), jnp.float32),
            q_norm_w=jnp.ones((1, D), jnp.float32),
            k_norm_w=jnp.ones((1, D), jnp.float32),
            proj_w=nrm(next(keys), (hid, hid)).astype(jnp.bfloat16),
            proj_b=jnp.zeros((1, hid), jnp.float32),
            w1=nrm(next(keys), (hid, hdim)).astype(jnp.bfloat16),
            w3=nrm(next(keys), (hid, hdim)).astype(jnp.bfloat16),
            w2=nrm(next(keys), (hdim, hid)).astype(jnp.bfloat16),
        ))
    # final-layer adaLN fused with the per-block adaLN matrices
    ada_ws.append(nrm(next(keys), (hid, 2 * hid)))
    ada_bs.append(jnp.zeros((2 * hid,), jnp.float32))
    params['ada_all'] = prepack(jnp.concatenate(ada_ws, axis=1),
                                jnp.concatenate(ada_bs, axis=0))
    params['blocks'] = blocks

    # final linear padded to 128 output lanes for lane-dense stores
    No = p * cfg['out_channels']
    Nop = _round_up(No, 128)
    lw = nrm(next(keys), (hid, No))
    params['final_lin_w'] = jnp.pad(lw, ((0, 0), (0, Nop - No))).astype(jnp.bfloat16)
    params['final_lin_b'] = jnp.zeros((1, Nop), jnp.float32)
    params['final_n'] = No
    return params


def dit_forward(params, x, t, y, cfg):
    """x: (N, C, L), t: (N,), y: (N,) int labels -> (N, out_channels, L)."""
    B, Cin, Lin = x.shape
    p = cfg['patch_size']
    T = Lin // p
    hid = cfg['hidden_size']
    depth = cfg['depth']

    # PatchEmbed: Conv1d(kernel=stride=p) == per-patch linear on (Cin*p) features
    xp = x.reshape(B, Cin, T, p).transpose(0, 2, 1, 3).reshape(B * T, Cin * p)
    tok = linear(xp, params['patch']).reshape(B, T, hid)
    tok = (tok + params['pos_embed']).astype(jnp.bfloat16)          # bf16 stream

    # TimestepEmbedder (tiny: plain XLA, avoids near-empty pallas launches)
    tf = timestep_embedding(t, cfg['freq_dim'])
    te = jnp.dot(tf, params['t_w1']) + params['t_b1']
    te = jnp.dot(jax.nn.silu(te), params['t_w2']) + params['t_b2']
    ye = params['y_table'][y]                      # LabelEmbedder (eval: no drop)
    cs = jax.nn.silu(te + ye)                      # shared SiLU for all adaLN

    # One fused adaLN matmul for all blocks + final layer
    ada_all = linear(cs, params['ada_all'])        # (B, (6*depth+2)*hid)

    bblk = _pick_batch_block(B, T)
    for i, pb in enumerate(params['blocks']):
        mods = ada_all[:, i * 6 * hid:(i + 1) * 6 * hid].reshape(B, 6, 1, hid)
        tok = attn_block(tok, mods[:, 0], mods[:, 1], mods[:, 2],
                         pb['wqkv'], pb['bqkv'], pb['q_norm_w'], pb['k_norm_w'],
                         pb['proj_w'], pb['proj_b'], bblk)
        tok = mlp_block(tok, mods[:, 3], mods[:, 4], mods[:, 5],
                        pb['w1'], pb['w3'], pb['w2'], bblk)

    fin = ada_all[:, depth * 6 * hid:depth * 6 * hid + 2 * hid].reshape(B, 2, 1, hid)
    out = final_norm_mod_linear(tok, fin[:, 0], fin[:, 1],
                                params['final_lin_w'], params['final_lin_b'])
    out = out[:, :, :params['final_n']]            # slice away lane padding

    oc = cfg['out_channels']
    out = out.reshape(B, T, p, oc).transpose(0, 3, 1, 2).reshape(B, oc, T * p)
    return out


# --------------------------------- main --------------------------------------

if __name__ == "__main__":
    cfg = dict(
        input_size=64, patch_size=8, in_channels=1, out_channels=1,
        hidden_size=64, depth=2, num_heads=4, mlp_ratio=4.0,
        num_classes=10, freq_dim=256,
    )
    params = init_params(jax.random.PRNGKey(0), cfg)

    kx, _, _ = jax.random.split(jax.random.PRNGKey(0), 3)
    x = jax.random.normal(kx, (2, cfg['in_channels'], cfg['input_size']),
                          jnp.float32)
    t = jnp.array([3.0, 17.0], jnp.float32)
    y = jnp.array([1, 5], jnp.int32)

    fwd = jax.jit(lambda xx, tt, yy: dit_forward(params, xx, tt, yy, cfg))
    out = fwd(x, t, y)
    jax.block_until_ready(out)
    assert out.shape == (2, cfg['out_channels'], cfg['input_size'])
    assert bool(jnp.all(jnp.isfinite(out)))
    print("KERNEL_OK")
</pallas_src>

<mosaic_0001>
module attributes {stable_mosaic.version = 11 : i64} {
  func.func @_attn_block_kernel(%arg0: i32, %arg1: memref<2x8x64xbf16, #tpu.memory_space<vmem>>, %arg2: memref<2x1x64xf32, #tpu.memory_space<vmem>>, %arg3: memref<2x1x64xf32, #tpu.memory_space<vmem>>, %arg4: memref<2x1x64xf32, #tpu.memory_space<vmem>>, %arg5: memref<64x192xbf16, #tpu.memory_space<vmem>>, %arg6: memref<1x192xf32, #tpu.memory_space<vmem>>, %arg7: memref<1x16xf32, #tpu.memory_space<vmem>>, %arg8: memref<1x16xf32, #tpu.memory_space<vmem>>, %arg9: memref<64x64xbf16, #tpu.memory_space<vmem>>, %arg10: memref<1x64xf32, #tpu.memory_space<vmem>>, %arg11: memref<2x8x64xbf16, #tpu.memory_space<vmem>>) attributes {dimension_semantics = [#tpu.dimension_semantics<parallel>], iteration_bounds = array<i64: 1>, scalar_prefetch = 0 : i64, scratch_operands = 0 : i64, tpu.core_type = #tpu.core_type<tc>, window_params = [{transform_indices = @transform_0, window_bounds = array<i64: 2, 8, 64>}, {transform_indices = @transform_1, window_bounds = array<i64: 2, 1, 64>}, {transform_indices = @transform_2, window_bounds = array<i64: 2, 1, 64>}, {transform_indices = @transform_3, window_bounds = array<i64: 2, 1, 64>}, {pipeline_mode = #tpu.pipeline_mode<synchronous>, transform_indices = @transform_4, window_bounds = array<i64: 64, 192>}, {pipeline_mode = #tpu.pipeline_mode<synchronous>, transform_indices = @transform_5, window_bounds = array<i64: 1, 192>}, {pipeline_mode = #tpu.pipeline_mode<synchronous>, transform_indices = @transform_6, window_bounds = array<i64: 1, 16>}, {pipeline_mode = #tpu.pipeline_mode<synchronous>, transform_indices = @transform_7, window_bounds = array<i64: 1, 16>}, {pipeline_mode = #tpu.pipeline_mode<synchronous>, transform_indices = @transform_8, window_bounds = array<i64: 64, 64>}, {pipeline_mode = #tpu.pipeline_mode<synchronous>, transform_indices = @transform_9, window_bounds = array<i64: 1, 64>}, {transform_indices = @transform_10, window_bounds = array<i64: 2, 8, 64>}]} {
    %c0 = arith.constant 0 : index
    %c0_0 = arith.constant 0 : index
    %c0_1 = arith.constant 0 : index
    %0 = vector.load %arg1[%c0, %c0_0, %c0_1] : memref<2x8x64xbf16, #tpu.memory_space<vmem>>, vector<2x8x64xbf16>
    %1 = arith.extf %0 : vector<2x8x64xbf16> to vector<2x8x64xf32>
    %2 = arith.mulf %1, %1 : vector<2x8x64xf32>
    %cst = arith.constant dense<0.000000e+00> : vector<2x8xf32>
    %3 = vector.multi_reduction <add>, %2, %cst [2] : vector<2x8x64xf32> to vector<2x8xf32>
    %4 = vector.shape_cast %3 : vector<2x8xf32> to vector<2x8x1xf32>
    %cst_2 = arith.constant 6.400000e+01 : f32
    %5 = vector.broadcast %cst_2 : f32 to vector<2x8x1xf32>
    %6 = arith.divf %4, %5 : vector<2x8x1xf32>
    %cst_3 = arith.constant 9.99999997E-7 : f32
    %7 = vector.broadcast %cst_3 : f32 to vector<2x8x1xf32>
    %8 = arith.addf %6, %7 : vector<2x8x1xf32>
    %9 = math.rsqrt %8 : vector<2x8x1xf32>
    %10 = vector.broadcast %9 : vector<2x8x1xf32> to vector<2x8x64xf32>
    %11 = arith.mulf %1, %10 : vector<2x8x64xf32>
    %c0_4 = arith.constant 0 : index
    %c0_5 = arith.constant 0 : index
    %c0_6 = arith.constant 0 : index
    %12 = vector.load %arg3[%c0_4, %c0_5, %c0_6] : memref<2x1x64xf32, #tpu.memory_space<vmem>>, vector<2x1x64xf32>
    %cst_7 = arith.constant 1.000000e+00 : f32
    %13 = vector.broadcast %cst_7 : f32 to vector<2x1x64xf32>
    %14 = arith.addf %13, %12 : vector<2x1x64xf32>
    %15 = vector.broadcast %14 : vector<2x1x64xf32> to vector<2x8x64xf32>
    %16 = arith.mulf %11, %15 : vector<2x8x64xf32>
    %c0_8 = arith.constant 0 : index
    %c0_9 = arith.constant 0 : index
    %c0_10 = arith.constant 0 : index
    %17 = vector.load %arg2[%c0_8, %c0_9, %c0_10] : memref<2x1x64xf32, #tpu.memory_space<vmem>>, vector<2x1x64xf32>
    %18 = vector.broadcast %17 : vector<2x1x64xf32> to vector<2x8x64xf32>
    %19 = arith.addf %16, %18 : vector<2x8x64xf32>
    %20 = arith.truncf %19 : vector<2x8x64xf32> to vector<2x8x64xbf16>
    %21 = vector.shape_cast %20 : vector<2x8x64xbf16> to vector<16x64xbf16>
    %c0_11 = arith.constant 0 : index
    %c0_12 = arith.constant 0 : index
    %22 = vector.load %arg5[%c0_11, %c0_12] : memref<64x192xbf16, #tpu.memory_space<vmem>>, vector<64x192xbf16>
    %cst_13 = arith.constant dense<0.000000e+00> : vector<16x192xf32>
    %23 = tpu.matmul %21, %22, %cst_13 {dimension_numbers = #tpu.dot_dimension_numbers<[1], [0], [0], [1], [0, 0, 1, 1], [], []>} : vector<16x64xbf16>, vector<64x192xbf16>, vector<16x192xf32> -> vector<16x192xf32>
    %c0_14 = arith.constant 0 : index
    %c0_15 = arith.constant 0 : index
    %24 = vector.load %arg6[%c0_14, %c0_15] : memref<1x192xf32, #tpu.memory_space<vmem>>, vector<1x192xf32>
    %25 = vector.broadcast %24 : vector<1x192xf32> to vector<16x192xf32>
    %26 = arith.addf %23, %25 : vector<16x192xf32>
    %27 = vector.extract_strided_slice %26 {offsets = [0, 0], sizes = [16, 64], strides = [1, 1]} : vector<16x192xf32> to vector<16x64xf32>
    %28 = vector.shape_cast %27 : vector<16x64xf32> to vector<2x8x64xf32>
    %29 = vector.extract_strided_slice %26 {offsets = [0, 64], sizes = [16, 64], strides = [1, 1]} : vector<16x192xf32> to vector<16x64xf32>
    %30 = vector.shape_cast %29 : vector<16x64xf32> to vector<2x8x64xf32>
    %31 = vector.extract_strided_slice %26 {offsets = [0, 128], sizes = [16, 64], strides = [1, 1]} : vector<16x192xf32> to vector<16x64xf32>
    %32 = vector.shape_cast %31 : vector<16x64xf32> to vector<2x8x64xf32>
    %c0_16 = arith.constant 0 : index
    %c0_17 = arith.constant 0 : index
    %33 = vector.load %arg7[%c0_16, %c0_17] : memref<1x16xf32, #tpu.memory_space<vmem>>, vector<1x16xf32>
    %c0_18 = arith.constant 0 : index
    %c0_19 = arith.constant 0 : index
    %34 = vector.load %arg8[%c0_18, %c0_19] : memref<1x16xf32, #tpu.memory_space<vmem>>, vector<1x16xf32>
    %35 = vector.extract_strided_slice %28 {offsets = [0, 0, 0], sizes = [2, 8, 16], strides = [1, 1, 1]} : vector<2x8x64xf32> to vector<2x8x16xf32>
    %36 = vector.extract_strided_slice %30 {offsets = [0, 0, 0], sizes = [2, 8, 16], strides = [1, 1, 1]} : vector<2x8x64xf32> to vector<2x8x16xf32>
    %37 = vector.extract_strided_slice %32 {offsets = [0, 0, 0], sizes = [2, 8, 16], strides = [1, 1, 1]} : vector<2x8x64xf32> to vector<2x8x16xf32>
    %38 = arith.truncf %37 : vector<2x8x16xf32> to vector<2x8x16xbf16>
    %39 = arith.mulf %35, %35 : vector<2x8x16xf32>
    %cst_20 = arith.constant dense<0.000000e+00> : vector<2x8xf32>
    %40 = vector.multi_reduction <add>, %39, %cst_20 [2] : vector<2x8x16xf32> to vector<2x8xf32>
    %41 = vector.shape_cast %40 : vector<2x8xf32> to vector<2x8x1xf32>
    %cst_21 = arith.constant 1.600000e+01 : f32
    %42 = vector.broadcast %cst_21 : f32 to vector<2x8x1xf32>
    %43 = arith.divf %41, %42 : vector<2x8x1xf32>
    %cst_22 = arith.constant 9.99999997E-7 : f32
    %44 = vector.broadcast %cst_22 : f32 to vector<2x8x1xf32>
    %45 = arith.addf %43, %44 : vector<2x8x1xf32>
    %46 = math.rsqrt %45 : vector<2x8x1xf32>
    %47 = vector.broadcast %46 : vector<2x8x1xf32> to vector<2x8x16xf32>
    %48 = arith.mulf %35, %47 : vector<2x8x16xf32>
    %49 = vector.shape_cast %33 : vector<1x16xf32> to vector<1x1x16xf32>
    %50 = vector.broadcast %49 : vector<1x1x16xf32> to vector<2x8x16xf32>
    %51 = arith.mulf %48, %50 : vector<2x8x16xf32>
    %52 = arith.mulf %36, %36 : vector<2x8x16xf32>
    %cst_23 = arith.constant dense<0.000000e+00> : vector<2x8xf32>
    %53 = vector.multi_reduction <add>, %52, %cst_23 [2] : vector<2x8x16xf32> to vector<2x8xf32>
    %54 = vector.shape_cast %53 : vector<2x8xf32> to vector<2x8x1xf32>
    %cst_24 = arith.constant 1.600000e+01 : f32
    %55 = vector.broadcast %cst_24 : f32 to vector<2x8x1xf32>
    %56 = arith.divf %54, %55 : vector<2x8x1xf32>
    %cst_25 = arith.constant 9.99999997E-7 : f32
    %57 = vector.broadcast %cst_25 : f32 to vector<2x8x1xf32>
    %58 = arith.addf %56, %57 : vector<2x8x1xf32>
    %59 = math.rsqrt %58 : vector<2x8x1xf32>
    %60 = vector.broadcast %59 : vector<2x8x1xf32> to vector<2x8x16xf32>
    %61 = arith.mulf %36, %60 : vector<2x8x16xf32>
    %62 = vector.shape_cast %34 : vector<1x16xf32> to vector<1x1x16xf32>
    %63 = vector.broadcast %62 : vector<1x1x16xf32> to vector<2x8x16xf32>
    %64 = arith.mulf %61, %63 : vector<2x8x16xf32>
    %65 = arith.truncf %51 : vector<2x8x16xf32> to vector<2x8x16xbf16>
    %66 = arith.truncf %64 : vector<2x8x16xf32> to vector<2x8x16xbf16>
    "tpu.trace_start"() <{level = 10 : i32, message = "bld,bmd->blm"}> : () -> ()
    %cst_26 = arith.constant dense<0.000000e+00> : vector<2x8x8xf32>
    %67 = tpu.matmul %65, %66, %cst_26 {dimension_numbers = #tpu.dot_dimension_numbers<[2], [2], [1], [1], [0, 0, 0, 1, 1, 1], [0], [0]>} : vector<2x8x16xbf16>, vector<2x8x16xbf16>, vector<2x8x8xf32> -> vector<2x8x8xf32>
    "tpu.trace_stop"() : () -> ()
    %cst_27 = arith.constant 2.500000e-01 : f32
    %68 = vector.broadcast %cst_27 : f32 to vector<2x8x8xf32>
    %69 = arith.mulf %67, %68 : vector<2x8x8xf32>
    %cst_28 = arith.constant dense<0xFF800000> : vector<2x8xf32>
    %70 = vector.multi_reduction <maximumf>, %69, %cst_28 [2] : vector<2x8x8xf32> to vector<2x8xf32>
    %71 = vector.shape_cast %70 : vector<2x8xf32> to vector<2x8x1xf32>
    %72 = vector.broadcast %71 : vector<2x8x1xf32> to vector<2x8x8xf32>
    %73 = arith.subf %69, %72 : vector<2x8x8xf32>
    %74 = math.exp %73 : vector<2x8x8xf32>
    %cst_29 = arith.constant dense<0.000000e+00> : vector<2x8xf32>
    %75 = vector.multi_reduction <add>, %74, %cst_29 [2] : vector<2x8x8xf32> to vector<2x8xf32>
    %76 = vector.shape_cast %75 : vector<2x8xf32> to vector<2x8x1xf32>
    %77 = tpu.reciprocal %76 {approx = true} : vector<2x8x1xf32> -> vector<2x8x1xf32>
    %78 = vector.broadcast %77 : vector<2x8x1xf32> to vector<2x8x8xf32>
    %79 = arith.mulf %74, %78 : vector<2x8x8xf32>
    %80 = arith.truncf %79 : vector<2x8x8xf32> to vector<2x8x8xbf16>
    "tpu.trace_start"() <{level = 10 : i32, message = "blm,bmd->bld"}> : () -> ()
    %cst_30 = arith.constant dense<0.000000e+00> : vector<2x8x16xf32>
    %81 = tpu.matmul %80, %38, %cst_30 {dimension_numbers = #tpu.dot_dimension_numbers<[2], [1], [1], [2], [0, 0, 0, 1, 1, 2], [0], [0]>} : vector<2x8x8xbf16>, vector<2x8x16xbf16>, vector<2x8x16xf32> -> vector<2x8x16xf32>
    "tpu.trace_stop"() : () -> ()
    %82 = vector.extract_strided_slice %28 {offsets = [0, 0, 16], sizes = [2, 8, 16], strides = [1, 1, 1]} : vector<2x8x64xf32> to vector<2x8x16xf32>
    %83 = vector.extract_strided_slice %30 {offsets = [0, 0, 16], sizes = [2, 8, 16], strides = [1, 1, 1]} : vector<2x8x64xf32> to vector<2x8x16xf32>
    %84 = vector.extract_strided_slice %32 {offsets = [0, 0, 16], sizes = [2, 8, 16], strides = [1, 1, 1]} : vector<2x8x64xf32> to vector<2x8x16xf32>
    %85 = arith.truncf %84 : vector<2x8x16xf32> to vector<2x8x16xbf16>
    %86 = arith.mulf %82, %82 : vector<2x8x16xf32>
    %cst_31 = arith.constant dense<0.000000e+00> : vector<2x8xf32>
    %87 = vector.multi_reduction <add>, %86, %cst_31 [2] : vector<2x8x16xf32> to vector<2x8xf32>
    %88 = vector.shape_cast %87 : vector<2x8xf32> to vector<2x8x1xf32>
    %cst_32 = arith.constant 1.600000e+01 : f32
    %89 = vector.broadcast %cst_32 : f32 to vector<2x8x1xf32>
    %90 = arith.divf %88, %89 : vector<2x8x1xf32>
    %cst_33 = arith.constant 9.99999997E-7 : f32
    %91 = vector.broadcast %cst_33 : f32 to vector<2x8x1xf32>
    %92 = arith.addf %90, %91 : vector<2x8x1xf32>
    %93 = math.rsqrt %92 : vector<2x8x1xf32>
    %94 = vector.broadcast %93 : vector<2x8x1xf32> to vector<2x8x16xf32>
    %95 = arith.mulf %82, %94 : vector<2x8x16xf32>
    %96 = vector.shape_cast %33 : vector<1x16xf32> to vector<1x1x16xf32>
    %97 = vector.broadcast %96 : vector<1x1x16xf32> to vector<2x8x16xf32>
    %98 = arith.mulf %95, %97 : vector<2x8x16xf32>
    %99 = arith.mulf %83, %83 : vector<2x8x16xf32>
    %cst_34 = arith.constant dense<0.000000e+00> : vector<2x8xf32>
    %100 = vector.multi_reduction <add>, %99, %cst_34 [2] : vector<2x8x16xf32> to vector<2x8xf32>
    %101 = vector.shape_cast %100 : vector<2x8xf32> to vector<2x8x1xf32>
    %cst_35 = arith.constant 1.600000e+01 : f32
    %102 = vector.broadcast %cst_35 : f32 to vector<2x8x1xf32>
    %103 = arith.divf %101, %102 : vector<2x8x1xf32>
    %cst_36 = arith.constant 9.99999997E-7 : f32
    %104 = vector.broadcast %cst_36 : f32 to vector<2x8x1xf32>
    %105 = arith.addf %103, %104 : vector<2x8x1xf32>
    %106 = math.rsqrt %105 : vector<2x8x1xf32>
    %107 = vector.broadcast %106 : vector<2x8x1xf32> to vector<2x8x16xf32>
    %108 = arith.mulf %83, %107 : vector<2x8x16xf32>
    %109 = vector.shape_cast %34 : vector<1x16xf32> to vector<1x1x16xf32>
    %110 = vector.broadcast %109 : vector<1x1x16xf32> to vector<2x8x16xf32>
    %111 = arith.mulf %108, %110 : vector<2x8x16xf32>
    %112 = arith.truncf %98 : vector<2x8x16xf32> to vector<2x8x16xbf16>
    %113 = arith.truncf %111 : vector<2x8x16xf32> to vector<2x8x16xbf16>
    "tpu.trace_start"() <{level = 10 : i32, message = "bld,bmd->blm"}> : () -> ()
    %cst_37 = arith.constant dense<0.000000e+00> : vector<2x8x8xf32>
    %114 = tpu.matmul %112, %113, %cst_37 {dimension_numbers = #tpu.dot_dimension_numbers<[2], [2], [1], [1], [0, 0, 0, 1, 1, 1], [0], [0]>} : vector<2x8x16xbf16>, vector<2x8x16xbf16>, vector<2x8x8xf32> -> vector<2x8x8xf32>
    "tpu.trace_stop"() : () -> ()
    %cst_38 = arith.constant 2.500000e-01 : f32
    %115 = vector.broadcast %cst_38 : f32 to vector<2x8x8xf32>
    %116 = arith.mulf %114, %115 : vector<2x8x8xf32>
    %cst_39 = arith.constant dense<0xFF800000> : vector<2x8xf32>
    %117 = vector.multi_reduction <maximumf>, %116, %cst_39 [2] : vector<2x8x8xf32> to vector<2x8xf32>
    %118 = vector.shape_cast %117 : vector<2x8xf32> to vector<2x8x1xf32>
    %119 = vector.broadcast %118 : vector<2x8x1xf32> to vector<2x8x8xf32>
    %120 = arith.subf %116, %119 : vector<2x8x8xf32>
    %121 = math.exp %120 : vector<2x8x8xf32>
    %cst_40 = arith.constant dense<0.000000e+00> : vector<2x8xf32>
    %122 = vector.multi_reduction <add>, %121, %cst_40 [2] : vector<2x8x8xf32> to vector<2x8xf32>
    %123 = vector.shape_cast %122 : vector<2x8xf32> to vector<2x8x1xf32>
    %124 = tpu.reciprocal %123 {approx = true} : vector<2x8x1xf32> -> vector<2x8x1xf32>
    %125 = vector.broadcast %124 : vector<2x8x1xf32> to vector<2x8x8xf32>
    %126 = arith.mulf %121, %125 : vector<2x8x8xf32>
    %127 = arith.truncf %126 : vector<2x8x8xf32> to vector<2x8x8xbf16>
    "tpu.trace_start"() <{level = 10 : i32, message = "blm,bmd->bld"}> : () -> ()
    %cst_41 = arith.constant dense<0.000000e+00> : vector<2x8x16xf32>
    %128 = tpu.matmul %127, %85, %cst_41 {dimension_numbers = #tpu.dot_dimension_numbers<[2], [1], [1], [2], [0, 0, 0, 1, 1, 2], [0], [0]>} : vector<2x8x8xbf16>, vector<2x8x16xbf16>, vector<2x8x16xf32> -> vector<2x8x16xf32>
    "tpu.trace_stop"() : () -> ()
    %129 = vector.extract_strided_slice %28 {offsets = [0, 0, 32], sizes = [2, 8, 16], strides = [1, 1, 1]} : vector<2x8x64xf32> to vector<2x8x16xf32>
    %130 = vector.extract_strided_slice %30 {offsets = [0, 0, 32], sizes = [2, 8, 16], strides = [1, 1, 1]} : vector<2x8x64xf32> to vector<2x8x16xf32>
    %131 = vector.extract_strided_slice %32 {offsets = [0, 0, 32], sizes = [2, 8, 16], strides = [1, 1, 1]} : vector<2x8x64xf32> to vector<2x8x16xf32>
    %132 = arith.truncf %131 : vector<2x8x16xf32> to vector<2x8x16xbf16>
    %133 = arith.mulf %129, %129 : vector<2x8x16xf32>
    %cst_42 = arith.constant dense<0.000000e+00> : vector<2x8xf32>
    %134 = vector.multi_reduction <add>, %133, %cst_42 [2] : vector<2x8x16xf32> to vector<2x8xf32>
    %135 = vector.shape_cast %134 : vector<2x8xf32> to vector<2x8x1xf32>
    %cst_43 = arith.constant 1.600000e+01 : f32
    %136 = vector.broadcast %cst_43 : f32 to vector<2x8x1xf32>
    %137 = arith.divf %135, %136 : vector<2x8x1xf32>
    %cst_44 = arith.constant 9.99999997E-7 : f32
    %138 = vector.broadcast %cst_44 : f32 to vector<2x8x1xf32>
    %139 = arith.addf %137, %138 : vector<2x8x1xf32>
    %140 = math.rsqrt %139 : vector<2x8x1xf32>
    %141 = vector.broadcast %140 : vector<2x8x1xf32> to vector<2x8x16xf32>
    %142 = arith.mulf %129, %141 : vector<2x8x16xf32>
    %143 = vector.shape_cast %33 : vector<1x16xf32> to vector<1x1x16xf32>
    %144 = vector.broadcast %143 : vector<1x1x16xf32> to vector<2x8x16xf32>
    %145 = arith.mulf %142, %144 : vector<2x8x16xf32>
    %146 = arith.mulf %130, %130 : vector<2x8x16xf32>
    %cst_45 = arith.constant dense<0.000000e+00> : vector<2x8xf32>
    %147 = vector.multi_reduction <add>, %146, %cst_45 [2] : vector<2x8x16xf32> to vector<2x8xf32>
    %148 = vector.shape_cast %147 : vector<2x8xf32> to vector<2x8x1xf32>
    %cst_46 = arith.constant 1.600000e+01 : f32
    %149 = vector.broadcast %cst_46 : f32 to vector<2x8x1xf32>
    %150 = arith.divf %148, %149 : vector<2x8x1xf32>
    %cst_47 = arith.constant 9.99999997E-7 : f32
    %151 = vector.broadcast %cst_47 : f32 to vector<2x8x1xf32>
    %152 = arith.addf %150, %151 : vector<2x8x1xf32>
    %153 = math.rsqrt %152 : vector<2x8x1xf32>
    %154 = vector.broadcast %153 : vector<2x8x1xf32> to vector<2x8x16xf32>
    %155 = arith.mulf %130, %154 : vector<2x8x16xf32>
    %156 = vector.shape_cast %34 : vector<1x16xf32> to vector<1x1x16xf32>
    %157 = vector.broadcast %156 : vector<1x1x16xf32> to vector<2x8x16xf32>
    %158 = arith.mulf %155, %157 : vector<2x8x16xf32>
    %159 = arith.truncf %145 : vector<2x8x16xf32> to vector<2x8x16xbf16>
    %160 = arith.truncf %158 : vector<2x8x16xf32> to vector<2x8x16xbf16>
    "tpu.trace_start"() <{level = 10 : i32, message = "bld,bmd->blm"}> : () -> ()
    %cst_48 = arith.constant dense<0.000000e+00> : vector<2x8x8xf32>
    %161 = tpu.matmul %159, %160, %cst_48 {dimension_numbers = #tpu.dot_dimension_numbers<[2], [2], [1], [1], [0, 0, 0, 1, 1, 1], [0], [0]>} : vector<2x8x16xbf16>, vector<2x8x16xbf16>, vector<2x8x8xf32> -> vector<2x8x8xf32>
    "tpu.trace_stop"() : () -> ()
    %cst_49 = arith.constant 2.500000e-01 : f32
    %162 = vector.broadcast %cst_49 : f32 to vector<2x8x8xf32>
    %163 = arith.mulf %161, %162 : vector<2x8x8xf32>
    %cst_50 = arith.constant dense<0xFF800000> : vector<2x8xf32>
    %164 = vector.multi_reduction <maximumf>, %163, %cst_50 [2] : vector<2x8x8xf32> to vector<2x8xf32>
    %165 = vector.shape_cast %164 : vector<2x8xf32> to vector<2x8x1xf32>
    %166 = vector.broadcast %165 : vector<2x8x1xf32> to vector<2x8x8xf32>
    %167 = arith.subf %163, %166 : vector<2x8x8xf32>
    %168 = math.exp %167 : vector<2x8x8xf32>
    %cst_51 = arith.constant dense<0.000000e+00> : vector<2x8xf32>
    %169 = vector.multi_reduction <add>, %168, %cst_51 [2] : vector<2x8x8xf32> to vector<2x8xf32>
    %170 = vector.shape_cast %169 : vector<2x8xf32> to vector<2x8x1xf32>
    %171 = tpu.reciprocal %170 {approx = true} : vector<2x8x1xf32> -> vector<2x8x1xf32>
    %172 = vector.broadcast %171 : vector<2x8x1xf32> to vector<2x8x8xf32>
    %173 = arith.mulf %168, %172 : vector<2x8x8xf32>
    %174 = arith.truncf %173 : vector<2x8x8xf32> to vector<2x8x8xbf16>
    "tpu.trace_start"() <{level = 10 : i32, message = "blm,bmd->bld"}> : () -> ()
    %cst_52 = arith.constant dense<0.000000e+00> : vector<2x8x16xf32>
    %175 = tpu.matmul %174, %132, %cst_52 {dimension_numbers = #tpu.dot_dimension_numbers<[2], [1], [1], [2], [0, 0, 0, 1, 1, 2], [0], [0]>} : vector<2x8x8xbf16>, vector<2x8x16xbf16>, vector<2x8x16xf32> -> vector<2x8x16xf32>
    "tpu.trace_stop"() : () -> ()
    %176 = vector.extract_strided_slice %28 {offsets = [0, 0, 48], sizes = [2, 8, 16], strides = [1, 1, 1]} : vector<2x8x64xf32> to vector<2x8x16xf32>
    %177 = vector.extract_strided_slice %30 {offsets = [0, 0, 48], sizes = [2, 8, 16], strides = [1, 1, 1]} : vector<2x8x64xf32> to vector<2x8x16xf32>
    %178 = vector.extract_strided_slice %32 {offsets = [0, 0, 48], sizes = [2, 8, 16], strides = [1, 1, 1]} : vector<2x8x64xf32> to vector<2x8x16xf32>
    %179 = arith.truncf %178 : vector<2x8x16xf32> to vector<2x8x16xbf16>
    %180 = arith.mulf %176, %176 : vector<2x8x16xf32>
    %cst_53 = arith.constant dense<0.000000e+00> : vector<2x8xf32>
    %181 = vector.multi_reduction <add>, %180, %cst_53 [2] : vector<2x8x16xf32> to vector<2x8xf32>
    %182 = vector.shape_cast %181 : vector<2x8xf32> to vector<2x8x1xf32>
    %cst_54 = arith.constant 1.600000e+01 : f32
    %183 = vector.broadcast %cst_54 : f32 to vector<2x8x1xf32>
    %184 = arith.divf %182, %183 : vector<2x8x1xf32>
    %cst_55 = arith.constant 9.99999997E-7 : f32
    %185 = vector.broadcast %cst_55 : f32 to vector<2x8x1xf32>
    %186 = arith.addf %184, %185 : vector<2x8x1xf32>
    %187 = math.rsqrt %186 : vector<2x8x1xf32>
    %188 = vector.broadcast %187 : vector<2x8x1xf32> to vector<2x8x16xf32>
    %189 = arith.mulf %176, %188 : vector<2x8x16xf32>
    %190 = vector.shape_cast %33 : vector<1x16xf32> to vector<1x1x16xf32>
    %191 = vector.broadcast %190 : vector<1x1x16xf32> to vector<2x8x16xf32>
    %192 = arith.mulf %189, %191 : vector<2x8x16xf32>
    %193 = arith.mulf %177, %177 : vector<2x8x16xf32>
    %cst_56 = arith.constant dense<0.000000e+00> : vector<2x8xf32>
    %194 = vector.multi_reduction <add>, %193, %cst_56 [2] : vector<2x8x16xf32> to vector<2x8xf32>
    %195 = vector.shape_cast %194 : vector<2x8xf32> to vector<2x8x1xf32>
    %cst_57 = arith.constant 1.600000e+01 : f32
    %196 = vector.broadcast %cst_57 : f32 to vector<2x8x1xf32>
    %197 = arith.divf %195, %196 : vector<2x8x1xf32>
    %cst_58 = arith.constant 9.99999997E-7 : f32
    %198 = vector.broadcast %cst_58 : f32 to vector<2x8x1xf32>
    %199 = arith.addf %197, %198 : vector<2x8x1xf32>
    %200 = math.rsqrt %199 : vector<2x8x1xf32>
    %201 = vector.broadcast %200 : vector<2x8x1xf32> to vector<2x8x16xf32>
    %202 = arith.mulf %177, %201 : vector<2x8x16xf32>
    %203 = vector.shape_cast %34 : vector<1x16xf32> to vector<1x1x16xf32>
    %204 = vector.broadcast %203 : vector<1x1x16xf32> to vector<2x8x16xf32>
    %205 = arith.mulf %202, %204 : vector<2x8x16xf32>
    %206 = arith.truncf %192 : vector<2x8x16xf32> to vector<2x8x16xbf16>
    %207 = arith.truncf %205 : vector<2x8x16xf32> to vector<2x8x16xbf16>
    "tpu.trace_start"() <{level = 10 : i32, message = "bld,bmd->blm"}> : () -> ()
    %cst_59 = arith.constant dense<0.000000e+00> : vector<2x8x8xf32>
    %208 = tpu.matmul %206, %207, %cst_59 {dimension_numbers = #tpu.dot_dimension_numbers<[2], [2], [1], [1], [0, 0, 0, 1, 1, 1], [0], [0]>} : vector<2x8x16xbf16>, vector<2x8x16xbf16>, vector<2x8x8xf32> -> vector<2x8x8xf32>
    "tpu.trace_stop"() : () -> ()
    %cst_60 = arith.constant 2.500000e-01 : f32
    %209 = vector.broadcast %cst_60 : f32 to vector<2x8x8xf32>
    %210 = arith.mulf %208, %209 : vector<2x8x8xf32>
    %cst_61 = arith.constant dense<0xFF800000> : vector<2x8xf32>
    %211 = vector.multi_reduction <maximumf>, %210, %cst_61 [2] : vector<2x8x8xf32> to vector<2x8xf32>
    %212 = vector.shape_cast %211 : vector<2x8xf32> to vector<2x8x1xf32>
    %213 = vector.broadcast %212 : vector<2x8x1xf32> to vector<2x8x8xf32>
    %214 = arith.subf %210, %213 : vector<2x8x8xf32>
    %215 = math.exp %214 : vector<2x8x8xf32>
    %cst_62 = arith.constant dense<0.000000e+00> : vector<2x8xf32>
    %216 = vector.multi_reduction <add>, %215, %cst_62 [2] : vector<2x8x8xf32> to vector<2x8xf32>
    %217 = vector.shape_cast %216 : vector<2x8xf32> to vector<2x8x1xf32>
    %218 = tpu.reciprocal %217 {approx = true} : vector<2x8x1xf32> -> vector<2x8x1xf32>
    %219 = vector.broadcast %218 : vector<2x8x1xf32> to vector<2x8x8xf32>
    %220 = arith.mulf %215, %219 : vector<2x8x8xf32>
    %221 = arith.truncf %220 : vector<2x8x8xf32> to vector<2x8x8xbf16>
    "tpu.trace_start"() <{level = 10 : i32, message = "blm,bmd->bld"}> : () -> ()
    %cst_63 = arith.constant dense<0.000000e+00> : vector<2x8x16xf32>
    %222 = tpu.matmul %221, %179, %cst_63 {dimension_numbers = #tpu.dot_dimension_numbers<[2], [1], [1], [2], [0, 0, 0, 1, 1, 2], [0], [0]>} : vector<2x8x8xbf16>, vector<2x8x16xbf16>, vector<2x8x16xf32> -> vector<2x8x16xf32>
    "tpu.trace_stop"() : () -> ()
    %223 = tpu.concatenate %81, %128, %175, %222 in 2 : vector<2x8x16xf32>, vector<2x8x16xf32>, vector<2x8x16xf32>, vector<2x8x16xf32> -> vector<2x8x64xf32>
    %224 = vector.shape_cast %223 : vector<2x8x64xf32> to vector<16x64xf32>
    %225 = arith.truncf %224 : vector<16x64xf32> to vector<16x64xbf16>
    %c0_64 = arith.constant 0 : index
    %c0_65 = arith.constant 0 : index
    %226 = vector.load %arg9[%c0_64, %c0_65] : memref<64x64xbf16, #tpu.memory_space<vmem>>, vector<64x64xbf16>
    %cst_66 = arith.constant dense<0.000000e+00> : vector<16x64xf32>
    %227 = tpu.matmul %225, %226, %cst_66 {dimension_numbers = #tpu.dot_dimension_numbers<[1], [0], [0], [1], [0, 0, 1, 1], [], []>} : vector<16x64xbf16>, vector<64x64xbf16>, vector<16x64xf32> -> vector<16x64xf32>
    %c0_67 = arith.constant 0 : index
    %c0_68 = arith.constant 0 : index
    %228 = vector.load %arg10[%c0_67, %c0_68] : memref<1x64xf32, #tpu.memory_space<vmem>>, vector<1x64xf32>
    %229 = vector.broadcast %228 : vector<1x64xf32> to vector<16x64xf32>
    %230 = arith.addf %227, %229 : vector<16x64xf32>
    %c0_69 = arith.constant 0 : index
    %c0_70 = arith.constant 0 : index
    %c0_71 = arith.constant 0 : index
    %231 = vector.load %arg4[%c0_69, %c0_70, %c0_71] : memref<2x1x64xf32, #tpu.memory_space<vmem>>, vector<2x1x64xf32>
    %232 = vector.shape_cast %230 : vector<16x64xf32> to vector<2x8x64xf32>
    %233 = vector.broadcast %231 : vector<2x1x64xf32> to vector<2x8x64xf32>
    %234 = arith.mulf %233, %232 : vector<2x8x64xf32>
    %235 = arith.addf %1, %234 : vector<2x8x64xf32>
    %236 = arith.truncf %235 : vector<2x8x64xf32> to vector<2x8x64xbf16>
    %c0_72 = arith.constant 0 : index
    %c0_73 = arith.constant 0 : index
    %c0_74 = arith.constant 0 : index
    %237 = vector.load %arg11[%c0_72, %c0_73, %c0_74] : memref<2x8x64xbf16, #tpu.memory_space<vmem>>, vector<2x8x64xbf16>
    tpu.vector_store %arg11[%c0_72, %c0_73, %c0_74], %236 {strides = array<i32>} : memref<2x8x64xbf16, #tpu.memory_space<vmem>>, vector<2x8x64xbf16>,
    return
  }
  func.func @transform_0(%arg0: i32) -> (i32, i32, i32) {
    %c0_i32 = arith.constant 0 : i32
    %c0_i32_0 = arith.constant 0 : i32
    %c0_i32_1 = arith.constant 0 : i32
    return %arg0, %c0_i32, %c0_i32_0 : i32, i32, i32
  }
  func.func @transform_1(%arg0: i32) -> (i32, i32, i32) {
    %c0_i32 = arith.constant 0 : i32
    %c0_i32_0 = arith.constant 0 : i32
    %c0_i32_1 = arith.constant 0 : i32
    return %arg0, %c0_i32, %c0_i32_0 : i32, i32, i32
  }
  func.func @transform_2(%arg0: i32) -> (i32, i32, i32) {
    %c0_i32 = arith.constant 0 : i32
    %c0_i32_0 = arith.constant 0 : i32
    %c0_i32_1 = arith.constant 0 : i32
    return %arg0, %c0_i32, %c0_i32_0 : i32, i32, i32
  }
  func.func @transform_3(%arg0: i32) -> (i32, i32, i32) {
    %c0_i32 = arith.constant 0 : i32
    %c0_i32_0 = arith.constant 0 : i32
    %c0_i32_1 = arith.constant 0 : i32
    return %arg0, %c0_i32, %c0_i32_0 : i32, i32, i32
  }
  func.func @transform_4(%arg0: i32) -> (i32, i32) {
    %c0_i32 = arith.constant 0 : i32
    %c0_i32_0 = arith.constant 0 : i32
    %c0_i32_1 = arith.constant 0 : i32
    return %c0_i32, %c0_i32_0 : i32, i32
  }
  func.func @transform_5(%arg0: i32) -> (i32, i32) {
    %c0_i32 = arith.constant 0 : i32
    %c0_i32_0 = arith.constant 0 : i32
    %c0_i32_1 = arith.constant 0 : i32
    return %c0_i32, %c0_i32_0 : i32, i32
  }
  func.func @transform_6(%arg0: i32) -> (i32, i32) {
    %c0_i32 = arith.constant 0 : i32
    %c0_i32_0 = arith.constant 0 : i32
    %c0_i32_1 = arith.constant 0 : i32
    return %c0_i32, %c0_i32_0 : i32, i32
  }
  func.func @transform_7(%arg0: i32) -> (i32, i32) {
    %c0_i32 = arith.constant 0 : i32
    %c0_i32_0 = arith.constant 0 : i32
    %c0_i32_1 = arith.constant 0 : i32
    return %c0_i32, %c0_i32_0 : i32, i32
  }
  func.func @transform_8(%arg0: i32) -> (i32, i32) {
    %c0_i32 = arith.constant 0 : i32
    %c0_i32_0 = arith.constant 0 : i32
    %c0_i32_1 = arith.constant 0 : i32
    return %c0_i32, %c0_i32_0 : i32, i32
  }
  func.func @transform_9(%arg0: i32) -> (i32, i32) {
    %c0_i32 = arith.constant 0 : i32
    %c0_i32_0 = arith.constant 0 : i32
    %c0_i32_1 = arith.constant 0 : i32
    return %c0_i32, %c0_i32_0 : i32, i32
  }
  func.func @transform_10(%arg0: i32) -> (i32, i32, i32) {
    %c0_i32 = arith.constant 0 : i32
    %c0_i32_0 = arith.constant 0 : i32
    %c0_i32_1 = arith.constant 0 : i32
    return %arg0, %c0_i32, %c0_i32_0 : i32, i32, i32
  }
}

module attributes {stable_mosaic.version = 11 : i64} {
  func.func @_matmul_kernel(%arg0: i32, %arg1: i32, %arg2: i32, %arg3: memref<8x128xbf16, #tpu.memory_space<vmem>>, %arg4: memref<128x128xbf16, #tpu.memory_space<vmem>>, %arg5: memref<1x128xf32, #tpu.memory_space<vmem>>, %arg6: memref<8x128xf32, #tpu.memory_space<vmem>>, %arg7: memref<8x128xf32, #tpu.memory_space<vmem>>) attributes {dimension_semantics = [#tpu.dimension_semantics<parallel>, #tpu.dimension_semantics<parallel>, #tpu.dimension_semantics<arbitrary>], iteration_bounds = array<i64: 1, 7, 1>, scalar_prefetch = 0 : i64, scratch_operands = 1 : i64, tpu.core_type = #tpu.core_type<tc>, window_params = [{transform_indices = @transform_0, window_bounds = array<i64: 8, 128>}, {transform_indices = @transform_1, window_bounds = array<i64: 128, 128>}, {transform_indices = @transform_2, window_bounds = array<i64: 1, 128>}, {transform_indices = @transform_3, window_bounds = array<i64: 8, 128>}]} {
    %c0_i32 = arith.constant 0 : i32
    %0 = arith.cmpi eq, %arg2, %c0_i32 : i32
    %1 = arith.extui %0 : i1 to i32
    %c0_i32_0 = arith.constant 0 : i32
    %2 = arith.cmpi ne, %1, %c0_i32_0 : i32
    scf.if %2 {
      %cst_10 = arith.constant 0.000000e+00 : f32
      %12 = vector.broadcast %cst_10 : f32 to vector<8x128xf32>
      %c0_11 = arith.constant 0 : index
      %c0_12 = arith.constant 0 : index
      %13 = vector.load %arg7[%c0_11, %c0_12] : memref<8x128xf32, #tpu.memory_space<vmem>>, vector<8x128xf32>
      tpu.vector_store %arg7[%c0_11, %c0_12], %12 {strides = array<i32>} : memref<8x128xf32, #tpu.memory_space<vmem>>, vector<8x128xf32>,
    } else {
    }
    %c0 = arith.constant 0 : index
    %c0_1 = arith.constant 0 : index
    %3 = vector.load %arg7[%c0, %c0_1] : memref<8x128xf32, #tpu.memory_space<vmem>>, vector<8x128xf32>
    %c0_2 = arith.constant 0 : index
    %c0_3 = arith.constant 0 : index
    %4 = vector.load %arg3[%c0_2, %c0_3] : memref<8x128xbf16, #tpu.memory_space<vmem>>, vector<8x128xbf16>
    %c0_4 = arith.constant 0 : index
    %c0_5 = arith.constant 0 : index
    %5 = vector.load %arg4[%c0_4, %c0_5] : memref<128x128xbf16, #tpu.memory_space<vmem>>, vector<128x128xbf16>
    %cst = arith.constant dense<0.000000e+00> : vector<8x128xf32>
    %6 = tpu.matmul %4, %5, %cst {dimension_numbers = #tpu.dot_dimension_numbers<[1], [0], [0], [1], [0, 0, 1, 1], [], []>} : vector<8x128xbf16>, vector<128x128xbf16>, vector<8x128xf32> -> vector<8x128xf32>
    %7 = arith.addf %3, %6 : vector<8x128xf32>
    %c0_6 = arith.constant 0 : index
    %c0_7 = arith.constant 0 : index
    %8 = vector.load %arg7[%c0_6, %c0_7] : memref<8x128xf32, #tpu.memory_space<vmem>>, vector<8x128xf32>
    tpu.vector_store %arg7[%c0_6, %c0_7], %7 {strides = array<i32>} : memref<8x128xf32, #tpu.memory_space<vmem>>, vector<8x128xf32>,
    %c0_i32_8 = arith.constant 0 : i32
    %9 = arith.cmpi eq, %arg2, %c0_i32_8 : i32
    %10 = arith.extui %9 : i1 to i32
    %c0_i32_9 = arith.constant 0 : i32
    %11 = arith.cmpi ne, %10, %c0_i32_9 : i32
    scf.if %11 {
      %c0_10 = arith.constant 0 : index
      %c0_11 = arith.constant 0 : index
      %12 = vector.load %arg7[%c0_10, %c0_11] : memref<8x128xf32, #tpu.memory_space<vmem>>, vector<8x128xf32>
      %c0_12 = arith.constant 0 : index
      %c0_13 = arith.constant 0 : index
      %13 = vector.load %arg5[%c0_12, %c0_13] : memref<1x128xf32, #tpu.memory_space<vmem>>, vector<1x128xf32>
      %14 = vector.broadcast %13 : vector<1x128xf32> to vector<8x128xf32>
      %15 = arith.addf %12, %14 : vector<8x128xf32>
      %c0_14 = arith.constant 0 : index
      %c0_15 = arith.constant 0 : index
      %16 = vector.load %arg6[%c0_14, %c0_15] : memref<8x128xf32, #tpu.memory_space<vmem>>, vector<8x128xf32>
      tpu.vector_store %arg6[%c0_14, %c0_15], %15 {strides = array<i32>} : memref<8x128xf32, #tpu.memory_space<vmem>>, vector<8x128xf32>,
    } else {
    }
    return
  }
  func.func @transform_0(%arg0: i32, %arg1: i32, %arg2: i32) -> (i32, i32) {
    %c0_i32 = arith.constant 0 : i32
    return %arg0, %arg2 : i32, i32
  }
  func.func @transform_1(%arg0: i32, %arg1: i32, %arg2: i32) -> (i32, i32) {
    %c0_i32 = arith.constant 0 : i32
    return %arg2, %arg1 : i32, i32
  }
  func.func @transform_2(%arg0: i32, %arg1: i32, %arg2: i32) -> (i32, i32) {
    %c0_i32 = arith.constant 0 : i32
    %c0_i32_0 = arith.constant 0 : i32
    return %c0_i32, %arg1 : i32, i32
  }
  func.func @transform_3(%arg0: i32, %arg1: i32, %arg2: i32) -> (i32, i32) {
    %c0_i32 = arith.constant 0 : i32
    return %arg0, %arg1 : i32, i32
  }
}

module attributes {stable_mosaic.version = 11 : i64} {
  func.func @_matmul_kernel(%arg0: i32, %arg1: i32, %arg2: i32, %arg3: memref<16x128xbf16, #tpu.memory_space<vmem>>, %arg4: memref<128x128xbf16, #tpu.memory_space<vmem>>, %arg5: memref<1x128xf32, #tpu.memory_space<vmem>>, %arg6: memref<16x128xf32, #tpu.memory_space<vmem>>, %arg7: memref<16x128xf32, #tpu.memory_space<vmem>>) attributes {dimension_semantics = [#tpu.dimension_semantics<parallel>, #tpu.dimension_semantics<parallel>, #tpu.dimension_semantics<arbitrary>], iteration_bounds = array<i64: 1, 1, 1>, scalar_prefetch = 0 : i64, scratch_operands = 1 : i64, tpu.core_type = #tpu.core_type<tc>, window_params = [{transform_indices = @transform_0, window_bounds = array<i64: 16, 128>}, {transform_indices = @transform_1, window_bounds = array<i64: 128, 128>}, {transform_indices = @transform_2, window_bounds = array<i64: 1, 128>}, {transform_indices = @transform_3, window_bounds = array<i64: 16, 128>}]} {
    %c0_i32 = arith.constant 0 : i32
    %0 = arith.cmpi eq, %arg2, %c0_i32 : i32
    %1 = arith.extui %0 : i1 to i32
    %c0_i32_0 = arith.constant 0 : i32
    %2 = arith.cmpi ne, %1, %c0_i32_0 : i32
    scf.if %2 {
      %cst_10 = arith.constant 0.000000e+00 : f32
      %12 = vector.broadcast %cst_10 : f32 to vector<16x128xf32>
      %c0_11 = arith.constant 0 : index
      %c0_12 = arith.constant 0 : index
      %13 = vector.load %arg7[%c0_11, %c0_12] : memref<16x128xf32, #tpu.memory_space<vmem>>, vector<16x128xf32>
      tpu.vector_store %arg7[%c0_11, %c0_12], %12 {strides = array<i32>} : memref<16x128xf32, #tpu.memory_space<vmem>>, vector<16x128xf32>,
    } else {
    }
    %c0 = arith.constant 0 : index
    %c0_1 = arith.constant 0 : index
    %3 = vector.load %arg7[%c0, %c0_1] : memref<16x128xf32, #tpu.memory_space<vmem>>, vector<16x128xf32>
    %c0_2 = arith.constant 0 : index
    %c0_3 = arith.constant 0 : index
    %4 = vector.load %arg3[%c0_2, %c0_3] : memref<16x128xbf16, #tpu.memory_space<vmem>>, vector<16x128xbf16>
    %c0_4 = arith.constant 0 : index
    %c0_5 = arith.constant 0 : index
    %5 = vector.load %arg4[%c0_4, %c0_5] : memref<128x128xbf16, #tpu.memory_space<vmem>>, vector<128x128xbf16>
    %cst = arith.constant dense<0.000000e+00> : vector<16x128xf32>
    %6 = tpu.matmul %4, %5, %cst {dimension_numbers = #tpu.dot_dimension_numbers<[1], [0], [0], [1], [0, 0, 1, 1], [], []>} : vector<16x128xbf16>, vector<128x128xbf16>, vector<16x128xf32> -> vector<16x128xf32>
    %7 = arith.addf %3, %6 : vector<16x128xf32>
    %c0_6 = arith.constant 0 : index
    %c0_7 = arith.constant 0 : index
    %8 = vector.load %arg7[%c0_6, %c0_7] : memref<16x128xf32, #tpu.memory_space<vmem>>, vector<16x128xf32>
    tpu.vector_store %arg7[%c0_6, %c0_7], %7 {strides = array<i32>} : memref<16x128xf32, #tpu.memory_space<vmem>>, vector<16x128xf32>,
    %c0_i32_8 = arith.constant 0 : i32
    %9 = arith.cmpi eq, %arg2, %c0_i32_8 : i32
    %10 = arith.extui %9 : i1 to i32
    %c0_i32_9 = arith.constant 0 : i32
    %11 = arith.cmpi ne, %10, %c0_i32_9 : i32
    scf.if %11 {
      %c0_10 = arith.constant 0 : index
      %c0_11 = arith.constant 0 : index
      %12 = vector.load %arg7[%c0_10, %c0_11] : memref<16x128xf32, #tpu.memory_space<vmem>>, vector<16x128xf32>
      %c0_12 = arith.constant 0 : index
      %c0_13 = arith.constant 0 : index
      %13 = vector.load %arg5[%c0_12, %c0_13] : memref<1x128xf32, #tpu.memory_space<vmem>>, vector<1x128xf32>
      %14 = vector.broadcast %13 : vector<1x128xf32> to vector<16x128xf32>
      %15 = arith.addf %12, %14 : vector<16x128xf32>
      %c0_14 = arith.constant 0 : index
      %c0_15 = arith.constant 0 : index
      %16 = vector.load %arg6[%c0_14, %c0_15] : memref<16x128xf32, #tpu.memory_space<vmem>>, vector<16x128xf32>
      tpu.vector_store %arg6[%c0_14, %c0_15], %15 {strides = array<i32>} : memref<16x128xf32, #tpu.memory_space<vmem>>, vector<16x128xf32>,
    } else {
    }
    return
  }
  func.func @transform_0(%arg0: i32, %arg1: i32, %arg2: i32) -> (i32, i32) {
    %c0_i32 = arith.constant 0 : i32
    return %arg0, %arg2 : i32, i32
  }
  func.func @transform_1(%arg0: i32, %arg1: i32, %arg2: i32) -> (i32, i32) {
    %c0_i32 = arith.constant 0 : i32
    return %arg2, %arg1 : i32, i32
  }
  func.func @transform_2(%arg0: i32, %arg1: i32, %arg2: i32) -> (i32, i32) {
    %c0_i32 = arith.constant 0 : i32
    %c0_i32_0 = arith.constant 0 : i32
    return %c0_i32, %arg1 : i32, i32
  }
  func.func @transform_3(%arg0: i32, %arg1: i32, %arg2: i32) -> (i32, i32) {
    %c0_i32 = arith.constant 0 : i32
    return %arg0, %arg1 : i32, i32
  }
}

module attributes {stable_mosaic.version = 11 : i64} {
  func.func @_mlp_block_kernel(%arg0: i32, %arg1: i32, %arg2: memref<2x8x64xbf16, #tpu.memory_space<vmem>>, %arg3: memref<2x1x64xf32, #tpu.memory_space<vmem>>, %arg4: memref<2x1x64xf32, #tpu.memory_space<vmem>>, %arg5: memref<2x1x64xf32, #tpu.memory_space<vmem>>, %arg6: memref<64x256xbf16, #tpu.memory_space<vmem>>, %arg7: memref<64x256xbf16, #tpu.memory_space<vmem>>, %arg8: memref<256x64xbf16, #tpu.memory_space<vmem>>, %arg9: memref<2x8x64xbf16, #tpu.memory_space<vmem>>, %arg10: memref<16x64xbf16, #tpu.memory_space<vmem>>, %arg11: memref<16x64xf32, #tpu.memory_space<vmem>>) attributes {dimension_semantics = [#tpu.dimension_semantics<parallel>, #tpu.dimension_semantics<arbitrary>], iteration_bounds = array<i64: 1, 1>, scalar_prefetch = 0 : i64, scratch_operands = 2 : i64, tpu.core_type = #tpu.core_type<tc>, window_params = [{transform_indices = @transform_0, window_bounds = array<i64: 2, 8, 64>}, {transform_indices = @transform_1, window_bounds = array<i64: 2, 1, 64>}, {transform_indices = @transform_2, window_bounds = array<i64: 2, 1, 64>}, {transform_indices = @transform_3, window_bounds = array<i64: 2, 1, 64>}, {transform_indices = @transform_4, window_bounds = array<i64: 64, 256>}, {transform_indices = @transform_5, window_bounds = array<i64: 64, 256>}, {transform_indices = @transform_6, window_bounds = array<i64: 256, 64>}, {transform_indices = @transform_7, window_bounds = array<i64: 2, 8, 64>}]} {
    %c0_i32 = arith.constant 0 : i32
    %0 = arith.cmpi eq, %arg1, %c0_i32 : i32
    %1 = arith.extui %0 : i1 to i32
    %c0_i32_0 = arith.constant 0 : i32
    %2 = arith.cmpi ne, %1, %c0_i32_0 : i32
    scf.if %2 {
      %c0_17 = arith.constant 0 : index
      %c0_18 = arith.constant 0 : index
      %c0_19 = arith.constant 0 : index
      %24 = vector.load %arg2[%c0_17, %c0_18, %c0_19] : memref<2x8x64xbf16, #tpu.memory_space<vmem>>, vector<2x8x64xbf16>
      %25 = arith.extf %24 : vector<2x8x64xbf16> to vector<2x8x64xf32>
      %26 = arith.mulf %25, %25 : vector<2x8x64xf32>
      %cst_20 = arith.constant dense<0.000000e+00> : vector<2x8xf32>
      %27 = vector.multi_reduction <add>, %26, %cst_20 [2] : vector<2x8x64xf32> to vector<2x8xf32>
      %28 = vector.shape_cast %27 : vector<2x8xf32> to vector<2x8x1xf32>
      %cst_21 = arith.constant 6.400000e+01 : f32
      %29 = vector.broadcast %cst_21 : f32 to vector<2x8x1xf32>
      %30 = arith.divf %28, %29 : vector<2x8x1xf32>
      %cst_22 = arith.constant 9.99999997E-7 : f32
      %31 = vector.broadcast %cst_22 : f32 to vector<2x8x1xf32>
      %32 = arith.addf %30, %31 : vector<2x8x1xf32>
      %33 = math.rsqrt %32 : vector<2x8x1xf32>
      %34 = vector.broadcast %33 : vector<2x8x1xf32> to vector<2x8x64xf32>
      %35 = arith.mulf %25, %34 : vector<2x8x64xf32>
      %c0_23 = arith.constant 0 : index
      %c0_24 = arith.constant 0 : index
      %c0_25 = arith.constant 0 : index
      %36 = vector.load %arg4[%c0_23, %c0_24, %c0_25] : memref<2x1x64xf32, #tpu.memory_space<vmem>>, vector<2x1x64xf32>
      %cst_26 = arith.constant 1.000000e+00 : f32
      %37 = vector.broadcast %cst_26 : f32 to vector<2x1x64xf32>
      %38 = arith.addf %37, %36 : vector<2x1x64xf32>
      %39 = vector.broadcast %38 : vector<2x1x64xf32> to vector<2x8x64xf32>
      %40 = arith.mulf %35, %39 : vector<2x8x64xf32>
      %c0_27 = arith.constant 0 : index
      %c0_28 = arith.constant 0 : index
      %c0_29 = arith.constant 0 : index
      %41 = vector.load %arg3[%c0_27, %c0_28, %c0_29] : memref<2x1x64xf32, #tpu.memory_space<vmem>>, vector<2x1x64xf32>
      %42 = vector.broadcast %41 : vector<2x1x64xf32> to vector<2x8x64xf32>
      %43 = arith.addf %40, %42 : vector<2x8x64xf32>
      %44 = vector.shape_cast %43 : vector<2x8x64xf32> to vector<16x64xf32>
      %45 = arith.truncf %44 : vector<16x64xf32> to vector<16x64xbf16>
      %c0_30 = arith.constant 0 : index
      %c0_31 = arith.constant 0 : index
      %46 = vector.load %arg10[%c0_30, %c0_31] : memref<16x64xbf16, #tpu.memory_space<vmem>>, vector<16x64xbf16>
      tpu.vector_store %arg10[%c0_30, %c0_31], %45 {strides = array<i32>} : memref<16x64xbf16, #tpu.memory_space<vmem>>, vector<16x64xbf16>,
      %cst_32 = arith.constant 0.000000e+00 : f32
      %47 = vector.broadcast %cst_32 : f32 to vector<16x64xf32>
      %c0_33 = arith.constant 0 : index
      %c0_34 = arith.constant 0 : index
      %48 = vector.load %arg11[%c0_33, %c0_34] : memref<16x64xf32, #tpu.memory_space<vmem>>, vector<16x64xf32>
      tpu.vector_store %arg11[%c0_33, %c0_34], %47 {strides = array<i32>} : memref<16x64xf32, #tpu.memory_space<vmem>>, vector<16x64xf32>,
    } else {
    }
    %c0 = arith.constant 0 : index
    %c0_1 = arith.constant 0 : index
    %3 = vector.load %arg10[%c0, %c0_1] : memref<16x64xbf16, #tpu.memory_space<vmem>>, vector<16x64xbf16>
    %c0_2 = arith.constant 0 : index
    %c0_3 = arith.constant 0 : index
    %4 = vector.load %arg6[%c0_2, %c0_3] : memref<64x256xbf16, #tpu.memory_space<vmem>>, vector<64x256xbf16>
    %cst = arith.constant dense<0.000000e+00> : vector<16x256xf32>
    %5 = tpu.matmul %3, %4, %cst {dimension_numbers = #tpu.dot_dimension_numbers<[1], [0], [0], [1], [0, 0, 1, 1], [], []>} : vector<16x64xbf16>, vector<64x256xbf16>, vector<16x256xf32> -> vector<16x256xf32>
    %c0_4 = arith.constant 0 : index
    %c0_5 = arith.constant 0 : index
    %6 = vector.load %arg7[%c0_4, %c0_5] : memref<64x256xbf16, #tpu.memory_space<vmem>>, vector<64x256xbf16>
    %cst_6 = arith.constant dense<0.000000e+00> : vector<16x256xf32>
    %7 = tpu.matmul %3, %6, %cst_6 {dimension_numbers = #tpu.dot_dimension_numbers<[1], [0], [0], [1], [0, 0, 1, 1], [], []>} : vector<16x64xbf16>, vector<64x256xbf16>, vector<16x256xf32> -> vector<16x256xf32>
    %8 = arith.negf %5 : vector<16x256xf32>
    %9 = math.exp %8 : vector<16x256xf32>
    %cst_7 = arith.constant 1.000000e+00 : f32
    %10 = vector.broadcast %cst_7 : f32 to vector<16x256xf32>
    %11 = arith.addf %10, %9 : vector<16x256xf32>
    %12 = arith.divf %10, %11 : vector<16x256xf32>
    %13 = arith.mulf %5, %12 : vector<16x256xf32>
    %14 = arith.mulf %13, %7 : vector<16x256xf32>
    %c0_8 = arith.constant 0 : index
    %c0_9 = arith.constant 0 : index
    %15 = vector.load %arg11[%c0_8, %c0_9] : memref<16x64xf32, #tpu.memory_space<vmem>>, vector<16x64xf32>
    %16 = arith.truncf %14 : vector<16x256xf32> to vector<16x256xbf16>
    %c0_10 = arith.constant 0 : index
    %c0_11 = arith.constant 0 : index
    %17 = vector.load %arg8[%c0_10, %c0_11] : memref<256x64xbf16, #tpu.memory_space<vmem>>, vector<256x64xbf16>
    %cst_12 = arith.constant dense<0.000000e+00> : vector<16x64xf32>
    %18 = tpu.matmul %16, %17, %cst_12 {dimension_numbers = #tpu.dot_dimension_numbers<[1], [0], [0], [1], [0, 0, 1, 1], [], []>} : vector<16x256xbf16>, vector<256x64xbf16>, vector<16x64xf32> -> vector<16x64xf32>
    %19 = arith.addf %15, %18 : vector<16x64xf32>
    %c0_13 = arith.constant 0 : index
    %c0_14 = arith.constant 0 : index
    %20 = vector.load %arg11[%c0_13, %c0_14] : memref<16x64xf32, #tpu.memory_space<vmem>>, vector<16x64xf32>
    tpu.vector_store %arg11[%c0_13, %c0_14], %19 {strides = array<i32>} : memref<16x64xf32, #tpu.memory_space<vmem>>, vector<16x64xf32>,
    %c0_i32_15 = arith.constant 0 : i32
    %21 = arith.cmpi eq, %arg1, %c0_i32_15 : i32
    %22 = arith.extui %21 : i1 to i32
    %c0_i32_16 = arith.constant 0 : i32
    %23 = arith.cmpi ne, %22, %c0_i32_16 : i32
    scf.if %23 {
      %c0_17 = arith.constant 0 : index
      %c0_18 = arith.constant 0 : index
      %c0_19 = arith.constant 0 : index
      %24 = vector.load %arg2[%c0_17, %c0_18, %c0_19] : memref<2x8x64xbf16, #tpu.memory_space<vmem>>, vector<2x8x64xbf16>
      %25 = arith.extf %24 : vector<2x8x64xbf16> to vector<2x8x64xf32>
      %c0_20 = arith.constant 0 : index
      %c0_21 = arith.constant 0 : index
      %c0_22 = arith.constant 0 : index
      %26 = vector.load %arg5[%c0_20, %c0_21, %c0_22] : memref<2x1x64xf32, #tpu.memory_space<vmem>>, vector<2x1x64xf32>
      %c0_23 = arith.constant 0 : index
      %c0_24 = arith.constant 0 : index
      %27 = vector.load %arg11[%c0_23, %c0_24] : memref<16x64xf32, #tpu.memory_space<vmem>>, vector<16x64xf32>
      %28 = vector.shape_cast %27 : vector<16x64xf32> to vector<2x8x64xf32>
      %29 = vector.broadcast %26 : vector<2x1x64xf32> to vector<2x8x64xf32>
      %30 = arith.mulf %29, %28 : vector<2x8x64xf32>
      %31 = arith.addf %25, %30 : vector<2x8x64xf32>
      %32 = arith.truncf %31 : vector<2x8x64xf32> to vector<2x8x64xbf16>
      %c0_25 = arith.constant 0 : index
      %c0_26 = arith.constant 0 : index
      %c0_27 = arith.constant 0 : index
      %33 = vector.load %arg9[%c0_25, %c0_26, %c0_27] : memref<2x8x64xbf16, #tpu.memory_space<vmem>>, vector<2x8x64xbf16>
      tpu.vector_store %arg9[%c0_25, %c0_26, %c0_27], %32 {strides = array<i32>} : memref<2x8x64xbf16, #tpu.memory_space<vmem>>, vector<2x8x64xbf16>,
    } else {
    }
    return
  }
  func.func @transform_0(%arg0: i32, %arg1: i32) -> (i32, i32, i32) {
    %c0_i32 = arith.constant 0 : i32
    %c0_i32_0 = arith.constant 0 : i32
    %c0_i32_1 = arith.constant 0 : i32
    return %arg0, %c0_i32, %c0_i32_0 : i32, i32, i32
  }
  func.func @transform_1(%arg0: i32, %arg1: i32) -> (i32, i32, i32) {
    %c0_i32 = arith.constant 0 : i32
    %c0_i32_0 = arith.constant 0 : i32
    %c0_i32_1 = arith.constant 0 : i32
    return %arg0, %c0_i32, %c0_i32_0 : i32, i32, i32
  }
  func.func @transform_2(%arg0: i32, %arg1: i32) -> (i32, i32, i32) {
    %c0_i32 = arith.constant 0 : i32
    %c0_i32_0 = arith.constant 0 : i32
    %c0_i32_1 = arith.constant 0 : i32
    return %arg0, %c0_i32, %c0_i32_0 : i32, i32, i32
  }
  func.func @transform_3(%arg0: i32, %arg1: i32) -> (i32, i32, i32) {
    %c0_i32 = arith.constant 0 : i32
    %c0_i32_0 = arith.constant 0 : i32
    %c0_i32_1 = arith.constant 0 : i32
    return %arg0, %c0_i32, %c0_i32_0 : i32, i32, i32
  }
  func.func @transform_4(%arg0: i32, %arg1: i32) -> (i32, i32) {
    %c0_i32 = arith.constant 0 : i32
    %c0_i32_0 = arith.constant 0 : i32
    return %c0_i32, %arg1 : i32, i32
  }
  func.func @transform_5(%arg0: i32, %arg1: i32) -> (i32, i32) {
    %c0_i32 = arith.constant 0 : i32
    %c0_i32_0 = arith.constant 0 : i32
    return %c0_i32, %arg1 : i32, i32
  }
  func.func @transform_6(%arg0: i32, %arg1: i32) -> (i32, i32) {
    %c0_i32 = arith.constant 0 : i32
    %c0_i32_0 = arith.constant 0 : i32
    return %arg1, %c0_i32 : i32, i32
  }
  func.func @transform_7(%arg0: i32, %arg1: i32) -> (i32, i32, i32) {
    %c0_i32 = arith.constant 0 : i32
    %c0_i32_0 = arith.constant 0 : i32
    %c0_i32_1 = arith.constant 0 : i32
    return %arg0, %c0_i32, %c0_i32_0 : i32, i32, i32
  }
}

module attributes {stable_mosaic.version = 11 : i64} {
  func.func @_final_kernel(%arg0: i32, %arg1: memref<2x8x64xbf16, #tpu.memory_space<vmem>>, %arg2: memref<2x1x64xf32, #tpu.memory_space<vmem>>, %arg3: memref<2x1x64xf32, #tpu.memory_space<vmem>>, %arg4: memref<64x128xbf16, #tpu.memory_space<vmem>>, %arg5: memref<1x128xf32, #tpu.memory_space<vmem>>, %arg6: memref<2x8x128xf32, #tpu.memory_space<vmem>>) attributes {dimension_semantics = [#tpu.dimension_semantics<arbitrary>], iteration_bounds = array<i64: 1>, scalar_prefetch = 0 : i64, scratch_operands = 0 : i64, tpu.core_type = #tpu.core_type<tc>, window_params = [{pipeline_mode = #tpu.pipeline_mode<synchronous>, transform_indices = @transform_0, window_bounds = array<i64: 2, 8, 64>}, {pipeline_mode = #tpu.pipeline_mode<synchronous>, transform_indices = @transform_1, window_bounds = array<i64: 2, 1, 64>}, {pipeline_mode = #tpu.pipeline_mode<synchronous>, transform_indices = @transform_2, window_bounds = array<i64: 2, 1, 64>}, {pipeline_mode = #tpu.pipeline_mode<synchronous>, transform_indices = @transform_3, window_bounds = array<i64: 64, 128>}, {pipeline_mode = #tpu.pipeline_mode<synchronous>, transform_indices = @transform_4, window_bounds = array<i64: 1, 128>}, {pipeline_mode = #tpu.pipeline_mode<synchronous>, transform_indices = @transform_5, window_bounds = array<i64: 2, 8, 128>}]} {
    %c0 = arith.constant 0 : index
    %c0_0 = arith.constant 0 : index
    %c0_1 = arith.constant 0 : index
    %0 = vector.load %arg1[%c0, %c0_0, %c0_1] : memref<2x8x64xbf16, #tpu.memory_space<vmem>>, vector<2x8x64xbf16>
    %1 = arith.extf %0 : vector<2x8x64xbf16> to vector<2x8x64xf32>
    %2 = arith.mulf %1, %1 : vector<2x8x64xf32>
    %cst = arith.constant dense<0.000000e+00> : vector<2x8xf32>
    %3 = vector.multi_reduction <add>, %2, %cst [2] : vector<2x8x64xf32> to vector<2x8xf32>
    %4 = vector.shape_cast %3 : vector<2x8xf32> to vector<2x8x1xf32>
    %cst_2 = arith.constant 6.400000e+01 : f32
    %5 = vector.broadcast %cst_2 : f32 to vector<2x8x1xf32>
    %6 = arith.divf %4, %5 : vector<2x8x1xf32>
    %cst_3 = arith.constant 9.99999997E-7 : f32
    %7 = vector.broadcast %cst_3 : f32 to vector<2x8x1xf32>
    %8 = arith.addf %6, %7 : vector<2x8x1xf32>
    %9 = math.rsqrt %8 : vector<2x8x1xf32>
    %10 = vector.broadcast %9 : vector<2x8x1xf32> to vector<2x8x64xf32>
    %11 = arith.mulf %1, %10 : vector<2x8x64xf32>
    %c0_4 = arith.constant 0 : index
    %c0_5 = arith.constant 0 : index
    %c0_6 = arith.constant 0 : index
    %12 = vector.load %arg3[%c0_4, %c0_5, %c0_6] : memref<2x1x64xf32, #tpu.memory_space<vmem>>, vector<2x1x64xf32>
    %cst_7 = arith.constant 1.000000e+00 : f32
    %13 = vector.broadcast %cst_7 : f32 to vector<2x1x64xf32>
    %14 = arith.addf %13, %12 : vector<2x1x64xf32>
    %15 = vector.broadcast %14 : vector<2x1x64xf32> to vector<2x8x64xf32>
    %16 = arith.mulf %11, %15 : vector<2x8x64xf32>
    %c0_8 = arith.constant 0 : index
    %c0_9 = arith.constant 0 : index
    %c0_10 = arith.constant 0 : index
    %17 = vector.load %arg2[%c0_8, %c0_9, %c0_10] : memref<2x1x64xf32, #tpu.memory_space<vmem>>, vector<2x1x64xf32>
    %18 = vector.broadcast %17 : vector<2x1x64xf32> to vector<2x8x64xf32>
    %19 = arith.addf %16, %18 : vector<2x8x64xf32>
    %20 = arith.truncf %19 : vector<2x8x64xf32> to vector<2x8x64xbf16>
    %21 = vector.shape_cast %20 : vector<2x8x64xbf16> to vector<16x64xbf16>
    %c0_11 = arith.constant 0 : index
    %c0_12 = arith.constant 0 : index
    %22 = vector.load %arg4[%c0_11, %c0_12] : memref<64x128xbf16, #tpu.memory_space<vmem>>, vector<64x128xbf16>
    %cst_13 = arith.constant dense<0.000000e+00> : vector<16x128xf32>
    %23 = tpu.matmul %21, %22, %cst_13 {dimension_numbers = #tpu.dot_dimension_numbers<[1], [0], [0], [1], [0, 0, 1, 1], [], []>} : vector<16x64xbf16>, vector<64x128xbf16>, vector<16x128xf32> -> vector<16x128xf32>
    %c0_14 = arith.constant 0 : index
    %c0_15 = arith.constant 0 : index
    %24 = vector.load %arg5[%c0_14, %c0_15] : memref<1x128xf32, #tpu.memory_space<vmem>>, vector<1x128xf32>
    %25 = vector.broadcast %24 : vector<1x128xf32> to vector<16x128xf32>
    %26 = arith.addf %23, %25 : vector<16x128xf32>
    %27 = vector.shape_cast %26 : vector<16x128xf32> to vector<2x8x128xf32>
    %c0_16 = arith.constant 0 : index
    %c0_17 = arith.constant 0 : index
    %c0_18 = arith.constant 0 : index
    %28 = vector.load %arg6[%c0_16, %c0_17, %c0_18] : memref<2x8x128xf32, #tpu.memory_space<vmem>>, vector<2x8x128xf32>
    tpu.vector_store %arg6[%c0_16, %c0_17, %c0_18], %27 {strides = array<i32>} : memref<2x8x128xf32, #tpu.memory_space<vmem>>, vector<2x8x128xf32>,
    return
  }
  func.func @transform_0(%arg0: i32) -> (i32, i32, i32) {
    %c0_i32 = arith.constant 0 : i32
    %c0_i32_0 = arith.constant 0 : i32
    %c0_i32_1 = arith.constant 0 : i32
    %c0_i32_2 = arith.constant 0 : i32
    return %c0_i32, %c0_i32_0, %c0_i32_1 : i32, i32, i32
  }
  func.func @transform_1(%arg0: i32) -> (i32, i32, i32) {
    %c0_i32 = arith.constant 0 : i32
    %c0_i32_0 = arith.constant 0 : i32
    %c0_i32_1 = arith.constant 0 : i32
    %c0_i32_2 = arith.constant 0 : i32
    return %c0_i32, %c0_i32_0, %c0_i32_1 : i32, i32, i32
  }
  func.func @transform_2(%arg0: i32) -> (i32, i32, i32) {
    %c0_i32 = arith.constant 0 : i32
    %c0_i32_0 = arith.constant 0 : i32
    %c0_i32_1 = arith.constant 0 : i32
    %c0_i32_2 = arith.constant 0 : i32
    return %c0_i32, %c0_i32_0, %c0_i32_1 : i32, i32, i32
  }
  func.func @transform_3(%arg0: i32) -> (i32, i32) {
    %c0_i32 = arith.constant 0 : i32
    %c0_i32_0 = arith.constant 0 : i32
    %c0_i32_1 = arith.constant 0 : i32
    return %c0_i32, %c0_i32_0 : i32, i32
  }
  func.func @transform_4(%arg0: i32) -> (i32, i32) {
    %c0_i32 = arith.constant 0 : i32
    %c0_i32_0 = arith.constant 0 : i32
    %c0_i32_1 = arith.constant 0 : i32
    return %c0_i32, %c0_i32_0 : i32, i32
  }
  func.func @transform_5(%arg0: i32) -> (i32, i32, i32) {
    %c0_i32 = arith.constant 0 : i32
    %c0_i32_0 = arith.constant 0 : i32
    %c0_i32_1 = arith.constant 0 : i32
    %c0_i32_2 = arith.constant 0 : i32
    return %c0_i32, %c0_i32_0, %c0_i32_1 : i32, i32, i32
  }
}

</mosaic_0001>

<llo_original>
// kernel: _lambda_.8
$region0: #{_lambda_.8}
  #allocation0 [shape = 'u32[]', space=smem, size = 0x4, offset = 0x4, fixed_abs, tag = 'smem constant byte address 0x4 - core index']
  #allocation1 [shape = 'u32[144,128]{1,0:T(1,128)}', space=vmem, size = 0x12000, scoped, tag = 'internal scratch']
  #allocation2 [shape = 'f32[8,128]{1,0:T(8,128)}', space=vmem, size = 0x1000, scoped, tag = 'scratch operand']
  %s0 = inlined_call_operand.vmem [shape: bf16[8,128], index: 0, kind: input, shape index: {}]
  %s1 = inlined_call_operand.vmem [shape: bf16[128,896], index: 1, kind: input, shape index: {}]
  %s2 = inlined_call_operand.vmem [shape: f32[1,896], index: 2, kind: input, shape index: {}]
  %s3 = inlined_call_operand.vmem [shape: f32[8,896], index: 3, kind: output, shape index: {}]
  %s4 = sld [smem:[#allocation0]]
  $region94: #{_lambda_.8} parent=0
    _
  %s6 = ssub.s32 1, %s4
  %s7 = scalar_select 0, %s6, %s4
  $region1: #{_lambda_.8} parent=0
    #allocation3 [shape = 'u8[65536]{0}', space=vmem, size = 0x10000, scoped, tag = 'input window, operand 1']
    loop: start=0, step=1, limit=9
    $region2: #{_lambda_.8} parent=1 // loop_pre_header
      _
    $region3: #{_lambda_.8} parent=1 // loop_header
      %s9 = sphi 0, %s13
      %p10 = scmp.ge.s32.totalorder %s9, 9
      %s16 = sphi 0, %s35
      %s17 = sphi 0, %s31
      %s18 = sphi 0, %s27
      %s19 = sphi 0, %s16
      %s20 = sphi 0, %s17
      %s21 = sphi 0, %s18
      %s22 = sphi 0, %s19
      %s23 = sphi 0, %s20
      %s24 = sphi 0, %s21
      %s40 = sphi 0, %s42
      %s43 = sphi 0, %s40
      %s44 = sphi 0, %s43
      %s60 = sphi 0, %s44
      %s68 = sphi 0, %s70
      %s71 = sphi 0, %s68
      %s72 = sphi 0, %s71
      %s88 = sphi 0, %s72
      %s94 = sphi 0, %s96
      %s97 = sphi 0, %s94
      %s98 = sphi 0, %s97
      %s114 = sphi 0, %s98
      %s122 = sphi 0, %s124
      %s125 = sphi 0, %s122
      %s126 = sphi 0, %s125
      %s142 = sphi 0, %s126
    $region4: #{_lambda_.8} parent=1 // loop_header_branch
      %12 = sbr.rel (%p10) target = $region8
    $region5: #{_lambda_.8} parent=1 // loop_body
      %s14 = ssub.s32 %s9, 1
      %s15 = ssub.s32 %s9, 2
      %s25 = sadd.s32 1, %s18
      %p26 = scmp.ge.s32.totalorder %s25, 1
      %s27 = scalar_select %p26, 0, %s25
      %s28 = sadd.s32 1, %s17
      %s29 = scalar_select %p26, %s28, %s17
      %p30 = scmp.ge.s32.totalorder %s29, 7
      %s31 = scalar_select %p30, 0, %s29
      %s32 = sadd.s32 1, %s16
      %s33 = scalar_select %p30, %s32, %s16
      %p34 = scmp.ge.s32.totalorder %s33, 1
      %s35 = scalar_select %p34, 0, %s33
      %s36 = ssub.s32 %s16, %s35
      %s37 = ssub.s32 %s18, %s27
      %s38 = sor.u32 %s36, %s37
      %p39 = scmp.eq.s32.totalorder %s38, 0
      %s41 = sadd.s32 %s40, 1
      %s42 = scalar_select %p39, %s40, %s41
      %p45 = pneg %p39
      %p46 = scmp.eq.s32.totalorder %s9, 6
      %p47 = por %p45, %p46
      %p48 = scmp.ne.s32.totalorder %s40, %s43
      %p49 = scmp.eq.s32.totalorder %s9, 0
      %p50 = por %p48, %p49
      %p51 = scmp.ne.s32.totalorder %s40, %s43
      %p52 = scmp.eq.s32.totalorder %s14, 6
      %p53 = por %p51, %p52
      %p54 = scmp.ne.s32.totalorder %s43, %s44
      %p55 = scmp.eq.s32.totalorder %s14, 0
      %p56 = por %p54, %p55
      %p57 = scmp.ne.s32.totalorder %s43, %s44
      %p58 = scmp.eq.s32.totalorder %s15, 6
      %p59 = por %p57, %p58
      %p61 = scmp.ne.s32.totalorder %s44, %s60
      %p62 = scmp.eq.s32.totalorder %s15, 0
      %p63 = por %p61, %p62
      %s64 = ssub.s32 %s18, %s27
      %s65 = ssub.s32 %s17, %s31
      %s66 = sor.u32 %s64, %s65
      %p67 = scmp.eq.s32.totalorder %s66, 0
      %s69 = sadd.s32 %s68, 1
      %s70 = scalar_select %p67, %s68, %s69
      %p73 = pneg %p67
      %p74 = scmp.eq.s32.totalorder %s9, 6
      %p75 = por %p73, %p74
      %p76 = scmp.ne.s32.totalorder %s68, %s71
      %p77 = scmp.eq.s32.totalorder %s9, 0
      %p78 = por %p76, %p77
      %p79 = scmp.ne.s32.totalorder %s68, %s71
      %p80 = scmp.eq.s32.totalorder %s14, 6
      %p81 = por %p79, %p80
      %p82 = scmp.ne.s32.totalorder %s71, %s72
      %p83 = scmp.eq.s32.totalorder %s14, 0
      %p84 = por %p82, %p83
      %p85 = scmp.ne.s32.totalorder %s71, %s72
      %p86 = scmp.eq.s32.totalorder %s15, 6
      %p87 = por %p85, %p86
      %p89 = scmp.ne.s32.totalorder %s72, %s88
      %p90 = scmp.eq.s32.totalorder %s15, 0
      %p91 = por %p89, %p90
      %s92 = ssub.s32 %s17, %s31
      %p93 = scmp.eq.s32.totalorder %s92, 0
      %s95 = sadd.s32 %s94, 1
      %s96 = scalar_select %p93, %s94, %s95
      %p99 = pneg %p93
      %p100 = scmp.eq.s32.totalorder %s9, 6
      %p101 = por %p99, %p100
      %p102 = scmp.ne.s32.totalorder %s94, %s97
      %p103 = scmp.eq.s32.totalorder %s9, 0
      %p104 = por %p102, %p103
      %p105 = scmp.ne.s32.totalorder %s94, %s97
      %p106 = scmp.eq.s32.totalorder %s14, 6
      %p107 = por %p105, %p106
      %p108 = scmp.ne.s32.totalorder %s97, %s98
      %p109 = scmp.eq.s32.totalorder %s14, 0
      %p110 = por %p108, %p109
      %p111 = scmp.ne.s32.totalorder %s97, %s98
      %p112 = scmp.eq.s32.totalorder %s15, 6
      %p113 = por %p111, %p112
      %p115 = scmp.ne.s32.totalorder %s98, %s114
      %p116 = scmp.eq.s32.totalorder %s15, 0
      %p117 = por %p115, %p116
      %s118 = ssub.s32 %s16, %s35
      %s119 = ssub.s32 %s17, %s31
      %s120 = sor.u32 %s118, %s119
      %p121 = scmp.eq.s32.totalorder %s120, 0
      %s123 = sadd.s32 %s122, 1
      %s124 = scalar_select %p121, %s122, %s123
      %p127 = pneg %p121
      %p128 = scmp.eq.s32.totalorder %s9, 6
      %p129 = por %p127, %p128
      %p130 = scmp.ne.s32.totalorder %s122, %s125
      %p131 = scmp.eq.s32.totalorder %s9, 0
      %p132 = por %p130, %p131
      %p133 = scmp.ne.s32.totalorder %s122, %s125
      %p134 = scmp.eq.s32.totalorder %s14, 6
      %p135 = por %p133, %p134
      %p136 = scmp.ne.s32.totalorder %s125, %s126
      %p137 = scmp.eq.s32.totalorder %s14, 0
      %p138 = por %p136, %p137
      %p139 = scmp.ne.s32.totalorder %s125, %s126
      %p140 = scmp.eq.s32.totalorder %s15, 6
      %p141 = por %p139, %p140
      %p143 = scmp.ne.s32.totalorder %s126, %s142
      %p144 = scmp.eq.s32.totalorder %s15, 0
      %p145 = por %p143, %p144
      %p146 = scmp.le.s32.totalorder 1, %s9
      %p147 = scmp.lt.s32.totalorder %s9, 8
      %p148 = pnand %p146, %p147
      %p149 = pneg %p148
      // Predicated region
      $region9: #{_lambda_.8} parent=5 // pred_check
        _
      $region10: #{_lambda_.8} parent=5 // pred_check_branch
        %151 = sbr.rel (%p148) target = $region12
      $region11: #{_lambda_.8} parent=5 // pred_region
        %s152 = ssub.s32 %s9, 1
        // Predicated region
        $region13: #{_lambda_.8} parent=11 // pred_check
          %p153 = pneg %p56
        $region14: #{_lambda_.8} parent=11 // pred_check_branch
          %155 = sbr.rel (%p153) target = $region16
        $region15: #{_lambda_.8} parent=11 // pred_region
          %p156 = scmp.lt.s32.totalorder %s19, 0
          %s157 = scalar_select %p156, %s19, 0
          %p158 = scmp.lt.s32.totalorder %s21, 0
          %s159 = scalar_select %p158, %s21, 0
          %s160 = sadd.s32 %s159, %s157
          %s161 = smul.addr %s160, 4
          %s162 = scalar_lea.vmem %s0, %s161
        $region16: #{_lambda_.8} parent=11 // pred_fallthru
          _
      $region12: #{_lambda_.8} parent=5 // pred_fallthru
        _
      %p163 = scmp.lt.s32.totalorder %s9, 7
      // Predicated region
      $region17: #{_lambda_.8} parent=5 // pred_check
        %p164 = pneg %p163
      $region18: #{_lambda_.8} parent=5 // pred_check_branch
        %166 = sbr.rel (%p164) target = $region20
      $region19: #{_lambda_.8} parent=5 // pred_region
        // Predicated region
        $region21: #{_lambda_.8} parent=19 // pred_check
          %p167 = pneg %p78
        $region22: #{_lambda_.8} parent=19 // pred_check_branch
          %169 = sbr.rel (%p167) target = $region24
        $region23: #{_lambda_.8} parent=19 // pred_region
          %s170 = sand.u32 %s68, 1
          %s171 = sand.u32 %s68, 1
          %s172 = smul.addr %s171, 64
          %s173 = scalar_lea.vmem [#allocation3], %s172
          %s174 = smul.u32 16, %s18
          %s175 = smul.addr %s174, 7
          %s176 = sadd.s32 %s17, %s175
          %s177 = smul.addr %s176, 4
          %s178 = scalar_lea.vmem %s1, %s177
          // Predicated region
          $region25: #{_lambda_.8} parent=23 // pred_check
            _
          $region26: #{_lambda_.8} parent=23 // pred_check_branch
            %180 = sbr.rel (0) target = $region28
          $region27: #{_lambda_.8} parent=23 // pred_region
            // Predicated region
            $region29: #{_lambda_.8} parent=27 // pred_check
              _
            $region30: #{_lambda_.8} parent=27 // pred_check_branch
              %182 = sbr.rel target = $region32
            $region31: #{_lambda_.8} parent=27 // pred_region
              // Predicated region
              $region44: #{_lambda_.8} parent=31 // pred_check
                _
              $region45: #{_lambda_.8} parent=31 // pred_check_branch
                %227 = sbr.rel (0) target = $region47
              $region46: #{_lambda_.8} parent=31 // pred_region
                loop: start=0, step=1, limit=1
                $region48: #{_lambda_.8} parent=46 // loop_pre_header
                  _
                $region49: #{_lambda_.8} parent=46 // loop_header
                  %s229 = sphi 0, %s233
                  %p230 = scmp.ge.s32.totalorder %s229, 1
                  %s234 = sphi %s178, %s178
                  %s235 = sphi %s173, %s173
                $region50: #{_lambda_.8} parent=46 // loop_header_branch
                  %232 = sbr.rel (%p230) target = $region54
                $region51: #{_lambda_.8} parent=46 // loop_body
                  _
                $region52: #{_lambda_.8} parent=46 // loop_footer
                  %s233 = sadd.s32 1, %s229
                $region53: #{_lambda_.8} parent=46 // loop_footer_branch
                  %228 = sbr.rel target = $region49
                $region54: #{_lambda_.8} parent=46 // loop_exit
                  _
                loop: start=0, step=1, limit=1
                $region55: #{_lambda_.8} parent=46 // loop_pre_header
                  _
                $region56: #{_lambda_.8} parent=46 // loop_header
                  %s238 = sphi 0, %s242
                  %p239 = scmp.ge.s32.totalorder %s238, 1
                  %s243 = sphi %s178, %s178
                  %s244 = sphi %s173, %s173
                $region57: #{_lambda_.8} parent=46 // loop_header_branch
                  %241 = sbr.rel (%p239) target = $region61
                $region58: #{_lambda_.8} parent=46 // loop_body
                  %v245 = vld [vmem:[%s243] sm:$0xf]
                  %246 = vst [vmem:[%s244] sm:$0xf] %v245
                  %v247 = vld [vmem:[%s243 + $0x1c] sm:$0xf]
                  %248 = vst [vmem:[%s244 + $0x4] sm:$0xf] %v247
                  %v249 = vld [vmem:[%s243 + $0x38] sm:$0xf]
                  %250 = vst [vmem:[%s244 + $0x8] sm:$0xf] %v249
                  %v251 = vld [vmem:[%s243 + $0x54] sm:$0xf]
                  %252 = vst [vmem:[%s244 + $0xc] sm:$0xf] %v251
                  %v253 = vld [vmem:[%s243 + $0x70] sm:$0xf]
                  %254 = vst [vmem:[%s244 + $0x10] sm:$0xf] %v253
                  %v255 = vld [vmem:[%s243 + $0x8c] sm:$0xf]
                  %256 = vst [vmem:[%s244 + $0x14] sm:$0xf] %v255
                  %v257 = vld [vmem:[%s243 + $0xa8] sm:$0xf]
                  %258 = vst [vmem:[%s244 + $0x18] sm:$0xf] %v257
                  %v259 = vld [vmem:[%s243 + $0xc4] sm:$0xf]
                  %260 = vst [vmem:[%s244 + $0x1c] sm:$0xf] %v259
                  %v261 = vld [vmem:[%s243 + $0xe0] sm:$0xf]
                  %262 = vst [vmem:[%s244 + $0x20] sm:$0xf] %v261
                  %v263 = vld [vmem:[%s243 + $0xfc] sm:$0xf]
                  %264 = vst [vmem:[%s244 + $0x24] sm:$0xf] %v263
                  %v265 = vld [vmem:[%s243 + $0x118] sm:$0xf]
                  %266 = vst [vmem:[%s244 + $0x28] sm:$0xf] %v265
                  %v267 = vld [vmem:[%s243 + $0x134] sm:$0xf]
                  %268 = vst [vmem:[%s244 + $0x2c] sm:$0xf] %v267
                  %v269 = vld [vmem:[%s243 + $0x150] sm:$0xf]
                  %270 = vst [vmem:[%s244 + $0x30] sm:$0xf] %v269
                  %v271 = vld [vmem:[%s243 + $0x16c] sm:$0xf]
                  %272 = vst [vmem:[%s244 + $0x34] sm:$0xf] %v271
                  %v273 = vld [vmem:[%s243 + $0x188] sm:$0xf]
                  %274 = vst [vmem:[%s244 + $0x38] sm:$0xf] %v273
                  %v275 = vld [vmem:[%s243 + $0x1a4] sm:$0xf]
                  %276 = vst [vmem:[%s244 + $0x3c] sm:$0xf] %v275
                $region59: #{_lambda_.8} parent=46 // loop_footer
                  %s242 = sadd.s32 1, %s238
                $region60: #{_lambda_.8} parent=46 // loop_footer_branch
                  %237 = sbr.rel target = $region56
                $region61: #{_lambda_.8} parent=46 // loop_exit
                  _
              $region47: #{_lambda_.8} parent=31 // pred_fallthru
                _
            $region32: #{_lambda_.8} parent=27 // pred_fallthru
              _
            // Predicated region
            $region33: #{_lambda_.8} parent=27 // pred_check
              _
            $region34: #{_lambda_.8} parent=27 // pred_check_branch
              %184 = sbr.rel (0) target = $region36
            $region35: #{_lambda_.8} parent=27 // pred_region
              loop: start=0, step=1, limit=1
              $region37: #{_lambda_.8} parent=35 // loop_pre_header
                _
              $region38: #{_lambda_.8} parent=35 // loop_header
                %s187 = sphi 0, %s191
                %p188 = scmp.ge.s32.totalorder %s187, 1
                %s192 = sphi %s178, %s178
                %s193 = sphi %s173, %s173
              $region39: #{_lambda_.8} parent=35 // loop_header_branch
                %190 = sbr.rel (%p188) target = $region43
              $region40: #{_lambda_.8} parent=35 // loop_body
                %v194 = vld [vmem:[%s192] sm:$0xf]
                %195 = vst [vmem:[%s193] sm:$0xf] %v194
                %v196 = vld [vmem:[%s192 + $0x1c] sm:$0xf]
                %197 = vst [vmem:[%s193 + $0x4] sm:$0xf] %v196
                %v198 = vld [vmem:[%s192 + $0x38] sm:$0xf]
                %199 = vst [vmem:[%s193 + $0x8] sm:$0xf] %v198
                %v200 = vld [vmem:[%s192 + $0x54] sm:$0xf]
                %201 = vst [vmem:[%s193 + $0xc] sm:$0xf] %v200
                %v202 = vld [vmem:[%s192 + $0x70] sm:$0xf]
                %203 = vst [vmem:[%s193 + $0x10] sm:$0xf] %v202
                %v204 = vld [vmem:[%s192 + $0x8c] sm:$0xf]
                %205 = vst [vmem:[%s193 + $0x14] sm:$0xf] %v204
                %v206 = vld [vmem:[%s192 + $0xa8] sm:$0xf]
                %207 = vst [vmem:[%s193 + $0x18] sm:$0xf] %v206
                %v208 = vld [vmem:[%s192 + $0xc4] sm:$0xf]
                %209 = vst [vmem:[%s193 + $0x1c] sm:$0xf] %v208
                %v210 = vld [vmem:[%s192 + $0xe0] sm:$0xf]
                %211 = vst [vmem:[%s193 + $0x20] sm:$0xf] %v210
                %v212 = vld [vmem:[%s192 + $0xfc] sm:$0xf]
                %213 = vst [vmem:[%s193 + $0x24] sm:$0xf] %v212
                %v214 = vld [vmem:[%s192 + $0x118] sm:$0xf]
                %215 = vst [vmem:[%s193 + $0x28] sm:$0xf] %v214
                %v216 = vld [vmem:[%s192 + $0x134] sm:$0xf]
                %217 = vst [vmem:[%s193 + $0x2c] sm:$0xf] %v216
                %v218 = vld [vmem:[%s192 + $0x150] sm:$0xf]
                %219 = vst [vmem:[%s193 + $0x30] sm:$0xf] %v218
                %v220 = vld [vmem:[%s192 + $0x16c] sm:$0xf]
                %221 = vst [vmem:[%s193 + $0x34] sm:$0xf] %v220
                %v222 = vld [vmem:[%s192 + $0x188] sm:$0xf]
                %223 = vst [vmem:[%s193 + $0x38] sm:$0xf] %v222
                %v224 = vld [vmem:[%s192 + $0x1a4] sm:$0xf]
                %225 = vst [vmem:[%s193 + $0x3c] sm:$0xf] %v224
              $region41: #{_lambda_.8} parent=35 // loop_footer
                %s191 = sadd.s32 1, %s187
              $region42: #{_lambda_.8} parent=35 // loop_footer_branch
                %186 = sbr.rel target = $region38
              $region43: #{_lambda_.8} parent=35 // loop_exit
                _
            $region36: #{_lambda_.8} parent=27 // pred_fallthru
              _
          $region28: #{_lambda_.8} parent=23 // pred_fallthru
            _
          %277 = vnop
        $region24: #{_lambda_.8} parent=19 // pred_fallthru
          _
        // Predicated region
        $region62: #{_lambda_.8} parent=19 // pred_check
          %p278 = pneg %p104
        $region63: #{_lambda_.8} parent=19 // pred_check_branch
          %280 = sbr.rel (%p278) target = $region65
        $region64: #{_lambda_.8} parent=19 // pred_region
          %p281 = scmp.lt.s32.totalorder %s17, 6
          %s282 = scalar_select %p281, %s17, 6
          %s283 = scalar_lea.vmem %s2, %s282
        $region65: #{_lambda_.8} parent=19 // pred_fallthru
          _
      $region20: #{_lambda_.8} parent=5 // pred_fallthru
        _
      %p284 = scmp.le.s32.totalorder 1, %s9
      %p285 = scmp.lt.s32.totalorder %s9, 8
      %p286 = pnand %p284, %p285
      %p287 = pneg %p286
      // Predicated region
      $region66: #{_lambda_.8} parent=5 // pred_check
        _
      $region67: #{_lambda_.8} parent=5 // pred_check_branch
        %289 = sbr.rel (%p286) target = $region69
      $region68: #{_lambda_.8} parent=5 // pred_region
        %s290 = ssub.s32 %s9, 1
        %s291 = sand.u32 %s71, 1
        %s292 = sand.u32 %s71, 1
        %s293 = smul.addr %s292, 64
        %s294 = scalar_lea.vmem [#allocation3], %s293
        // Predicated region
        $region70: #{_lambda_.8} parent=68 // pred_check
          %p295 = pneg %p84
        $region71: #{_lambda_.8} parent=68 // pred_check_branch
          %297 = sbr.rel (%p295) target = $region73
        $region72: #{_lambda_.8} parent=68 // pred_region
          _
        $region73: #{_lambda_.8} parent=68 // pred_fallthru
          _
        %p298 = scmp.lt.s32.totalorder %s19, 0
        %s299 = scalar_select %p298, %s19, 0
        %p300 = scmp.lt.s32.totalorder %s21, 0
        %s301 = scalar_select %p300, %s21, 0
        %s302 = sadd.s32 %s301, %s299
        %s303 = smul.addr %s302, 4
        %s304 = scalar_lea.vmem %s0, %s303
        %p305 = pneg %p56
        %p306 = pneg %p53
        %s307 = sand.u32 %s71, 1
        %s308 = sand.u32 %s71, 1
        %s309 = smul.addr %s308, 64
        %s310 = scalar_lea.vmem [#allocation3], %s309
        %p311 = pneg %p84
        %p312 = pneg %p81
        %p313 = scmp.lt.s32.totalorder %s20, 6
        %s314 = scalar_select %p313, %s20, 6
        %s315 = scalar_lea.vmem %s2, %s314
        %p316 = pneg %p110
        %p317 = pneg %p107
        %p318 = pneg %p138
        %p319 = pneg %p135
        %p320 = scmp.lt.s32.totalorder %s19, 0
        %s321 = scalar_select %p320, %s19, 0
        %p322 = scmp.lt.s32.totalorder %s20, 6
        %s323 = scalar_select %p322, %s20, 6
        %s324 = smul.addr %s321, 7
        %s325 = sadd.s32 %s323, %s324
        %s326 = smul.addr %s325, 8
        %s327 = scalar_lea.vmem %s3, %s326
        %p328 = scmp.lt.s32.totalorder %s19, 0
        %s329 = scalar_select %p328, %s19, 0
        %p330 = scmp.lt.s32.totalorder %s21, 0
        %s331 = scalar_select %p330, %s21, 0
        %s332 = sadd.s32 %s331, %s329
        %s333 = smul.addr %s332, 4
        %s334 = scalar_lea.vmem %s0, %s333
        %s335 = smul.u32 16, %s21
        %p336 = scmp.lt.s32.totalorder %s20, 6
        %s337 = scalar_select %p336, %s20, 6
        %s338 = scalar_lea.vmem %s2, %s337
        %p339 = scmp.lt.s32.totalorder %s19, 0
        %s340 = scalar_select %p339, %s19, 0
        %p341 = scmp.lt.s32.totalorder %s20, 6
        %s342 = scalar_select %p341, %s20, 6
        %s343 = smul.addr %s340, 7
        %s344 = sadd.s32 %s342, %s343
        %s345 = smul.addr %s344, 8
        %s346 = scalar_lea.vmem %s3, %s345
        %p348 = scmp.eq.s32.totalorder %s21, 0
        // Predicated region
        $region74: #{_lambda_.8} parent=68 // pred_check
          %p349 = pneg %p348
        $region75: #{_lambda_.8} parent=68 // pred_check_branch
          %351 = sbr.rel (%p349) target = $region77
        $region76: #{_lambda_.8} parent=68 // pred_region
          %352 = vst [vmem:[#allocation2] sm:$0xff] 0.0
        $region77: #{_lambda_.8} parent=68 // pred_fallthru
          _
        %v353 = vld [vmem:[#allocation2] sm:$0xff]
        %v354 = vld [vmem:[%s334] sm:$0xf]
        %v355 = vld [vmem:[%s294] sm:$0xf]
        %v356 = vld [vmem:[%s294 + $0x4] sm:$0xf]
        %v357 = vld [vmem:[%s294 + $0x8] sm:$0xf]
        %v358 = vld [vmem:[%s294 + $0xc] sm:$0xf]
        %v359 = vld [vmem:[%s294 + $0x10] sm:$0xf]
        %v360 = vld [vmem:[%s294 + $0x14] sm:$0xf]
        %v361 = vld [vmem:[%s294 + $0x18] sm:$0xf]
        %v362 = vld [vmem:[%s294 + $0x1c] sm:$0xf]
        %v363 = vld [vmem:[%s294 + $0x20] sm:$0xf]
        %v364 = vld [vmem:[%s294 + $0x24] sm:$0xf]
        %v365 = vld [vmem:[%s294 + $0x28] sm:$0xf]
        %v366 = vld [vmem:[%s294 + $0x2c] sm:$0xf]
        %v367 = vld [vmem:[%s294 + $0x30] sm:$0xf]
        %v368 = vld [vmem:[%s294 + $0x34] sm:$0xf]
        %v369 = vld [vmem:[%s294 + $0x38] sm:$0xf]
        %v370 = vld [vmem:[%s294 + $0x3c] sm:$0xf]
        %v387 = vunpack.c.l.b16 %v355
        %v388 = vunpack.c.l.b16 %v356
        %v389 = vunpack.c.l.b16 %v357
        %v390 = vunpack.c.l.b16 %v358
        %v391 = vunpack.c.l.b16 %v359
        %v392 = vunpack.c.l.b16 %v360
        %v393 = vunpack.c.l.b16 %v361
        %v394 = vunpack.c.l.b16 %v362
        %v395 = vunpack.c.l.b16 %v363
        %v396 = vunpack.c.l.b16 %v364
        %v397 = vunpack.c.l.b16 %v365
        %v398 = vunpack.c.l.b16 %v366
        %v399 = vunpack.c.l.b16 %v367
        %v400 = vunpack.c.l.b16 %v368
        %v401 = vunpack.c.l.b16 %v369
        %v402 = vunpack.c.l.b16 %v370
        %v403 = vpack.c.b16 %v388, %v387
        %v404 = vpack.c.b16 %v390, %v389
        %v405 = vpack.c.b16 %v392, %v391
        %v406 = vpack.c.b16 %v394, %v393
        %v407 = vpack.c.b16 %v396, %v395
        %v408 = vpack.c.b16 %v398, %v397
        %v409 = vpack.c.b16 %v400, %v399
        %v410 = vpack.c.b16 %v402, %v401
        %419 = vmatprep.subr.bf16.mxu0 0
        %420 = vmatpush1.bf16.msra.mxu0 %v403
        %421 = vmatprep.subr.bf16.mxu0 0
        %422 = vmatpush1.bf16.msra.mxu0 %v404
        %423 = vmatprep.subr.bf16.mxu0 0
        %424 = vmatpush1.bf16.msra.mxu0 %v405
        %425 = vmatprep.subr.bf16.mxu0 0
        %426 = vmatpush1.bf16.msra.mxu0 %v406
        %427 = vmatprep.subr.bf16.mxu0 0
        %428 = vmatpush1.bf16.msra.mxu0 %v407
        %429 = vmatprep.subr.bf16.mxu0 0
        %430 = vmatpush1.bf16.msra.mxu0 %v408
        %431 = vmatprep.subr.bf16.mxu0 0
        %432 = vmatpush1.bf16.msra.mxu0 %v409
        %433 = vmatprep.subr.bf16.mxu0 0
        %434 = vmatpush1.bf16.msra.mxu0 %v410
        %435 = vmatprep.subr.bf16.mxu0 0
        %436 = vmatpush1.bf16.msra.mxu0 0
        %437 = vmatprep.subr.bf16.mxu0 0
        %438 = vmatpush1.bf16.msra.mxu0 0
        %439 = vmatprep.subr.bf16.mxu0 0
        %440 = vmatpush1.bf16.msra.mxu0 0
        %441 = vmatprep.subr.bf16.mxu0 0
        %442 = vmatpush1.bf16.msra.mxu0 0
        %443 = vmatprep.subr.bf16.mxu0 0
        %444 = vmatpush1.bf16.msra.mxu0 0
        %445 = vmatprep.subr.bf16.mxu0 0
        %446 = vmatpush1.bf16.msra.mxu0 0
        %447 = vmatprep.subr.bf16.mxu0 0
        %448 = vmatpush1.bf16.msra.mxu0 0
        %449 = vmatprep.subr.bf16.mxu0 0
        %450 = vmatpush1.bf16.msra.mxu0 0
        %451 = vmatprep.mubr.bf16.mxu0 0
        %452 = vmatmul.mubr.bf16.gmra.mrb[0].mxu0 %v354
        %v453 = vpop.f32.mrb[0].mxu0
        %v454 = vadd.f32 0.0, %v453
        %v455 = vpop.f32.mrb[0].mxu0
        %v456 = vpop.f32.mrb[0].mxu0
        %v457 = vpop.f32.mrb[0].mxu0
        %458 = vdwg.mxu0
        %v459 = vadd.f32 %v353, %v454
        %460 = vst [vmem:[#allocation2] sm:$0xff] %v459
        // Predicated region
        $region78: #{_lambda_.8} parent=68 // pred_check
          %p461 = pneg %p348
        $region79: #{_lambda_.8} parent=68 // pred_check_branch
          %463 = sbr.rel (%p461) target = $region81
        $region80: #{_lambda_.8} parent=68 // pred_region
          %v464 = vld [vmem:[#allocation2] sm:$0xff]
          %v465 = vld [vmem:[%s338] sm:$0x1]
          %v467 = vlaneseq
          %v468 = vshrl.u32 %v467, 7
          %v469 = vsub.s32 0, %v468
          %v470 = vrot.slane %v465, %v469
          %v472 = vadd.f32 %v464, %v470
          %473 = vst [vmem:[%s346] sm:$0xff] %v472
        $region81: #{_lambda_.8} parent=68 // pred_fallthru
          _
        %p474 = scmp.lt.s32.totalorder %s19, 0
        %s475 = scalar_select %p474, %s19, 0
        %p476 = scmp.lt.s32.totalorder %s20, 6
        %s477 = scalar_select %p476, %s20, 6
        %s478 = smul.addr %s475, 7
        %s479 = sadd.s32 %s477, %s478
        %s480 = smul.addr %s479, 8
        %s481 = scalar_lea.vmem %s3, %s480
        // Predicated region
        $region82: #{_lambda_.8} parent=68 // pred_check
          %p482 = pneg %p135
        $region83: #{_lambda_.8} parent=68 // pred_check_branch
          %484 = sbr.rel (%p482) target = $region85
        $region84: #{_lambda_.8} parent=68 // pred_region
          _
        $region85: #{_lambda_.8} parent=68 // pred_fallthru
          _
      $region69: #{_lambda_.8} parent=5 // pred_fallthru
        _
      %p485 = scmp.le.s32.totalorder 2, %s9
      // Predicated region
      $region86: #{_lambda_.8} parent=5 // pred_check
        %p486 = pneg %p485
      $region87: #{_lambda_.8} parent=5 // pred_check_branch
        %488 = sbr.rel (%p486) target = $region89
      $region88: #{_lambda_.8} parent=5 // pred_region
        %s489 = ssub.s32 %s9, 2
        // Predicated region
        $region90: #{_lambda_.8} parent=88 // pred_check
          %p490 = pneg %p141
        $region91: #{_lambda_.8} parent=88 // pred_check_branch
          %492 = sbr.rel (%p490) target = $region93
        $region92: #{_lambda_.8} parent=88 // pred_region
          %p493 = scmp.lt.s32.totalorder %s22, 0
          %s494 = scalar_select %p493, %s22, 0
          %p495 = scmp.lt.s32.totalorder %s23, 6
          %s496 = scalar_select %p495, %s23, 6
          %s497 = smul.addr %s494, 7
          %s498 = sadd.s32 %s496, %s497
          %s499 = smul.addr %s498, 8
          %s500 = scalar_lea.vmem %s3, %s499
        $region93: #{_lambda_.8} parent=88 // pred_fallthru
          _
      $region89: #{_lambda_.8} parent=5 // pred_fallthru
        _
    $region6: #{_lambda_.8} parent=1 // loop_footer
      %s13 = sadd.s32 1, %s9
    $region7: #{_lambda_.8} parent=1 // loop_footer_branch
      %8 = sbr.rel target = $region3
    $region8: #{_lambda_.8} parent=1 // loop_exit
      _

// kernel: _lambda_.7
$region0: #{_lambda_.7}
  #allocation0 [shape = 'u32[]', space=smem, size = 0x4, offset = 0x4, fixed_abs, tag = 'smem constant byte address 0x4 - core index']
  #allocation1 [shape = 'u32[144,128]{1,0:T(1,128)}', space=vmem, size = 0x12000, scoped, tag = 'internal scratch']
  #allocation2 [shape = 'f32[16,128]{1,0:T(8,128)}', space=vmem, size = 0x2000, scoped, tag = 'scratch operand']
  %s0 = inlined_call_operand.vmem [shape: bf16[16,128], index: 0, kind: input, shape index: {}]
  %s1 = inlined_call_operand.vmem [shape: bf16[128,128], index: 1, kind: input, shape index: {}]
  %s2 = inlined_call_operand.vmem [shape: f32[1,128], index: 2, kind: input, shape index: {}]
  %s3 = inlined_call_operand.vmem [shape: f32[16,128], index: 3, kind: output, shape index: {}]
  %s4 = sld [smem:[#allocation0]]
  $region30: #{_lambda_.7} parent=0
    _
  %s6 = ssub.s32 1, %s4
  %s7 = scalar_select 0, %s6, %s4
  // Predicated region
  $region2: #{_lambda_.7} parent=0 // pred_check
    _
  $region3: #{_lambda_.7} parent=0 // pred_check_branch
    %9 = sbr.rel (0) target = $region5
  $region4: #{_lambda_.7} parent=0 // pred_region
    _
  $region5: #{_lambda_.7} parent=0 // pred_fallthru
    _
  // Predicated region
  $region6: #{_lambda_.7} parent=0 // pred_check
    _
  $region7: #{_lambda_.7} parent=0 // pred_check_branch
    %11 = sbr.rel (0) target = $region9
  $region8: #{_lambda_.7} parent=0 // pred_region
    _
  $region9: #{_lambda_.7} parent=0 // pred_fallthru
    _
  // Predicated region
  $region10: #{_lambda_.7} parent=0 // pred_check
    _
  $region11: #{_lambda_.7} parent=0 // pred_check_branch
    %13 = sbr.rel (0) target = $region13
  $region12: #{_lambda_.7} parent=0 // pred_region
    _
  $region13: #{_lambda_.7} parent=0 // pred_fallthru
    _
  %p15 = scmp.eq.s32.totalorder 0, 0
  // Predicated region
  $region14: #{_lambda_.7} parent=0 // pred_check
    %p16 = pneg %p15
  $region15: #{_lambda_.7} parent=0 // pred_check_branch
    %18 = sbr.rel (%p16) target = $region17
  $region16: #{_lambda_.7} parent=0 // pred_region
    %19 = vst [vmem:[#allocation2] sm:$0xff] 0.0
    %20 = vst [vmem:[#allocation2 + $0x8] sm:$0xff] 0.0
  $region17: #{_lambda_.7} parent=0 // pred_fallthru
    _
  %v21 = vld [vmem:[#allocation2] sm:$0xff]
  %v22 = vld [vmem:[#allocation2 + $0x8] sm:$0xff]
  %v23 = vld [vmem:[%s0] sm:$0xf]
  %v24 = vld [vmem:[%s0 + $0x4] sm:$0xf]
  %v25 = vld [vmem:[%s1] sm:$0xf]
  %v26 = vld [vmem:[%s1 + $0x4] sm:$0xf]
  %v27 = vld [vmem:[%s1 + $0x8] sm:$0xf]
  %v28 = vld [vmem:[%s1 + $0xc] sm:$0xf]
  %v29 = vld [vmem:[%s1 + $0x10] sm:$0xf]
  %v30 = vld [vmem:[%s1 + $0x14] sm:$0xf]
  %v31 = vld [vmem:[%s1 + $0x18] sm:$0xf]
  %v32 = vld [vmem:[%s1 + $0x1c] sm:$0xf]
  %v33 = vld [vmem:[%s1 + $0x20] sm:$0xf]
  %v34 = vld [vmem:[%s1 + $0x24] sm:$0xf]
  %v35 = vld [vmem:[%s1 + $0x28] sm:$0xf]
  %v36 = vld [vmem:[%s1 + $0x2c] sm:$0xf]
  %v37 = vld [vmem:[%s1 + $0x30] sm:$0xf]
  %v38 = vld [vmem:[%s1 + $0x34] sm:$0xf]
  %v39 = vld [vmem:[%s1 + $0x38] sm:$0xf]
  %v40 = vld [vmem:[%s1 + $0x3c] sm:$0xf]
  %v43 = vunpack.c.l.b16 %v23
  %v44 = vunpack.c.l.b16 %v24
  %v45 = vpack.c.b16 %v44, %v43
  %v63 = vunpack.c.l.b16 %v25
  %v64 = vunpack.c.l.b16 %v26
  %v65 = vunpack.c.l.b16 %v27
  %v66 = vunpack.c.l.b16 %v28
  %v67 = vunpack.c.l.b16 %v29
  %v68 = vunpack.c.l.b16 %v30
  %v69 = vunpack.c.l.b16 %v31
  %v70 = vunpack.c.l.b16 %v32
  %v71 = vunpack.c.l.b16 %v33
  %v72 = vunpack.c.l.b16 %v34
  %v73 = vunpack.c.l.b16 %v35
  %v74 = vunpack.c.l.b16 %v36
  %v75 = vunpack.c.l.b16 %v37
  %v76 = vunpack.c.l.b16 %v38
  %v77 = vunpack.c.l.b16 %v39
  %v78 = vunpack.c.l.b16 %v40
  %v79 = vpack.c.b16 %v64, %v63
  %v80 = vpack.c.b16 %v66, %v65
  %v81 = vpack.c.b16 %v68, %v67
  %v82 = vpack.c.b16 %v70, %v69
  %v83 = vpack.c.b16 %v72, %v71
  %v84 = vpack.c.b16 %v74, %v73
  %v85 = vpack.c.b16 %v76, %v75
  %v86 = vpack.c.b16 %v78, %v77
  %95 = vmatprep.subr.bf16.mxu0 0
  %96 = vmatpush1.bf16.msra.mxu0 %v79
  %97 = vmatprep.subr.bf16.mxu0 0
  %98 = vmatpush1.bf16.msra.mxu0 %v80
  %99 = vmatprep.subr.bf16.mxu0 0
  %100 = vmatpush1.bf16.msra.mxu0 %v81
  %101 = vmatprep.subr.bf16.mxu0 0
  %102 = vmatpush1.bf16.msra.mxu0 %v82
  %103 = vmatprep.subr.bf16.mxu0 0
  %104 = vmatpush1.bf16.msra.mxu0 %v83
  %105 = vmatprep.subr.bf16.mxu0 0
  %106 = vmatpush1.bf16.msra.mxu0 %v84
  %107 = vmatprep.subr.bf16.mxu0 0
  %108 = vmatpush1.bf16.msra.mxu0 %v85
  %109 = vmatprep.subr.bf16.mxu0 0
  %110 = vmatpush1.bf16.msra.mxu0 %v86
  %111 = vmatprep.subr.bf16.mxu0 0
  %112 = vmatpush1.bf16.msra.mxu0 0
  %113 = vmatprep.subr.bf16.mxu0 0
  %114 = vmatpush1.bf16.msra.mxu0 0
  %115 = vmatprep.subr.bf16.mxu0 0
  %116 = vmatpush1.bf16.msra.mxu0 0
  %117 = vmatprep.subr.bf16.mxu0 0
  %118 = vmatpush1.bf16.msra.mxu0 0
  %119 = vmatprep.subr.bf16.mxu0 0
  %120 = vmatpush1.bf16.msra.mxu0 0
  %121 = vmatprep.subr.bf16.mxu0 0
  %122 = vmatpush1.bf16.msra.mxu0 0
  %123 = vmatprep.subr.bf16.mxu0 0
  %124 = vmatpush1.bf16.msra.mxu0 0
  %125 = vmatprep.subr.bf16.mxu0 0
  %126 = vmatpush1.bf16.msra.mxu0 0
  %127 = vmatprep.mubr.bf16.mxu0 0
  %128 = vmatmul.mubr.bf16.gmra.mrb[0].mxu0 %v45
  %v129 = vpop.f32.mrb[0].mxu0
  %v130 = vadd.f32 0.0, %v129
  %v131 = vpop.f32.mrb[0].mxu0
  %v132 = vpop.f32.mrb[0].mxu0
  %v133 = vadd.f32 0.0, %v132
  %v134 = vpop.f32.mrb[0].mxu0
  %135 = vdwg.mxu0
  %v136 = vadd.f32 %v21, %v130
  %v137 = vadd.f32 %v22, %v133
  %138 = vst [vmem:[#allocation2] sm:$0xff] %v136
  %139 = vst [vmem:[#allocation2 + $0x8] sm:$0xff] %v137
  // Predicated region
  $region18: #{_lambda_.7} parent=0 // pred_check
    %p140 = pneg %p15
  $region19: #{_lambda_.7} parent=0 // pred_check_branch
    %142 = sbr.rel (%p140) target = $region21
  $region20: #{_lambda_.7} parent=0 // pred_region
    %v143 = vld [vmem:[#allocation2] sm:$0xff]
    %v144 = vld [vmem:[#allocation2 + $0x8] sm:$0xff]
    %v145 = vld [vmem:[%s2] sm:$0x1]
    %v147 = vlaneseq
    %v148 = vshrl.u32 %v147, 7
    %v149 = vsub.s32 0, %v148
    %v150 = vrot.slane %v145, %v149
    %v152 = vadd.f32 %v143, %v150
    %v153 = vadd.f32 %v144, %v150
    %154 = vst [vmem:[%s3] sm:$0xff] %v152
    %155 = vst [vmem:[%s3 + $0x8] sm:$0xff] %v153
  $region21: #{_lambda_.7} parent=0 // pred_fallthru
    _
  // Predicated region
  $region22: #{_lambda_.7} parent=0 // pred_check
    _
  $region23: #{_lambda_.7} parent=0 // pred_check_branch
    %157 = sbr.rel (0) target = $region25
  $region24: #{_lambda_.7} parent=0 // pred_region
    _
  $region25: #{_lambda_.7} parent=0 // pred_fallthru
    _
  // Predicated region
  $region26: #{_lambda_.7} parent=0 // pred_check
    _
  $region27: #{_lambda_.7} parent=0 // pred_check_branch
    %159 = sbr.rel (0) target = $region29
  $region28: #{_lambda_.7} parent=0 // pred_region
    _
  $region29: #{_lambda_.7} parent=0 // pred_fallthru
    _

// kernel: _lambda_.10
$region0: #{_lambda_.10}
  #allocation0 [shape = 'u32[]', space=smem, size = 0x4, offset = 0x4, fixed_abs, tag = 'smem constant byte address 0x4 - core index']
  #allocation1 [shape = 'u32[144,128]{1,0:T(1,128)}', space=vmem, size = 0x12000, scoped, tag = 'internal scratch']
  #allocation2 [shape = 'bf16[16,64]{1,0:T(16,128)(2,1)}', space=vmem, size = 0x1000, scoped, tag = 'scratch operand']
  #allocation3 [shape = 'f32[16,64]{1,0:T(8,128)}', space=vmem, size = 0x2000, scoped, tag = 'scratch operand']
  %s0 = inlined_call_operand.vmem [shape: bf16[2,8,64], index: 0, kind: input, shape index: {}]
  %s1 = inlined_call_operand.vmem [shape: f32[2,1,64], index: 1, kind: input, shape index: {}]
  %s2 = inlined_call_operand.vmem [shape: f32[2,1,64], index: 2, kind: input, shape index: {}]
  %s3 = inlined_call_operand.vmem [shape: f32[2,1,64], index: 3, kind: input, shape index: {}]
  %s4 = inlined_call_operand.vmem [shape: bf16[64,256], index: 4, kind: input, shape index: {}]
  %s5 = inlined_call_operand.vmem [shape: bf16[64,256], index: 5, kind: input, shape index: {}]
  %s6 = inlined_call_operand.vmem [shape: bf16[256,64], index: 6, kind: input, shape index: {}]
  %s7 = inlined_call_operand.vmem [shape: bf16[2,8,64], index: 7, kind: output, shape index: {}]
  %s8 = sld [smem:[#allocation0]]
  $region46: #{_lambda_.10} parent=0
    _
  %s10 = ssub.s32 1, %s8
  %s11 = scalar_select 0, %s10, %s8
  // Predicated region
  $region2: #{_lambda_.10} parent=0 // pred_check
    _
  $region3: #{_lambda_.10} parent=0 // pred_check_branch
    %13 = sbr.rel (0) target = $region5
  $region4: #{_lambda_.10} parent=0 // pred_region
    _
  $region5: #{_lambda_.10} parent=0 // pred_fallthru
    _
  // Predicated region
  $region6: #{_lambda_.10} parent=0 // pred_check
    _
  $region7: #{_lambda_.10} parent=0 // pred_check_branch
    %15 = sbr.rel (0) target = $region9
  $region8: #{_lambda_.10} parent=0 // pred_region
    _
  $region9: #{_lambda_.10} parent=0 // pred_fallthru
    _
  // Predicated region
  $region10: #{_lambda_.10} parent=0 // pred_check
    _
  $region11: #{_lambda_.10} parent=0 // pred_check_branch
    %17 = sbr.rel (0) target = $region13
  $region12: #{_lambda_.10} parent=0 // pred_region
    _
  $region13: #{_lambda_.10} parent=0 // pred_fallthru
    _
  // Predicated region
  $region14: #{_lambda_.10} parent=0 // pred_check
    _
  $region15: #{_lambda_.10} parent=0 // pred_check_branch
    %19 = sbr.rel (0) target = $region17
  $region16: #{_lambda_.10} parent=0 // pred_region
    _
  $region17: #{_lambda_.10} parent=0 // pred_fallthru
    _
  // Predicated region
  $region18: #{_lambda_.10} parent=0 // pred_check
    _
  $region19: #{_lambda_.10} parent=0 // pred_check_branch
    %21 = sbr.rel (0) target = $region21
  $region20: #{_lambda_.10} parent=0 // pred_region
    _
  $region21: #{_lambda_.10} parent=0 // pred_fallthru
    _
  // Predicated region
  $region22: #{_lambda_.10} parent=0 // pred_check
    _
  $region23: #{_lambda_.10} parent=0 // pred_check_branch
    %23 = sbr.rel (0) target = $region25
  $region24: #{_lambda_.10} parent=0 // pred_region
    _
  $region25: #{_lambda_.10} parent=0 // pred_fallthru
    _
  // Predicated region
  $region26: #{_lambda_.10} parent=0 // pred_check
    _
  $region27: #{_lambda_.10} parent=0 // pred_check_branch
    %25 = sbr.rel (0) target = $region29
  $region28: #{_lambda_.10} parent=0 // pred_region
    _
  $region29: #{_lambda_.10} parent=0 // pred_fallthru
    _
  %p27 = scmp.eq.s32.totalorder 0, 0
  // Predicated region
  $region30: #{_lambda_.10} parent=0 // pred_check
    %p28 = pneg %p27
  $region31: #{_lambda_.10} parent=0 // pred_check_branch
    %30 = sbr.rel (%p28) target = $region33
  $region32: #{_lambda_.10} parent=0 // pred_region
    %v31 = vld [vmem:[%s0] sm:$0xf]
    %v32 = vld [vmem:[%s0 + $0x4] sm:$0xf]
    %v33 = vunpack.c.l.bf16 %v31
    %v34 = vunpack.c.l.bf16 %v32
    %v35 = vmul.f32 %v33, %v33
    %v36 = vmul.f32 %v34, %v34
    %vm37 = vcmask 523264
    %v38 = vsel %vm37, %v35, 0.0
    %39 = vadd.xlane.f32.xlu0 %v38
    %v40 = vpop.xlane.xlu0 %39
    %v41 = vsel %vm37, %v36, 0.0
    %42 = vadd.xlane.f32.xlu0 %v41
    %v43 = vpop.xlane.xlu0 %42
    %v44 = vrcp.pop 64.0
    %v45 = vmul.f32 %v40, %v44
    %v46 = vmul.f32 %v43, %v44
    %v47 = vadd.f32 %v45, 1e-06
    %v48 = vadd.f32 %v46, 1e-06
    %v49 = vrsqrt.pop %v47
    %v50 = vrsqrt.pop %v48
    %v51 = vmul.f32 %v33, %v49
    %v52 = vmul.f32 %v34, %v50
    %v53 = vld [vmem:[%s2] sm:$0x1]
    %v54 = vld [vmem:[%s2 + $0x1] sm:$0x1]
    %v55 = vadd.f32 %v53, 1.0
    %v56 = vadd.f32 %v54, 1.0
    %v59 = vlaneseq
    %v60 = vshrl.u32 %v59, 7
    %v61 = vsub.s32 0, %v60
    %v62 = vrot.slane %v55, %v61
    %v63 = vlaneseq
    %v64 = vshrl.u32 %v63, 7
    %v65 = vsub.s32 0, %v64
    %v66 = vrot.slane %v56, %v65
    %v69 = vmul.f32 %v51, %v62
    %v70 = vmul.f32 %v52, %v66
    %v71 = vld [vmem:[%s1] sm:$0x1]
    %v72 = vld [vmem:[%s1 + $0x1] sm:$0x1]
    %v75 = vlaneseq
    %v76 = vshrl.u32 %v75, 7
    %v77 = vsub.s32 0, %v76
    %v78 = vrot.slane %v71, %v77
    %v79 = vlaneseq
    %v80 = vshrl.u32 %v79, 7
    %v81 = vsub.s32 0, %v80
    %v82 = vrot.slane %v72, %v81
    %v85 = vadd.f32 %v69, %v78
    %v86 = vadd.f32 %v70, %v82
    %v87 = vpack.c.bf16 %v86, %v85
    %88 = vst.msk [vmem:[#allocation2] sm:$0xff] %vm37, %v87
    %89 = vst.msk [vmem:[#allocation3] sm:$0xff] %vm37, 0.0
    %90 = vst.msk [vmem:[#allocation3 + $0x8] sm:$0xff] %vm37, 0.0
  $region33: #{_lambda_.10} parent=0 // pred_fallthru
    _
  %v91 = vld [vmem:[#allocation2] sm:$0xff]
  %v92 = vld [vmem:[%s4] sm:$0xff]
  %v93 = vld [vmem:[%s4 + $0x8] sm:$0xff]
  %v94 = vld [vmem:[%s4 + $0x10] sm:$0xff]
  %v95 = vld [vmem:[%s4 + $0x18] sm:$0xff]
  %v96 = vld [vmem:[%s4 + $0x20] sm:$0xff]
  %v97 = vld [vmem:[%s4 + $0x28] sm:$0xff]
  %v98 = vld [vmem:[%s4 + $0x30] sm:$0xff]
  %v99 = vld [vmem:[%s4 + $0x38] sm:$0xff]
  %v108 = vunpack.c.l.b16 %v92
  %v109 = vunpack.c.h.b16 %v92
  %v110 = vunpack.c.l.b16 %v93
  %v111 = vunpack.c.h.b16 %v93
  %v112 = vunpack.c.l.b16 %v94
  %v113 = vunpack.c.h.b16 %v94
  %v114 = vunpack.c.l.b16 %v95
  %v115 = vunpack.c.h.b16 %v95
  %v116 = vunpack.c.l.b16 %v96
  %v117 = vunpack.c.h.b16 %v96
  %v118 = vunpack.c.l.b16 %v97
  %v119 = vunpack.c.h.b16 %v97
  %v120 = vunpack.c.l.b16 %v98
  %v121 = vunpack.c.h.b16 %v98
  %v122 = vunpack.c.l.b16 %v99
  %v123 = vunpack.c.h.b16 %v99
  %v124 = vpack.c.b16 %v110, %v108
  %v125 = vpack.c.b16 %v111, %v109
  %v126 = vpack.c.b16 %v114, %v112
  %v127 = vpack.c.b16 %v115, %v113
  %v128 = vpack.c.b16 %v118, %v116
  %v129 = vpack.c.b16 %v119, %v117
  %v130 = vpack.c.b16 %v122, %v120
  %v131 = vpack.c.b16 %v123, %v121
  %vm140 = vcmask 523264
  %v142 = vsel %vm140, %v91, 0
  %144 = vmatprep.subr.bf16.mxu0 %v125
  %145 = vmatpush1.bf16.msra.mxu0 %v124
  %146 = vmatprep.subr.bf16.mxu0 %v127
  %147 = vmatpush1.bf16.msra.mxu0 %v126
  %148 = vmatprep.subr.bf16.mxu0 %v129
  %149 = vmatpush1.bf16.msra.mxu0 %v128
  %150 = vmatprep.subr.bf16.mxu0 %v131
  %151 = vmatpush1.bf16.msra.mxu0 %v130
  %152 = vmatprep.subr.bf16.mxu0 0
  %153 = vmatpush1.bf16.msra.mxu0 0
  %154 = vmatprep.subr.bf16.mxu0 0
  %155 = vmatpush1.bf16.msra.mxu0 0
  %156 = vmatprep.subr.bf16.mxu0 0
  %157 = vmatpush1.bf16.msra.mxu0 0
  %158 = vmatprep.subr.bf16.mxu0 0
  %159 = vmatpush1.bf16.msra.mxu0 0
  %160 = vmatprep.subr.bf16.mxu0 0
  %161 = vmatpush1.bf16.msra.mxu0 0
  %162 = vmatprep.subr.bf16.mxu0 0
  %163 = vmatpush1.bf16.msra.mxu0 0
  %164 = vmatprep.subr.bf16.mxu0 0
  %165 = vmatpush1.bf16.msra.mxu0 0
  %166 = vmatprep.subr.bf16.mxu0 0
  %167 = vmatpush1.bf16.msra.mxu0 0
  %168 = vmatprep.subr.bf16.mxu0 0
  %169 = vmatpush1.bf16.msra.mxu0 0
  %170 = vmatprep.subr.bf16.mxu0 0
  %171 = vmatpush1.bf16.msra.mxu0 0
  %172 = vmatprep.subr.bf16.mxu0 0
  %173 = vmatpush1.bf16.msra.mxu0 0
  %174 = vmatprep.subr.bf16.mxu0 0
  %175 = vmatpush1.bf16.msra.mxu0 0
  %176 = vmatprep.mubr.bf16.mxu0 0
  %177 = vmatmul.mubr.bf16.gmra.mrb[0].mxu0 %v142
  %v178 = vpop.f32.mrb[0].mxu0
  %v179 = vadd.f32 0.0, %v178
  %v180 = vpop.f32.mrb[0].mxu0
  %v181 = vadd.f32 0.0, %v180
  %v182 = vpop.f32.mrb[0].mxu0
  %v183 = vadd.f32 0.0, %v182
  %v184 = vpop.f32.mrb[0].mxu0
  %v185 = vadd.f32 0.0, %v184
  %186 = vdwg.mxu0
  %v187 = vld [vmem:[%s5] sm:$0xff]
  %v188 = vld [vmem:[%s5 + $0x8] sm:$0xff]
  %v189 = vld [vmem:[%s5 + $0x10] sm:$0xff]
  %v190 = vld [vmem:[%s5 + $0x18] sm:$0xff]
  %v191 = vld [vmem:[%s5 + $0x20] sm:$0xff]
  %v192 = vld [vmem:[%s5 + $0x28] sm:$0xff]
  %v193 = vld [vmem:[%s5 + $0x30] sm:$0xff]
  %v194 = vld [vmem:[%s5 + $0x38] sm:$0xff]
  %v203 = vunpack.c.l.b16 %v187
  %v204 = vunpack.c.h.b16 %v187
  %v205 = vunpack.c.l.b16 %v188
  %v206 = vunpack.c.h.b16 %v188
  %v207 = vunpack.c.l.b16 %v189
  %v208 = vunpack.c.h.b16 %v189
  %v209 = vunpack.c.l.b16 %v190
  %v210 = vunpack.c.h.b16 %v190
  %v211 = vunpack.c.l.b16 %v191
  %v212 = vunpack.c.h.b16 %v191
  %v213 = vunpack.c.l.b16 %v192
  %v214 = vunpack.c.h.b16 %v192
  %v215 = vunpack.c.l.b16 %v193
  %v216 = vunpack.c.h.b16 %v193
  %v217 = vunpack.c.l.b16 %v194
  %v218 = vunpack.c.h.b16 %v194
  %v219 = vpack.c.b16 %v205, %v203
  %v220 = vpack.c.b16 %v206, %v204
  %v221 = vpack.c.b16 %v209, %v207
  %v222 = vpack.c.b16 %v210, %v208
  %v223 = vpack.c.b16 %v213, %v211
  %v224 = vpack.c.b16 %v214, %v212
  %v225 = vpack.c.b16 %v217, %v215
  %v226 = vpack.c.b16 %v218, %v216
  %235 = vmatprep.subr.bf16.mxu0 %v220
  %236 = vmatpush1.bf16.msra.mxu0 %v219
  %237 = vmatprep.subr.bf16.mxu0 %v222
  %238 = vmatpush1.bf16.msra.mxu0 %v221
  %239 = vmatprep.subr.bf16.mxu0 %v224
  %240 = vmatpush1.bf16.msra.mxu0 %v223
  %241 = vmatprep.subr.bf16.mxu0 %v226
  %242 = vmatpush1.bf16.msra.mxu0 %v225
  %243 = vmatprep.subr.bf16.mxu0 0
  %244 = vmatpush1.bf16.msra.mxu0 0
  %245 = vmatprep.subr.bf16.mxu0 0
  %246 = vmatpush1.bf16.msra.mxu0 0
  %247 = vmatprep.subr.bf16.mxu0 0
  %248 = vmatpush1.bf16.msra.mxu0 0
  %249 = vmatprep.subr.bf16.mxu0 0
  %250 = vmatpush1.bf16.msra.mxu0 0
  %251 = vmatprep.subr.bf16.mxu0 0
  %252 = vmatpush1.bf16.msra.mxu0 0
  %253 = vmatprep.subr.bf16.mxu0 0
  %254 = vmatpush1.bf16.msra.mxu0 0
  %255 = vmatprep.subr.bf16.mxu0 0
  %256 = vmatpush1.bf16.msra.mxu0 0
  %257 = vmatprep.subr.bf16.mxu0 0
  %258 = vmatpush1.bf16.msra.mxu0 0
  %259 = vmatprep.subr.bf16.mxu0 0
  %260 = vmatpush1.bf16.msra.mxu0 0
  %261 = vmatprep.subr.bf16.mxu0 0
  %262 = vmatpush1.bf16.msra.mxu0 0
  %263 = vmatprep.subr.bf16.mxu0 0
  %264 = vmatpush1.bf16.msra.mxu0 0
  %265 = vmatprep.subr.bf16.mxu0 0
  %266 = vmatpush1.bf16.msra.mxu0 0
  %267 = vmatprep.mubr.bf16.mxu0 0
  %268 = vmatmul.mubr.bf16.gmra.mrb[0].mxu0 %v142
  %v269 = vpop.f32.mrb[0].mxu0
  %v270 = vadd.f32 0.0, %v269
  %v271 = vpop.f32.mrb[0].mxu0
  %v272 = vadd.f32 0.0, %v271
  %v273 = vpop.f32.mrb[0].mxu0
  %v274 = vadd.f32 0.0, %v273
  %v275 = vpop.f32.mrb[0].mxu0
  %v276 = vadd.f32 0.0, %v275
  %277 = vdwg.mxu0
  %v278 = vxor.u32 %v179, 2147483648
  %v279 = vxor.u32 %v181, 2147483648
  %v280 = vxor.u32 %v183, 2147483648
  %v281 = vxor.u32 %v185, 2147483648
  %v282 = vmul.f32 %v278, 1.442695
  %v283 = vpow.pop %v282
  %v284 = vmul.f32 %v279, 1.442695
  %v285 = vpow.pop %v284
  %v286 = vmul.f32 %v280, 1.442695
  %v287 = vpow.pop %v286
  %v288 = vmul.f32 %v281, 1.442695
  %v289 = vpow.pop %v288
  %v290 = vadd.f32 %v283, 1.0
  %v291 = vadd.f32 %v285, 1.0
  %v292 = vadd.f32 %v287, 1.0
  %v293 = vadd.f32 %v289, 1.0
  %v294 = vrcp.pop %v290
  %v295 = vmul.f32 1.0, %v294
  %v296 = vrcp.pop %v291
  %v297 = vmul.f32 1.0, %v296
  %v298 = vrcp.pop %v292
  %v299 = vmul.f32 1.0, %v298
  %v300 = vrcp.pop %v293
  %v301 = vmul.f32 1.0, %v300
  %v302 = vmul.f32 %v179, %v295
  %v303 = vmul.f32 %v181, %v297
  %v304 = vmul.f32 %v183, %v299
  %v305 = vmul.f32 %v185, %v301
  %v306 = vmul.f32 %v302, %v270
  %v307 = vmul.f32 %v303, %v272
  %v308 = vmul.f32 %v304, %v274
  %v309 = vmul.f32 %v305, %v276
  %v310 = vld [vmem:[#allocation3] sm:$0xff]
  %v311 = vld [vmem:[#allocation3 + $0x8] sm:$0xff]
  %v312 = vpack.c.bf16 %v308, %v306
  %v313 = vpack.c.bf16 %v309, %v307
  %v314 = vld [vmem:[%s6] sm:$0xf]
  %v315 = vld [vmem:[%s6 + $0x4] sm:$0xf]
  %v316 = vld [vmem:[%s6 + $0x8] sm:$0xf]
  %v317 = vld [vmem:[%s6 + $0xc] sm:$0xf]
  %v318 = vld [vmem:[%s6 + $0x10] sm:$0xf]
  %v319 = vld [vmem:[%s6 + $0x14] sm:$0xf]
  %v320 = vld [vmem:[%s6 + $0x18] sm:$0xf]
  %v321 = vld [vmem:[%s6 + $0x1c] sm:$0xf]
  %v322 = vld [vmem:[%s6 + $0x20] sm:$0xf]
  %v323 = vld [vmem:[%s6 + $0x24] sm:$0xf]
  %v324 = vld [vmem:[%s6 + $0x28] sm:$0xf]
  %v325 = vld [vmem:[%s6 + $0x2c] sm:$0xf]
  %v326 = vld [vmem:[%s6 + $0x30] sm:$0xf]
  %v327 = vld [vmem:[%s6 + $0x34] sm:$0xf]
  %v328 = vld [vmem:[%s6 + $0x38] sm:$0xf]
  %v329 = vld [vmem:[%s6 + $0x3c] sm:$0xf]
  %v330 = vld [vmem:[%s6 + $0x40] sm:$0xf]
  %v331 = vld [vmem:[%s6 + $0x44] sm:$0xf]
  %v332 = vld [vmem:[%s6 + $0x48] sm:$0xf]
  %v333 = vld [vmem:[%s6 + $0x4c] sm:$0xf]
  %v334 = vld [vmem:[%s6 + $0x50] sm:$0xf]
  %v335 = vld [vmem:[%s6 + $0x54] sm:$0xf]
  %v336 = vld [vmem:[%s6 + $0x58] sm:$0xf]
  %v337 = vld [vmem:[%s6 + $0x5c] sm:$0xf]
  %v338 = vld [vmem:[%s6 + $0x60] sm:$0xf]
  %v339 = vld [vmem:[%s6 + $0x64] sm:$0xf]
  %v340 = vld [vmem:[%s6 + $0x68] sm:$0xf]
  %v341 = vld [vmem:[%s6 + $0x6c] sm:$0xf]
  %v342 = vld [vmem:[%s6 + $0x70] sm:$0xf]
  %v343 = vld [vmem:[%s6 + $0x74] sm:$0xf]
  %v344 = vld [vmem:[%s6 + $0x78] sm:$0xf]
  %v345 = vld [vmem:[%s6 + $0x7c] sm:$0xf]
  %v378 = vunpack.c.l.b16 %v314
  %v379 = vunpack.c.l.b16 %v315
  %v380 = vunpack.c.l.b16 %v316
  %v381 = vunpack.c.l.b16 %v317
  %v382 = vunpack.c.l.b16 %v318
  %v383 = vunpack.c.l.b16 %v319
  %v384 = vunpack.c.l.b16 %v320
  %v385 = vunpack.c.l.b16 %v321
  %v386 = vunpack.c.l.b16 %v322
  %v387 = vunpack.c.l.b16 %v323
  %v388 = vunpack.c.l.b16 %v324
  %v389 = vunpack.c.l.b16 %v325
  %v390 = vunpack.c.l.b16 %v326
  %v391 = vunpack.c.l.b16 %v327
  %v392 = vunpack.c.l.b16 %v328
  %v393 = vunpack.c.l.b16 %v329
  %v394 = vunpack.c.l.b16 %v330
  %v395 = vunpack.c.l.b16 %v331
  %v396 = vunpack.c.l.b16 %v332
  %v397 = vunpack.c.l.b16 %v333
  %v398 = vunpack.c.l.b16 %v334
  %v399 = vunpack.c.l.b16 %v335
  %v400 = vunpack.c.l.b16 %v336
  %v401 = vunpack.c.l.b16 %v337
  %v402 = vunpack.c.l.b16 %v338
  %v403 = vunpack.c.l.b16 %v339
  %v404 = vunpack.c.l.b16 %v340
  %v405 = vunpack.c.l.b16 %v341
  %v406 = vunpack.c.l.b16 %v342
  %v407 = vunpack.c.l.b16 %v343
  %v408 = vunpack.c.l.b16 %v344
  %v409 = vunpack.c.l.b16 %v345
  %v410 = vpack.c.b16 %v379, %v378
  %v411 = vpack.c.b16 %v381, %v380
  %v412 = vpack.c.b16 %v383, %v382
  %v413 = vpack.c.b16 %v385, %v384
  %v414 = vpack.c.b16 %v387, %v386
  %v415 = vpack.c.b16 %v389, %v388
  %v416 = vpack.c.b16 %v391, %v390
  %v417 = vpack.c.b16 %v393, %v392
  %v418 = vpack.c.b16 %v395, %v394
  %v419 = vpack.c.b16 %v397, %v396
  %v420 = vpack.c.b16 %v399, %v398
  %v421 = vpack.c.b16 %v401, %v400
  %v422 = vpack.c.b16 %v403, %v402
  %v423 = vpack.c.b16 %v405, %v404
  %v424 = vpack.c.b16 %v407, %v406
  %v425 = vpack.c.b16 %v409, %v408
  %442 = vmatprep.subr.bf16.mxu0 0
  %443 = vmatpush1.bf16.msra.mxu0 %v410
  %444 = vmatprep.subr.bf16.mxu0 0
  %445 = vmatpush1.bf16.msra.mxu0 %v411
  %446 = vmatprep.subr.bf16.mxu0 0
  %447 = vmatpush1.bf16.msra.mxu0 %v412
  %448 = vmatprep.subr.bf16.mxu0 0
  %449 = vmatpush1.bf16.msra.mxu0 %v413
  %450 = vmatprep.subr.bf16.mxu0 0
  %451 = vmatpush1.bf16.msra.mxu0 %v414
  %452 = vmatprep.subr.bf16.mxu0 0
  %453 = vmatpush1.bf16.msra.mxu0 %v415
  %454 = vmatprep.subr.bf16.mxu0 0
  %455 = vmatpush1.bf16.msra.mxu0 %v416
  %456 = vmatprep.subr.bf16.mxu0 0
  %457 = vmatpush1.bf16.msra.mxu0 %v417
  %458 = vmatprep.subr.bf16.mxu0 0
  %459 = vmatpush1.bf16.msra.mxu0 %v418
  %460 = vmatprep.subr.bf16.mxu0 0
  %461 = vmatpush1.bf16.msra.mxu0 %v419
  %462 = vmatprep.subr.bf16.mxu0 0
  %463 = vmatpush1.bf16.msra.mxu0 %v420
  %464 = vmatprep.subr.bf16.mxu0 0
  %465 = vmatpush1.bf16.msra.mxu0 %v421
  %466 = vmatprep.subr.bf16.mxu0 0
  %467 = vmatpush1.bf16.msra.mxu0 %v422
  %468 = vmatprep.subr.bf16.mxu0 0
  %469 = vmatpush1.bf16.msra.mxu0 %v423
  %470 = vmatprep.subr.bf16.mxu0 0
  %471 = vmatpush1.bf16.msra.mxu0 %v424
  %472 = vmatprep.subr.bf16.mxu0 0
  %473 = vmatpush1.bf16.msra.mxu0 %v425
  %474 = vmatprep.mubr.bf16.mxu0 %v313
  %475 = vmatmul.mubr.bf16.gmra.mrb[0].mxu0 %v312
  %v476 = vpop.f32.mrb[0].mxu0
  %v477 = vadd.f32 0.0, %v476
  %v478 = vpop.f32.mrb[0].mxu0
  %v479 = vpop.f32.mrb[0].mxu0
  %v480 = vadd.f32 0.0, %v479
  %v481 = vpop.f32.mrb[0].mxu0
  %482 = vdwg.mxu0
  %v483 = vadd.f32 %v310, %v477
  %v484 = vadd.f32 %v311, %v480
  %485 = vst.msk [vmem:[#allocation3] sm:$0xff] %vm140, %v483
  %486 = vst.msk [vmem:[#allocation3 + $0x8] sm:$0xff] %vm140, %v484
  // Predicated region
  $region34: #{_lambda_.10} parent=0 // pred_check
    %p487 = pneg %p27
  $region35: #{_lambda_.10} parent=0 // pred_check_branch
    %489 = sbr.rel (%p487) target = $region37
  $region36: #{_lambda_.10} parent=0 // pred_region
    %v490 = vld [vmem:[%s0] sm:$0xf]
    %v491 = vld [vmem:[%s0 + $0x4] sm:$0xf]
    %v492 = vunpack.c.l.bf16 %v490
    %v493 = vunpack.c.l.bf16 %v491
    %v494 = vld [vmem:[%s3] sm:$0x1]
    %v495 = vld [vmem:[%s3 + $0x1] sm:$0x1]
    %v496 = vld [vmem:[#allocation3] sm:$0xff]
    %v497 = vld [vmem:[#allocation3 + $0x8] sm:$0xff]
    %v500 = vlaneseq
    %v501 = vshrl.u32 %v500, 7
    %v502 = vsub.s32 0, %v501
    %v503 = vrot.slane %v494, %v502
    %v504 = vlaneseq
    %v505 = vshrl.u32 %v504, 7
    %v506 = vsub.s32 0, %v505
    %v507 = vrot.slane %v495, %v506
    %v510 = vmul.f32 %v503, %v496
    %v511 = vmul.f32 %v507, %v497
    %v512 = vadd.f32 %v492, %v510
    %v513 = vadd.f32 %v493, %v511
    %v514 = vpack.c.bf16 %v512, %v512
    %v515 = vpack.c.bf16 %v513, %v513
    %vm516 = vcmask 519168
    %517 = vst.msk [vmem:[%s7] sm:$0xf] %vm516, %v514
    %518 = vst.msk [vmem:[%s7 + $0x4] sm:$0xf] %vm516, %v515
  $region37: #{_lambda_.10} parent=0 // pred_fallthru
    _
  // Predicated region
  $region38: #{_lambda_.10} parent=0 // pred_check
    _
  $region39: #{_lambda_.10} parent=0 // pred_check_branch
    %520 = sbr.rel (0) target = $region41
  $region40: #{_lambda_.10} parent=0 // pred_region
    _
  $region41: #{_lambda_.10} parent=0 // pred_fallthru
    _
  // Predicated region
  $region42: #{_lambda_.10} parent=0 // pred_check
    _
  $region43: #{_lambda_.10} parent=0 // pred_check_branch
    %522 = sbr.rel (0) target = $region45
  $region44: #{_lambda_.10} parent=0 // pred_region
    _
  $region45: #{_lambda_.10} parent=0 // pred_fallthru
    _

// kernel: _lambda_.9
$region0: #{_lambda_.9}
  #allocation0 [shape = 'u32[]', space=smem, size = 0x4, offset = 0x4, fixed_abs, tag = 'smem constant byte address 0x4 - core index']
  #allocation1 [shape = 'u32[144,128]{1,0:T(1,128)}', space=vmem, size = 0x12000, scoped, tag = 'internal scratch']
  %s0 = inlined_call_operand.vmem [shape: bf16[2,8,64], index: 0, kind: input, shape index: {}]
  %s1 = inlined_call_operand.vmem [shape: f32[2,1,64], index: 1, kind: input, shape index: {}]
  %s2 = inlined_call_operand.vmem [shape: f32[2,1,64], index: 2, kind: input, shape index: {}]
  %s3 = inlined_call_operand.vmem [shape: f32[2,1,64], index: 3, kind: input, shape index: {}]
  %s4 = inlined_call_operand.vmem [shape: bf16[64,192], index: 4, kind: input, shape index: {}]
  %s5 = inlined_call_operand.vmem [shape: f32[1,192], index: 5, kind: input, shape index: {}]
  %s6 = inlined_call_operand.vmem [shape: f32[1,16], index: 6, kind: input, shape index: {}, may-alias: {6,7}]
  %s7 = inlined_call_operand.vmem [shape: f32[1,16], index: 7, kind: input, shape index: {}, may-alias: {6,7}]
  %s8 = inlined_call_operand.vmem [shape: bf16[64,64], index: 8, kind: input, shape index: {}]
  %s9 = inlined_call_operand.vmem [shape: f32[1,64], index: 9, kind: input, shape index: {}]
  %s10 = inlined_call_operand.vmem [shape: bf16[2,8,64], index: 10, kind: output, shape index: {}]
  %s11 = sld [smem:[#allocation0]]
  $region50: #{_lambda_.9} parent=0
    _
  %s13 = ssub.s32 1, %s11
  %s14 = scalar_select 0, %s13, %s11
  // Predicated region
  $region2: #{_lambda_.9} parent=0 // pred_check
    _
  $region3: #{_lambda_.9} parent=0 // pred_check_branch
    %16 = sbr.rel (0) target = $region5
  $region4: #{_lambda_.9} parent=0 // pred_region
    _
  $region5: #{_lambda_.9} parent=0 // pred_fallthru
    _
  // Predicated region
  $region6: #{_lambda_.9} parent=0 // pred_check
    _
  $region7: #{_lambda_.9} parent=0 // pred_check_branch
    %18 = sbr.rel (0) target = $region9
  $region8: #{_lambda_.9} parent=0 // pred_region
    _
  $region9: #{_lambda_.9} parent=0 // pred_fallthru
    _
  // Predicated region
  $region10: #{_lambda_.9} parent=0 // pred_check
    _
  $region11: #{_lambda_.9} parent=0 // pred_check_branch
    %20 = sbr.rel (0) target = $region13
  $region12: #{_lambda_.9} parent=0 // pred_region
    _
  $region13: #{_lambda_.9} parent=0 // pred_fallthru
    _
  // Predicated region
  $region14: #{_lambda_.9} parent=0 // pred_check
    _
  $region15: #{_lambda_.9} parent=0 // pred_check_branch
    %22 = sbr.rel (0) target = $region17
  $region16: #{_lambda_.9} parent=0 // pred_region
    _
  $region17: #{_lambda_.9} parent=0 // pred_fallthru
    _
  // Predicated region
  $region18: #{_lambda_.9} parent=0 // pred_check
    _
  $region19: #{_lambda_.9} parent=0 // pred_check_branch
    %24 = sbr.rel (0) target = $region21
  $region20: #{_lambda_.9} parent=0 // pred_region
    _
  $region21: #{_lambda_.9} parent=0 // pred_fallthru
    _
  // Predicated region
  $region22: #{_lambda_.9} parent=0 // pred_check
    _
  $region23: #{_lambda_.9} parent=0 // pred_check_branch
    %26 = sbr.rel (0) target = $region25
  $region24: #{_lambda_.9} parent=0 // pred_region
    _
  $region25: #{_lambda_.9} parent=0 // pred_fallthru
    _
  // Predicated region
  $region26: #{_lambda_.9} parent=0 // pred_check
    _
  $region27: #{_lambda_.9} parent=0 // pred_check_branch
    %28 = sbr.rel (0) target = $region29
  $region28: #{_lambda_.9} parent=0 // pred_region
    _
  $region29: #{_lambda_.9} parent=0 // pred_fallthru
    _
  // Predicated region
  $region30: #{_lambda_.9} parent=0 // pred_check
    _
  $region31: #{_lambda_.9} parent=0 // pred_check_branch
    %30 = sbr.rel (0) target = $region33
  $region32: #{_lambda_.9} parent=0 // pred_region
    _
  $region33: #{_lambda_.9} parent=0 // pred_fallthru
    _
  // Predicated region
  $region34: #{_lambda_.9} parent=0 // pred_check
    _
  $region35: #{_lambda_.9} parent=0 // pred_check_branch
    %32 = sbr.rel (0) target = $region37
  $region36: #{_lambda_.9} parent=0 // pred_region
    _
  $region37: #{_lambda_.9} parent=0 // pred_fallthru
    _
  // Predicated region
  $region38: #{_lambda_.9} parent=0 // pred_check
    _
  $region39: #{_lambda_.9} parent=0 // pred_check_branch
    %34 = sbr.rel (0) target = $region41
  $region40: #{_lambda_.9} parent=0 // pred_region
    _
  $region41: #{_lambda_.9} parent=0 // pred_fallthru
    _
  %v36 = vld [vmem:[%s0] sm:$0xf]
  %v37 = vld [vmem:[%s0 + $0x4] sm:$0xf]
  %v38 = vunpack.c.l.bf16 %v36
  %v39 = vunpack.c.l.bf16 %v37
  %v40 = vmul.f32 %v38, %v38
  %v41 = vmul.f32 %v39, %v39
  %vm42 = vcmask 523264
  %v43 = vsel %vm42, %v40, 0.0
  %44 = vadd.xlane.f32.xlu0 %v43
  %v45 = vpop.xlane.xlu0 %44
  %v46 = vsel %vm42, %v41, 0.0
  %47 = vadd.xlane.f32.xlu0 %v46
  %v48 = vpop.xlane.xlu0 %47
  %v49 = vrcp.pop 64.0
  %v50 = vmul.f32 %v45, %v49
  %v51 = vmul.f32 %v48, %v49
  %v52 = vadd.f32 %v50, 1e-06
  %v53 = vadd.f32 %v51, 1e-06
  %v54 = vrsqrt.pop %v52
  %v55 = vrsqrt.pop %v53
  %v56 = vmul.f32 %v38, %v54
  %v57 = vmul.f32 %v39, %v55
  %v58 = vld [vmem:[%s2] sm:$0x1]
  %v59 = vld [vmem:[%s2 + $0x1] sm:$0x1]
  %v60 = vadd.f32 %v58, 1.0
  %v61 = vadd.f32 %v59, 1.0
  %v64 = vlaneseq
  %v65 = vshrl.u32 %v64, 7
  %v66 = vsub.s32 0, %v65
  %v67 = vrot.slane %v60, %v66
  %v68 = vlaneseq
  %v69 = vshrl.u32 %v68, 7
  %v70 = vsub.s32 0, %v69
  %v71 = vrot.slane %v61, %v70
  %v74 = vmul.f32 %v56, %v67
  %v75 = vmul.f32 %v57, %v71
  %v76 = vld [vmem:[%s1] sm:$0x1]
  %v77 = vld [vmem:[%s1 + $0x1] sm:$0x1]
  %v80 = vlaneseq
  %v81 = vshrl.u32 %v80, 7
  %v82 = vsub.s32 0, %v81
  %v83 = vrot.slane %v76, %v82
  %v84 = vlaneseq
  %v85 = vshrl.u32 %v84, 7
  %v86 = vsub.s32 0, %v85
  %v87 = vrot.slane %v77, %v86
  %v90 = vadd.f32 %v74, %v83
  %v91 = vadd.f32 %v75, %v87
  %v92 = vpack.c.bf16 %v90, %v90
  %v93 = vpack.c.bf16 %v91, %v91
  %v94 = vld [vmem:[%s4] sm:$0xff]
  %v95 = vld [vmem:[%s4 + $0x8] sm:$0xff]
  %v96 = vld [vmem:[%s4 + $0x10] sm:$0xff]
  %v97 = vld [vmem:[%s4 + $0x18] sm:$0xff]
  %v98 = vld [vmem:[%s4 + $0x20] sm:$0xff]
  %v99 = vld [vmem:[%s4 + $0x28] sm:$0xff]
  %v100 = vld [vmem:[%s4 + $0x30] sm:$0xff]
  %v101 = vld [vmem:[%s4 + $0x38] sm:$0xff]
  %v102 = vld [vmem:[%s5] sm:$0x3]
  %v104 = vlaneseq
  %v105 = vshrl.u32 %v104, 7
  %v106 = vsub.s32 0, %v105
  %v107 = vrot.slane %v102, %v106
  %v108 = vlaneseq
  %v109 = vshrl.u32 %v108, 7
  %v110 = vsub.s32 1, %v109
  %v111 = vrot.slane %v102, %v110
  %v116 = vunpack.c.l.b16 %v92
  %v117 = vunpack.c.l.b16 %v93
  %v118 = vpack.c.b16 %v117, %v116
  %v127 = vunpack.c.l.b16 %v94
  %v128 = vunpack.c.h.b16 %v94
  %v129 = vunpack.c.l.b16 %v95
  %v130 = vunpack.c.h.b16 %v95
  %v131 = vunpack.c.l.b16 %v96
  %v132 = vunpack.c.h.b16 %v96
  %v133 = vunpack.c.l.b16 %v97
  %v134 = vunpack.c.h.b16 %v97
  %v135 = vunpack.c.l.b16 %v98
  %v136 = vunpack.c.h.b16 %v98
  %v137 = vunpack.c.l.b16 %v99
  %v138 = vunpack.c.h.b16 %v99
  %v139 = vunpack.c.l.b16 %v100
  %v140 = vunpack.c.h.b16 %v100
  %v141 = vunpack.c.l.b16 %v101
  %v142 = vunpack.c.h.b16 %v101
  %v143 = vpack.c.b16 %v129, %v127
  %v144 = vpack.c.b16 %v130, %v128
  %v145 = vpack.c.b16 %v133, %v131
  %v146 = vpack.c.b16 %v134, %v132
  %v147 = vpack.c.b16 %v137, %v135
  %v148 = vpack.c.b16 %v138, %v136
  %v149 = vpack.c.b16 %v141, %v139
  %v150 = vpack.c.b16 %v142, %v140
  %v160 = vsel %vm42, %v118, 0
  %162 = vmatprep.subr.bf16.mxu0 %v144
  %163 = vmatpush1.bf16.msra.mxu0 %v143
  %164 = vmatprep.subr.bf16.mxu0 %v146
  %165 = vmatpush1.bf16.msra.mxu0 %v145
  %166 = vmatprep.subr.bf16.mxu0 %v148
  %167 = vmatpush1.bf16.msra.mxu0 %v147
  %168 = vmatprep.subr.bf16.mxu0 %v150
  %169 = vmatpush1.bf16.msra.mxu0 %v149
  %170 = vmatprep.subr.bf16.mxu0 0
  %171 = vmatpush1.bf16.msra.mxu0 0
  %172 = vmatprep.subr.bf16.mxu0 0
  %173 = vmatpush1.bf16.msra.mxu0 0
  %174 = vmatprep.subr.bf16.mxu0 0
  %175 = vmatpush1.bf16.msra.mxu0 0
  %176 = vmatprep.subr.bf16.mxu0 0
  %177 = vmatpush1.bf16.msra.mxu0 0
  %178 = vmatprep.subr.bf16.mxu0 0
  %179 = vmatpush1.bf16.msra.mxu0 0
  %180 = vmatprep.subr.bf16.mxu0 0
  %181 = vmatpush1.bf16.msra.mxu0 0
  %182 = vmatprep.subr.bf16.mxu0 0
  %183 = vmatpush1.bf16.msra.mxu0 0
  %184 = vmatprep.subr.bf16.mxu0 0
  %185 = vmatpush1.bf16.msra.mxu0 0
  %186 = vmatprep.subr.bf16.mxu0 0
  %187 = vmatpush1.bf16.msra.mxu0 0
  %188 = vmatprep.subr.bf16.mxu0 0
  %189 = vmatpush1.bf16.msra.mxu0 0
  %190 = vmatprep.subr.bf16.mxu0 0
  %191 = vmatpush1.bf16.msra.mxu0 0
  %192 = vmatprep.subr.bf16.mxu0 0
  %193 = vmatpush1.bf16.msra.mxu0 0
  %194 = vmatprep.mubr.bf16.mxu0 0
  %195 = vmatmul.mubr.bf16.gmra.mrb[0].mxu0 %v160
  %v196 = vpop.f32.mrb[0].mxu0
  %v197 = vadd.f32 %v107, %v196
  %v198 = vpop.f32.mrb[0].mxu0
  %v199 = vadd.f32 %v111, %v198
  %v200 = vpop.f32.mrb[0].mxu0
  %v201 = vadd.f32 %v107, %v200
  %v202 = vpop.f32.mrb[0].mxu0
  %v203 = vadd.f32 %v111, %v202
  %204 = vdwg.mxu0
  %v205 = vld [vmem:[%s6] sm:$0x1]
  %v206 = vld [vmem:[%s7] sm:$0x1]
  %v207 = vpack.c.bf16 %v199, %v199
  %v208 = vpack.c.bf16 %v203, %v203
  %v209 = vmul.f32 %v197, %v197
  %v210 = vmul.f32 %v201, %v201
  %vm211 = vcmask 130048
  %v212 = vsel %vm211, %v209, 0.0
  %213 = vadd.xlane.f32.xlu0 %v212
  %v214 = vpop.xlane.xlu0 %213
  %v215 = vsel %vm211, %v210, 0.0
  %216 = vadd.xlane.f32.xlu0 %v215
  %v217 = vpop.xlane.xlu0 %216
  %v218 = vrcp.pop 16.0
  %v219 = vmul.f32 %v214, %v218
  %v220 = vmul.f32 %v217, %v218
  %v221 = vadd.f32 %v219, 1e-06
  %v222 = vadd.f32 %v220, 1e-06
  %v223 = vrsqrt.pop %v221
  %v224 = vrsqrt.pop %v222
  %v225 = vmul.f32 %v197, %v223
  %v226 = vmul.f32 %v201, %v224
  %v228 = vlaneseq
  %v229 = vshrl.u32 %v228, 7
  %v230 = vsub.s32 0, %v229
  %v231 = vrot.slane %v205, %v230
  %v233 = vmul.f32 %v225, %v231
  %v234 = vmul.f32 %v226, %v231
  %237 = vrot.lane.b32.xlu0 %v209, 64
  %v238 = vpop.permute.xlu0 %237
  %239 = vrot.lane.b32.xlu0 %v210, 64
  %v240 = vpop.permute.xlu0 %239
  %v243 = vsel %vm211, %v238, 0.0
  %244 = vadd.xlane.f32.xlu0 %v243
  %v245 = vpop.xlane.xlu0 %244
  %v246 = vsel %vm211, %v240, 0.0
  %247 = vadd.xlane.f32.xlu0 %v246
  %v248 = vpop.xlane.xlu0 %247
  %v249 = vmul.f32 %v245, %v218
  %v250 = vmul.f32 %v248, %v218
  %v251 = vadd.f32 %v249, 1e-06
  %v252 = vadd.f32 %v250, 1e-06
  %v253 = vrsqrt.pop %v251
  %v254 = vrsqrt.pop %v252
  %v255 = vmul.f32 %v197, %v253
  %v256 = vmul.f32 %v201, %v254
  %v258 = vlaneseq
  %v259 = vshrl.u32 %v258, 7
  %v260 = vsub.s32 0, %v259
  %v261 = vrot.slane %v206, %v260
  %262 = vrot.lane.b32.xlu0 %v261, 64
  %v263 = vpop.permute.xlu0 %262
  %v265 = vmul.f32 %v255, %v263
  %v266 = vmul.f32 %v256, %v263
  %v267 = vpack.c.bf16 %v233, %v233
  %v268 = vpack.c.bf16 %v234, %v234
  %v269 = vpack.c.bf16 %v265, %v265
  %v270 = vpack.c.bf16 %v266, %v266
  %272 = vrot.lane.b32.xlu0 %v269, 64
  %v273 = vpop.permute.xlu0 %272
  %v275 = vsel %vm211, %v267, 0
  %v278 = vsel %vm211, %v273, 0
  %280 = vmatprep.subr.bf16.mxu0 0
  %281 = vmatpush1.bf16.xpose.msra.mxu0 %v278
  %282 = vmatprep.subr.bf16.mxu0 0
  %283 = vmatpush1.bf16.xpose.msra.mxu0 0
  %284 = vmatprep.subr.bf16.mxu0 0
  %285 = vmatpush1.bf16.xpose.msra.mxu0 0
  %286 = vmatprep.subr.bf16.mxu0 0
  %287 = vmatpush1.bf16.xpose.msra.mxu0 0
  %288 = vmatprep.subr.bf16.mxu0 0
  %289 = vmatpush1.bf16.xpose.msra.mxu0 0
  %290 = vmatprep.subr.bf16.mxu0 0
  %291 = vmatpush1.bf16.xpose.msra.mxu0 0
  %292 = vmatprep.subr.bf16.mxu0 0
  %293 = vmatpush1.bf16.xpose.msra.mxu0 0
  %294 = vmatprep.subr.bf16.mxu0 0
  %295 = vmatpush1.bf16.xpose.msra.mxu0 0
  %296 = vmatprep.subr.bf16.mxu0 0
  %297 = vmatpush1.bf16.xpose.msra.mxu0 0
  %298 = vmatprep.subr.bf16.mxu0 0
  %299 = vmatpush1.bf16.xpose.msra.mxu0 0
  %300 = vmatprep.subr.bf16.mxu0 0
  %301 = vmatpush1.bf16.xpose.msra.mxu0 0
  %302 = vmatprep.subr.bf16.mxu0 0
  %303 = vmatpush1.bf16.xpose.msra.mxu0 0
  %304 = vmatprep.subr.bf16.mxu0 0
  %305 = vmatpush1.bf16.xpose.msra.mxu0 0
  %306 = vmatprep.subr.bf16.mxu0 0
  %307 = vmatpush1.bf16.xpose.msra.mxu0 0
  %308 = vmatprep.subr.bf16.mxu0 0
  %309 = vmatpush1.bf16.xpose.msra.mxu0 0
  %310 = vmatprep.subr.bf16.mxu0 0
  %311 = vmatpush1.bf16.xpose.msra.mxu0 0
  %312 = vmatprep.mubr.bf16.mxu0 0
  %313 = vmatmul.mubr.bf16.gmra.mrb[0].mxu0 %v275
  %v314 = vpop.f32.mrb[0].mxu0
  %v315 = vadd.f32 0.0, %v314
  %v316 = vpop.f32.mrb[0].mxu0
  %v317 = vpop.f32.mrb[0].mxu0
  %v318 = vpop.f32.mrb[0].mxu0
  %319 = vdwg.mxu0
  %321 = vrot.lane.b32.xlu0 %v270, 64
  %v322 = vpop.permute.xlu0 %321
  %v324 = vsel %vm211, %v268, 0
  %v327 = vsel %vm211, %v322, 0
  %329 = vmatprep.subr.bf16.mxu0 0
  %330 = vmatpush1.bf16.xpose.msra.mxu0 %v327
  %331 = vmatprep.subr.bf16.mxu0 0
  %332 = vmatpush1.bf16.xpose.msra.mxu0 0
  %333 = vmatprep.subr.bf16.mxu0 0
  %334 = vmatpush1.bf16.xpose.msra.mxu0 0
  %335 = vmatprep.subr.bf16.mxu0 0
  %336 = vmatpush1.bf16.xpose.msra.mxu0 0
  %337 = vmatprep.subr.bf16.mxu0 0
  %338 = vmatpush1.bf16.xpose.msra.mxu0 0
  %339 = vmatprep.subr.bf16.mxu0 0
  %340 = vmatpush1.bf16.xpose.msra.mxu0 0
  %341 = vmatprep.subr.bf16.mxu0 0
  %342 = vmatpush1.bf16.xpose.msra.mxu0 0
  %343 = vmatprep.subr.bf16.mxu0 0
  %344 = vmatpush1.bf16.xpose.msra.mxu0 0
  %345 = vmatprep.subr.bf16.mxu0 0
  %346 = vmatpush1.bf16.xpose.msra.mxu0 0
  %347 = vmatprep.subr.bf16.mxu0 0
  %348 = vmatpush1.bf16.xpose.msra.mxu0 0
  %349 = vmatprep.subr.bf16.mxu0 0
  %350 = vmatpush1.bf16.xpose.msra.mxu0 0
  %351 = vmatprep.subr.bf16.mxu0 0
  %352 = vmatpush1.bf16.xpose.msra.mxu0 0
  %353 = vmatprep.subr.bf16.mxu0 0
  %354 = vmatpush1.bf16.xpose.msra.mxu0 0
  %355 = vmatprep.subr.bf16.mxu0 0
  %356 = vmatpush1.bf16.xpose.msra.mxu0 0
  %357 = vmatprep.subr.bf16.mxu0 0
  %358 = vmatpush1.bf16.xpose.msra.mxu0 0
  %359 = vmatprep.subr.bf16.mxu0 0
  %360 = vmatpush1.bf16.xpose.msra.mxu0 0
  %361 = vmatprep.mubr.bf16.mxu0 0
  %362 = vmatmul.mubr.bf16.gmra.mrb[0].mxu0 %v324
  %v363 = vpop.f32.mrb[0].mxu0
  %v364 = vadd.f32 0.0, %v363
  %v365 = vpop.f32.mrb[0].mxu0
  %v366 = vpop.f32.mrb[0].mxu0
  %v367 = vpop.f32.mrb[0].mxu0
  %368 = vdwg.mxu0
  %v369 = vmul.f32 %v315, 0.25
  %v370 = vmul.f32 %v364, 0.25
  %vm371 = vcmask 64512
  %v372 = vsel %vm371, %v369, -inf
  %373 = vmax.xlane.f32.xlu0 %v372
  %v374 = vpop.xlane.xlu0 %373
  %v375 = vsel %vm371, %v370, -inf
  %376 = vmax.xlane.f32.xlu0 %v375
  %v377 = vpop.xlane.xlu0 %376
  %v378 = vsub.f32 %v369, %v374
  %v379 = vsub.f32 %v370, %v377
  %v380 = vmul.f32 %v378, 1.442695
  %v381 = vpow.pop %v380
  %v382 = vmul.f32 %v379, 1.442695
  %v383 = vpow.pop %v382
  %v384 = vsel %vm371, %v381, 0.0
  %385 = vadd.xlane.f32.xlu0 %v384
  %v386 = vpop.xlane.xlu0 %385
  %v387 = vsel %vm371, %v383, 0.0
  %388 = vadd.xlane.f32.xlu0 %v387
  %v389 = vpop.xlane.xlu0 %388
  %v390 = vrcp.pop %v386
  %v391 = vrcp.pop %v389
  %v392 = vmul.f32 %v381, %v390
  %v393 = vmul.f32 %v383, %v391
  %v394 = vpack.c.bf16 %v392, %v392
  %v395 = vpack.c.bf16 %v393, %v393
  %v397 = vsel %vm371, %v394, 0
  %vm399 = vcmask 1043456
  %v401 = vsel %vm399, %v207, 0
  %403 = vmatprep.subr.bf16.mxu0 0
  %404 = vmatpush1.bf16.msra.mxu0 %v401
  %405 = vmatprep.subr.bf16.mxu0 0
  %406 = vmatpush1.bf16.msra.mxu0 0
  %407 = vmatprep.subr.bf16.mxu0 0
  %408 = vmatpush1.bf16.msra.mxu0 0
  %409 = vmatprep.subr.bf16.mxu0 0
  %410 = vmatpush1.bf16.msra.mxu0 0
  %411 = vmatprep.subr.bf16.mxu0 0
  %412 = vmatpush1.bf16.msra.mxu0 0
  %413 = vmatprep.subr.bf16.mxu0 0
  %414 = vmatpush1.bf16.msra.mxu0 0
  %415 = vmatprep.subr.bf16.mxu0 0
  %416 = vmatpush1.bf16.msra.mxu0 0
  %417 = vmatprep.subr.bf16.mxu0 0
  %418 = vmatpush1.bf16.msra.mxu0 0
  %419 = vmatprep.subr.bf16.mxu0 0
  %420 = vmatpush1.bf16.msra.mxu0 0
  %421 = vmatprep.subr.bf16.mxu0 0
  %422 = vmatpush1.bf16.msra.mxu0 0
  %423 = vmatprep.subr.bf16.mxu0 0
  %424 = vmatpush1.bf16.msra.mxu0 0
  %425 = vmatprep.subr.bf16.mxu0 0
  %426 = vmatpush1.bf16.msra.mxu0 0
  %427 = vmatprep.subr.bf16.mxu0 0
  %428 = vmatpush1.bf16.msra.mxu0 0
  %429 = vmatprep.subr.bf16.mxu0 0
  %430 = vmatpush1.bf16.msra.mxu0 0
  %431 = vmatprep.subr.bf16.mxu0 0
  %432 = vmatpush1.bf16.msra.mxu0 0
  %433 = vmatprep.subr.bf16.mxu0 0
  %434 = vmatpush1.bf16.msra.mxu0 0
  %435 = vmatprep.mubr.bf16.mxu0 0
  %436 = vmatmul.mubr.bf16.gmra.mrb[0].mxu0 %v397
  %v437 = vpop.f32.mrb[0].mxu0
  %v438 = vadd.f32 0.0, %v437
  %v439 = vpop.f32.mrb[0].mxu0
  %v440 = vpop.f32.mrb[0].mxu0
  %v441 = vpop.f32.mrb[0].mxu0
  %442 = vdwg.mxu0
  %v444 = vsel %vm371, %v395, 0
  %v447 = vsel %vm399, %v208, 0
  %449 = vmatprep.subr.bf16.mxu0 0
  %450 = vmatpush1.bf16.msra.mxu0 %v447
  %451 = vmatprep.subr.bf16.mxu0 0
  %452 = vmatpush1.bf16.msra.mxu0 0
  %453 = vmatprep.subr.bf16.mxu0 0
  %454 = vmatpush1.bf16.msra.mxu0 0
  %455 = vmatprep.subr.bf16.mxu0 0
  %456 = vmatpush1.bf16.msra.mxu0 0
  %457 = vmatprep.subr.bf16.mxu0 0
  %458 = vmatpush1.bf16.msra.mxu0 0
  %459 = vmatprep.subr.bf16.mxu0 0
  %460 = vmatpush1.bf16.msra.mxu0 0
  %461 = vmatprep.subr.bf16.mxu0 0
  %462 = vmatpush1.bf16.msra.mxu0 0
  %463 = vmatprep.subr.bf16.mxu0 0
  %464 = vmatpush1.bf16.msra.mxu0 0
  %465 = vmatprep.subr.bf16.mxu0 0
  %466 = vmatpush1.bf16.msra.mxu0 0
  %467 = vmatprep.subr.bf16.mxu0 0
  %468 = vmatpush1.bf16.msra.mxu0 0
  %469 = vmatprep.subr.bf16.mxu0 0
  %470 = vmatpush1.bf16.msra.mxu0 0
  %471 = vmatprep.subr.bf16.mxu0 0
  %472 = vmatpush1.bf16.msra.mxu0 0
  %473 = vmatprep.subr.bf16.mxu0 0
  %474 = vmatpush1.bf16.msra.mxu0 0
  %475 = vmatprep.subr.bf16.mxu0 0
  %476 = vmatpush1.bf16.msra.mxu0 0
  %477 = vmatprep.subr.bf16.mxu0 0
  %478 = vmatpush1.bf16.msra.mxu0 0
  %479 = vmatprep.subr.bf16.mxu0 0
  %480 = vmatpush1.bf16.msra.mxu0 0
  %481 = vmatprep.mubr.bf16.mxu0 0
  %482 = vmatmul.mubr.bf16.gmra.mrb[0].mxu0 %v444
  %v483 = vpop.f32.mrb[0].mxu0
  %v484 = vadd.f32 0.0, %v483
  %v485 = vpop.f32.mrb[0].mxu0
  %v486 = vpop.f32.mrb[0].mxu0
  %v487 = vpop.f32.mrb[0].mxu0
  %488 = vdwg.mxu0
  %489 = vrot.lane.b32.xlu0 %v209, 112
  %v490 = vpop.permute.xlu0 %489
  %491 = vrot.lane.b32.xlu0 %v210, 112
  %v492 = vpop.permute.xlu0 %491
  %v495 = vsel %vm211, %v490, 0.0
  %496 = vadd.xlane.f32.xlu0 %v495
  %v497 = vpop.xlane.xlu0 %496
  %v498 = vsel %vm211, %v492, 0.0
  %499 = vadd.xlane.f32.xlu0 %v498
  %v500 = vpop.xlane.xlu0 %499
  %v501 = vmul.f32 %v497, %v218
  %v502 = vmul.f32 %v500, %v218
  %v503 = vadd.f32 %v501, 1e-06
  %v504 = vadd.f32 %v502, 1e-06
  %v505 = vrsqrt.pop %v503
  %v506 = vrsqrt.pop %v504
  %v507 = vmul.f32 %v197, %v505
  %v508 = vmul.f32 %v201, %v506
  %509 = vrot.lane.b32.xlu0 %v231, 16
  %v510 = vpop.permute.xlu0 %509
  %v512 = vmul.f32 %v507, %v510
  %v513 = vmul.f32 %v508, %v510
  %514 = vrot.lane.b32.xlu0 %v209, 48
  %v515 = vpop.permute.xlu0 %514
  %516 = vrot.lane.b32.xlu0 %v210, 48
  %v517 = vpop.permute.xlu0 %516
  %v520 = vsel %vm211, %v515, 0.0
  %521 = vadd.xlane.f32.xlu0 %v520
  %v522 = vpop.xlane.xlu0 %521
  %v523 = vsel %vm211, %v517, 0.0
  %524 = vadd.xlane.f32.xlu0 %v523
  %v525 = vpop.xlane.xlu0 %524
  %v526 = vmul.f32 %v522, %v218
  %v527 = vmul.f32 %v525, %v218
  %v528 = vadd.f32 %v526, 1e-06
  %v529 = vadd.f32 %v527, 1e-06
  %v530 = vrsqrt.pop %v528
  %v531 = vrsqrt.pop %v529
  %v532 = vmul.f32 %v197, %v530
  %v533 = vmul.f32 %v201, %v531
  %534 = vrot.lane.b32.xlu0 %v261, 80
  %v535 = vpop.permute.xlu0 %534
  %v537 = vmul.f32 %v532, %v535
  %v538 = vmul.f32 %v533, %v535
  %v539 = vpack.c.bf16 %v512, %v512
  %v540 = vpack.c.bf16 %v513, %v513
  %v541 = vpack.c.bf16 %v537, %v537
  %v542 = vpack.c.bf16 %v538, %v538
  %544 = vrot.lane.b32.xlu0 %v539, 112
  %v545 = vpop.permute.xlu0 %544
  %547 = vrot.lane.b32.xlu0 %v541, 48
  %v548 = vpop.permute.xlu0 %547
  %v550 = vsel %vm211, %v545, 0
  %v553 = vsel %vm211, %v548, 0
  %555 = vmatprep.subr.bf16.mxu0 0
  %556 = vmatpush1.bf16.xpose.msra.mxu0 %v553
  %557 = vmatprep.subr.bf16.mxu0 0
  %558 = vmatpush1.bf16.xpose.msra.mxu0 0
  %559 = vmatprep.subr.bf16.mxu0 0
  %560 = vmatpush1.bf16.xpose.msra.mxu0 0
  %561 = vmatprep.subr.bf16.mxu0 0
  %562 = vmatpush1.bf16.xpose.msra.mxu0 0
  %563 = vmatprep.subr.bf16.mxu0 0
  %564 = vmatpush1.bf16.xpose.msra.mxu0 0
  %565 = vmatprep.subr.bf16.mxu0 0
  %566 = vmatpush1.bf16.xpose.msra.mxu0 0
  %567 = vmatprep.subr.bf16.mxu0 0
  %568 = vmatpush1.bf16.xpose.msra.mxu0 0
  %569 = vmatprep.subr.bf16.mxu0 0
  %570 = vmatpush1.bf16.xpose.msra.mxu0 0
  %571 = vmatprep.subr.bf16.mxu0 0
  %572 = vmatpush1.bf16.xpose.msra.mxu0 0
  %573 = vmatprep.subr.bf16.mxu0 0
  %574 = vmatpush1.bf16.xpose.msra.mxu0 0
  %575 = vmatprep.subr.bf16.mxu0 0
  %576 = vmatpush1.bf16.xpose.msra.mxu0 0
  %577 = vmatprep.subr.bf16.mxu0 0
  %578 = vmatpush1.bf16.xpose.msra.mxu0 0
  %579 = vmatprep.subr.bf16.mxu0 0
  %580 = vmatpush1.bf16.xpose.msra.mxu0 0
  %581 = vmatprep.subr.bf16.mxu0 0
  %582 = vmatpush1.bf16.xpose.msra.mxu0 0
  %583 = vmatprep.subr.bf16.mxu0 0
  %584 = vmatpush1.bf16.xpose.msra.mxu0 0
  %585 = vmatprep.subr.bf16.mxu0 0
  %586 = vmatpush1.bf16.xpose.msra.mxu0 0
  %587 = vmatprep.mubr.bf16.mxu0 0
  %588 = vmatmul.mubr.bf16.gmra.mrb[0].mxu0 %v550
  %v589 = vpop.f32.mrb[0].mxu0
  %v590 = vadd.f32 0.0, %v589
  %v591 = vpop.f32.mrb[0].mxu0
  %v592 = vpop.f32.mrb[0].mxu0
  %v593 = vpop.f32.mrb[0].mxu0
  %594 = vdwg.mxu0
  %596 = vrot.lane.b32.xlu0 %v540, 112
  %v597 = vpop.permute.xlu0 %596
  %599 = vrot.lane.b32.xlu0 %v542, 48
  %v600 = vpop.permute.xlu0 %599
  %v602 = vsel %vm211, %v597, 0
  %v605 = vsel %vm211, %v600, 0
  %607 = vmatprep.subr.bf16.mxu0 0
  %608 = vmatpush1.bf16.xpose.msra.mxu0 %v605
  %609 = vmatprep.subr.bf16.mxu0 0
  %610 = vmatpush1.bf16.xpose.msra.mxu0 0
  %611 = vmatprep.subr.bf16.mxu0 0
  %612 = vmatpush1.bf16.xpose.msra.mxu0 0
  %613 = vmatprep.subr.bf16.mxu0 0
  %614 = vmatpush1.bf16.xpose.msra.mxu0 0
  %615 = vmatprep.subr.bf16.mxu0 0
  %616 = vmatpush1.bf16.xpose.msra.mxu0 0
  %617 = vmatprep.subr.bf16.mxu0 0
  %618 = vmatpush1.bf16.xpose.msra.mxu0 0
  %619 = vmatprep.subr.bf16.mxu0 0
  %620 = vmatpush1.bf16.xpose.msra.mxu0 0
  %621 = vmatprep.subr.bf16.mxu0 0
  %622 = vmatpush1.bf16.xpose.msra.mxu0 0
  %623 = vmatprep.subr.bf16.mxu0 0
  %624 = vmatpush1.bf16.xpose.msra.mxu0 0
  %625 = vmatprep.subr.bf16.mxu0 0
  %626 = vmatpush1.bf16.xpose.msra.mxu0 0
  %627 = vmatprep.subr.bf16.mxu0 0
  %628 = vmatpush1.bf16.xpose.msra.mxu0 0
  %629 = vmatprep.subr.bf16.mxu0 0
  %630 = vmatpush1.bf16.xpose.msra.mxu0 0
  %631 = vmatprep.subr.bf16.mxu0 0
  %632 = vmatpush1.bf16.xpose.msra.mxu0 0
  %633 = vmatprep.subr.bf16.mxu0 0
  %634 = vmatpush1.bf16.xpose.msra.mxu0 0
  %635 = vmatprep.subr.bf16.mxu0 0
  %636 = vmatpush1.bf16.xpose.msra.mxu0 0
  %637 = vmatprep.subr.bf16.mxu0 0
  %638 = vmatpush1.bf16.xpose.msra.mxu0 0
  %639 = vmatprep.mubr.bf16.mxu0 0
  %640 = vmatmul.mubr.bf16.gmra.mrb[0].mxu0 %v602
  %v641 = vpop.f32.mrb[0].mxu0
  %v642 = vadd.f32 0.0, %v641
  %v643 = vpop.f32.mrb[0].mxu0
  %v644 = vpop.f32.mrb[0].mxu0
  %v645 = vpop.f32.mrb[0].mxu0
  %646 = vdwg.mxu0
  %v647 = vmul.f32 %v590, 0.25
  %v648 = vmul.f32 %v642, 0.25
  %v649 = vsel %vm371, %v647, -inf
  %650 = vmax.xlane.f32.xlu0 %v649
  %v651 = vpop.xlane.xlu0 %650
  %v652 = vsel %vm371, %v648, -inf
  %653 = vmax.xlane.f32.xlu0 %v652
  %v654 = vpop.xlane.xlu0 %653
  %v655 = vsub.f32 %v647, %v651
  %v656 = vsub.f32 %v648, %v654
  %v657 = vmul.f32 %v655, 1.442695
  %v658 = vpow.pop %v657
  %v659 = vmul.f32 %v656, 1.442695
  %v660 = vpow.pop %v659
  %v661 = vsel %vm371, %v658, 0.0
  %662 = vadd.xlane.f32.xlu0 %v661
  %v663 = vpop.xlane.xlu0 %662
  %v664 = vsel %vm371, %v660, 0.0
  %665 = vadd.xlane.f32.xlu0 %v664
  %v666 = vpop.xlane.xlu0 %665
  %v667 = vrcp.pop %v663
  %v668 = vrcp.pop %v666
  %v669 = vmul.f32 %v658, %v667
  %v670 = vmul.f32 %v660, %v668
  %v671 = vpack.c.bf16 %v669, %v669
  %v672 = vpack.c.bf16 %v670, %v670
  %674 = vrot.lane.b32.xlu0 %v207, 112
  %v675 = vpop.permute.xlu0 %674
  %v677 = vsel %vm371, %v671, 0
  %v680 = vsel %vm399, %v675, 0
  %682 = vmatprep.subr.bf16.mxu0 0
  %683 = vmatpush1.bf16.msra.mxu0 %v680
  %684 = vmatprep.subr.bf16.mxu0 0
  %685 = vmatpush1.bf16.msra.mxu0 0
  %686 = vmatprep.subr.bf16.mxu0 0
  %687 = vmatpush1.bf16.msra.mxu0 0
  %688 = vmatprep.subr.bf16.mxu0 0
  %689 = vmatpush1.bf16.msra.mxu0 0
  %690 = vmatprep.subr.bf16.mxu0 0
  %691 = vmatpush1.bf16.msra.mxu0 0
  %692 = vmatprep.subr.bf16.mxu0 0
  %693 = vmatpush1.bf16.msra.mxu0 0
  %694 = vmatprep.subr.bf16.mxu0 0
  %695 = vmatpush1.bf16.msra.mxu0 0
  %696 = vmatprep.subr.bf16.mxu0 0
  %697 = vmatpush1.bf16.msra.mxu0 0
  %698 = vmatprep.subr.bf16.mxu0 0
  %699 = vmatpush1.bf16.msra.mxu0 0
  %700 = vmatprep.subr.bf16.mxu0 0
  %701 = vmatpush1.bf16.msra.mxu0 0
  %702 = vmatprep.subr.bf16.mxu0 0
  %703 = vmatpush1.bf16.msra.mxu0 0
  %704 = vmatprep.subr.bf16.mxu0 0
  %705 = vmatpush1.bf16.msra.mxu0 0
  %706 = vmatprep.subr.bf16.mxu0 0
  %707 = vmatpush1.bf16.msra.mxu0 0
  %708 = vmatprep.subr.bf16.mxu0 0
  %709 = vmatpush1.bf16.msra.mxu0 0
  %710 = vmatprep.subr.bf16.mxu0 0
  %711 = vmatpush1.bf16.msra.mxu0 0
  %712 = vmatprep.subr.bf16.mxu0 0
  %713 = vmatpush1.bf16.msra.mxu0 0
  %714 = vmatprep.mubr.bf16.mxu0 0
  %715 = vmatmul.mubr.bf16.gmra.mrb[0].mxu0 %v677
  %v716 = vpop.f32.mrb[0].mxu0
  %v717 = vadd.f32 0.0, %v716
  %v718 = vpop.f32.mrb[0].mxu0
  %v719 = vpop.f32.mrb[0].mxu0
  %v720 = vpop.f32.mrb[0].mxu0
  %721 = vdwg.mxu0
  %723 = vrot.lane.b32.xlu0 %v208, 112
  %v724 = vpop.permute.xlu0 %723
  %v726 = vsel %vm371, %v672, 0
  %v729 = vsel %vm399, %v724, 0
  %731 = vmatprep.subr.bf16.mxu0 0
  %732 = vmatpush1.bf16.msra.mxu0 %v729
  %733 = vmatprep.subr.bf16.mxu0 0
  %734 = vmatpush1.bf16.msra.mxu0 0
  %735 = vmatprep.subr.bf16.mxu0 0
  %736 = vmatpush1.bf16.msra.mxu0 0
  %737 = vmatprep.subr.bf16.mxu0 0
  %738 = vmatpush1.bf16.msra.mxu0 0
  %739 = vmatprep.subr.bf16.mxu0 0
  %740 = vmatpush1.bf16.msra.mxu0 0
  %741 = vmatprep.subr.bf16.mxu0 0
  %742 = vmatpush1.bf16.msra.mxu0 0
  %743 = vmatprep.subr.bf16.mxu0 0
  %744 = vmatpush1.bf16.msra.mxu0 0
  %745 = vmatprep.subr.bf16.mxu0 0
  %746 = vmatpush1.bf16.msra.mxu0 0
  %747 = vmatprep.subr.bf16.mxu0 0
  %748 = vmatpush1.bf16.msra.mxu0 0
  %749 = vmatprep.subr.bf16.mxu0 0
  %750 = vmatpush1.bf16.msra.mxu0 0
  %751 = vmatprep.subr.bf16.mxu0 0
  %752 = vmatpush1.bf16.msra.mxu0 0
  %753 = vmatprep.subr.bf16.mxu0 0
  %754 = vmatpush1.bf16.msra.mxu0 0
  %755 = vmatprep.subr.bf16.mxu0 0
  %756 = vmatpush1.bf16.msra.mxu0 0
  %757 = vmatprep.subr.bf16.mxu0 0
  %758 = vmatpush1.bf16.msra.mxu0 0
  %759 = vmatprep.subr.bf16.mxu0 0
  %760 = vmatpush1.bf16.msra.mxu0 0
  %761 = vmatprep.subr.bf16.mxu0 0
  %762 = vmatpush1.bf16.msra.mxu0 0
  %763 = vmatprep.mubr.bf16.mxu0 0
  %764 = vmatmul.mubr.bf16.gmra.mrb[0].mxu0 %v726
  %v765 = vpop.f32.mrb[0].mxu0
  %v766 = vadd.f32 0.0, %v765
  %v767 = vpop.f32.mrb[0].mxu0
  %v768 = vpop.f32.mrb[0].mxu0
  %v769 = vpop.f32.mrb[0].mxu0
  %770 = vdwg.mxu0
  %771 = vrot.lane.b32.xlu0 %v209, 96
  %v772 = vpop.permute.xlu0 %771
  %773 = vrot.lane.b32.xlu0 %v210, 96
  %v774 = vpop.permute.xlu0 %773
  %v777 = vsel %vm211, %v772, 0.0
  %778 = vadd.xlane.f32.xlu0 %v777
  %v779 = vpop.xlane.xlu0 %778
  %v780 = vsel %vm211, %v774, 0.0
  %781 = vadd.xlane.f32.xlu0 %v780
  %v782 = vpop.xlane.xlu0 %781
  %v783 = vmul.f32 %v779, %v218
  %v784 = vmul.f32 %v782, %v218
  %v785 = vadd.f32 %v783, 1e-06
  %v786 = vadd.f32 %v784, 1e-06
  %v787 = vrsqrt.pop %v785
  %v788 = vrsqrt.pop %v786
  %v789 = vmul.f32 %v197, %v787
  %v790 = vmul.f32 %v201, %v788
  %791 = vrot.lane.b32.xlu0 %v231, 32
  %v792 = vpop.permute.xlu0 %791
  %v794 = vmul.f32 %v789, %v792
  %v795 = vmul.f32 %v790, %v792
  %796 = vrot.lane.b32.xlu0 %v209, 32
  %v797 = vpop.permute.xlu0 %796
  %798 = vrot.lane.b32.xlu0 %v210, 32
  %v799 = vpop.permute.xlu0 %798
  %v802 = vsel %vm211, %v797, 0.0
  %803 = vadd.xlane.f32.xlu0 %v802
  %v804 = vpop.xlane.xlu0 %803
  %v805 = vsel %vm211, %v799, 0.0
  %806 = vadd.xlane.f32.xlu0 %v805
  %v807 = vpop.xlane.xlu0 %806
  %v808 = vmul.f32 %v804, %v218
  %v809 = vmul.f32 %v807, %v218
  %v810 = vadd.f32 %v808, 1e-06
  %v811 = vadd.f32 %v809, 1e-06
  %v812 = vrsqrt.pop %v810
  %v813 = vrsqrt.pop %v811
  %v814 = vmul.f32 %v197, %v812
  %v815 = vmul.f32 %v201, %v813
  %816 = vrot.lane.b32.xlu0 %v261, 96
  %v817 = vpop.permute.xlu0 %816
  %v819 = vmul.f32 %v814, %v817
  %v820 = vmul.f32 %v815, %v817
  %v821 = vpack.c.bf16 %v794, %v794
  %v822 = vpack.c.bf16 %v795, %v795
  %v823 = vpack.c.bf16 %v819, %v819
  %v824 = vpack.c.bf16 %v820, %v820
  %826 = vrot.lane.b32.xlu0 %v821, 96
  %v827 = vpop.permute.xlu0 %826
  %829 = vrot.lane.b32.xlu0 %v823, 32
  %v830 = vpop.permute.xlu0 %829
  %v832 = vsel %vm211, %v827, 0
  %v835 = vsel %vm211, %v830, 0
  %837 = vmatprep.subr.bf16.mxu0 0
  %838 = vmatpush1.bf16.xpose.msra.mxu0 %v835
  %839 = vmatprep.subr.bf16.mxu0 0
  %840 = vmatpush1.bf16.xpose.msra.mxu0 0
  %841 = vmatprep.subr.bf16.mxu0 0
  %842 = vmatpush1.bf16.xpose.msra.mxu0 0
  %843 = vmatprep.subr.bf16.mxu0 0
  %844 = vmatpush1.bf16.xpose.msra.mxu0 0
  %845 = vmatprep.subr.bf16.mxu0 0
  %846 = vmatpush1.bf16.xpose.msra.mxu0 0
  %847 = vmatprep.subr.bf16.mxu0 0
  %848 = vmatpush1.bf16.xpose.msra.mxu0 0
  %849 = vmatprep.subr.bf16.mxu0 0
  %850 = vmatpush1.bf16.xpose.msra.mxu0 0
  %851 = vmatprep.subr.bf16.mxu0 0
  %852 = vmatpush1.bf16.xpose.msra.mxu0 0
  %853 = vmatprep.subr.bf16.mxu0 0
  %854 = vmatpush1.bf16.xpose.msra.mxu0 0
  %855 = vmatprep.subr.bf16.mxu0 0
  %856 = vmatpush1.bf16.xpose.msra.mxu0 0
  %857 = vmatprep.subr.bf16.mxu0 0
  %858 = vmatpush1.bf16.xpose.msra.mxu0 0
  %859 = vmatprep.subr.bf16.mxu0 0
  %860 = vmatpush1.bf16.xpose.msra.mxu0 0
  %861 = vmatprep.subr.bf16.mxu0 0
  %862 = vmatpush1.bf16.xpose.msra.mxu0 0
  %863 = vmatprep.subr.bf16.mxu0 0
  %864 = vmatpush1.bf16.xpose.msra.mxu0 0
  %865 = vmatprep.subr.bf16.mxu0 0
  %866 = vmatpush1.bf16.xpose.msra.mxu0 0
  %867 = vmatprep.subr.bf16.mxu0 0
  %868 = vmatpush1.bf16.xpose.msra.mxu0 0
  %869 = vmatprep.mubr.bf16.mxu0 0
  %870 = vmatmul.mubr.bf16.gmra.mrb[0].mxu0 %v832
  %v871 = vpop.f32.mrb[0].mxu0
  %v872 = vadd.f32 0.0, %v871
  %v873 = vpop.f32.mrb[0].mxu0
  %v874 = vpop.f32.mrb[0].mxu0
  %v875 = vpop.f32.mrb[0].mxu0
  %876 = vdwg.mxu0
  %878 = vrot.lane.b32.xlu0 %v822, 96
  %v879 = vpop.permute.xlu0 %878
  %881 = vrot.lane.b32.xlu0 %v824, 32
  %v882 = vpop.permute.xlu0 %881
  %v884 = vsel %vm211, %v879, 0
  %v887 = vsel %vm211, %v882, 0
  %889 = vmatprep.subr.bf16.mxu0 0
  %890 = vmatpush1.bf16.xpose.msra.mxu0 %v887
  %891 = vmatprep.subr.bf16.mxu0 0
  %892 = vmatpush1.bf16.xpose.msra.mxu0 0
  %893 = vmatprep.subr.bf16.mxu0 0
  %894 = vmatpush1.bf16.xpose.msra.mxu0 0
  %895 = vmatprep.subr.bf16.mxu0 0
  %896 = vmatpush1.bf16.xpose.msra.mxu0 0
  %897 = vmatprep.subr.bf16.mxu0 0
  %898 = vmatpush1.bf16.xpose.msra.mxu0 0
  %899 = vmatprep.subr.bf16.mxu0 0
  %900 = vmatpush1.bf16.xpose.msra.mxu0 0
  %901 = vmatprep.subr.bf16.mxu0 0
  %902 = vmatpush1.bf16.xpose.msra.mxu0 0
  %903 = vmatprep.subr.bf16.mxu0 0
  %904 = vmatpush1.bf16.xpose.msra.mxu0 0
  %905 = vmatprep.subr.bf16.mxu0 0
  %906 = vmatpush1.bf16.xpose.msra.mxu0 0
  %907 = vmatprep.subr.bf16.mxu0 0
  %908 = vmatpush1.bf16.xpose.msra.mxu0 0
  %909 = vmatprep.subr.bf16.mxu0 0
  %910 = vmatpush1.bf16.xpose.msra.mxu0 0
  %911 = vmatprep.subr.bf16.mxu0 0
  %912 = vmatpush1.bf16.xpose.msra.mxu0 0
  %913 = vmatprep.subr.bf16.mxu0 0
  %914 = vmatpush1.bf16.xpose.msra.mxu0 0
  %915 = vmatprep.subr.bf16.mxu0 0
  %916 = vmatpush1.bf16.xpose.msra.mxu0 0
  %917 = vmatprep.subr.bf16.mxu0 0
  %918 = vmatpush1.bf16.xpose.msra.mxu0 0
  %919 = vmatprep.subr.bf16.mxu0 0
  %920 = vmatpush1.bf16.xpose.msra.mxu0 0
  %921 = vmatprep.mubr.bf16.mxu0 0
  %922 = vmatmul.mubr.bf16.gmra.mrb[0].mxu0 %v884
  %v923 = vpop.f32.mrb[0].mxu0
  %v924 = vadd.f32 0.0, %v923
  %v925 = vpop.f32.mrb[0].mxu0
  %v926 = vpop.f32.mrb[0].mxu0
  %v927 = vpop.f32.mrb[0].mxu0
  %928 = vdwg.mxu0
  %v929 = vmul.f32 %v872, 0.25
  %v930 = vmul.f32 %v924, 0.25
  %v931 = vsel %vm371, %v929, -inf
  %932 = vmax.xlane.f32.xlu0 %v931
  %v933 = vpop.xlane.xlu0 %932
  %v934 = vsel %vm371, %v930, -inf
  %935 = vmax.xlane.f32.xlu0 %v934
  %v936 = vpop.xlane.xlu0 %935
  %v937 = vsub.f32 %v929, %v933
  %v938 = vsub.f32 %v930, %v936
  %v939 = vmul.f32 %v937, 1.442695
  %v940 = vpow.pop %v939
  %v941 = vmul.f32 %v938, 1.442695
  %v942 = vpow.pop %v941
  %v943 = vsel %vm371, %v940, 0.0
  %944 = vadd.xlane.f32.xlu0 %v943
  %v945 = vpop.xlane.xlu0 %944
  %v946 = vsel %vm371, %v942, 0.0
  %947 = vadd.xlane.f32.xlu0 %v946
  %v948 = vpop.xlane.xlu0 %947
  %v949 = vrcp.pop %v945
  %v950 = vrcp.pop %v948
  %v951 = vmul.f32 %v940, %v949
  %v952 = vmul.f32 %v942, %v950
  %v953 = vpack.c.bf16 %v951, %v951
  %v954 = vpack.c.bf16 %v952, %v952
  %955 = vrot.lane.b32.xlu0 %v207, 96
  %v956 = vpop.permute.xlu0 %955
  %v958 = vsel %vm371, %v953, 0
  %v961 = vsel %vm399, %v956, 0
  %963 = vmatprep.subr.bf16.mxu0 0
  %964 = vmatpush1.bf16.msra.mxu0 %v961
  %965 = vmatprep.subr.bf16.mxu0 0
  %966 = vmatpush1.bf16.msra.mxu0 0
  %967 = vmatprep.subr.bf16.mxu0 0
  %968 = vmatpush1.bf16.msra.mxu0 0
  %969 = vmatprep.subr.bf16.mxu0 0
  %970 = vmatpush1.bf16.msra.mxu0 0
  %971 = vmatprep.subr.bf16.mxu0 0
  %972 = vmatpush1.bf16.msra.mxu0 0
  %973 = vmatprep.subr.bf16.mxu0 0
  %974 = vmatpush1.bf16.msra.mxu0 0
  %975 = vmatprep.subr.bf16.mxu0 0
  %976 = vmatpush1.bf16.msra.mxu0 0
  %977 = vmatprep.subr.bf16.mxu0 0
  %978 = vmatpush1.bf16.msra.mxu0 0
  %979 = vmatprep.subr.bf16.mxu0 0
  %980 = vmatpush1.bf16.msra.mxu0 0
  %981 = vmatprep.subr.bf16.mxu0 0
  %982 = vmatpush1.bf16.msra.mxu0 0
  %983 = vmatprep.subr.bf16.mxu0 0
  %984 = vmatpush1.bf16.msra.mxu0 0
  %985 = vmatprep.subr.bf16.mxu0 0
  %986 = vmatpush1.bf16.msra.mxu0 0
  %987 = vmatprep.subr.bf16.mxu0 0
  %988 = vmatpush1.bf16.msra.mxu0 0
  %989 = vmatprep.subr.bf16.mxu0 0
  %990 = vmatpush1.bf16.msra.mxu0 0
  %991 = vmatprep.subr.bf16.mxu0 0
  %992 = vmatpush1.bf16.msra.mxu0 0
  %993 = vmatprep.subr.bf16.mxu0 0
  %994 = vmatpush1.bf16.msra.mxu0 0
  %995 = vmatprep.mubr.bf16.mxu0 0
  %996 = vmatmul.mubr.bf16.gmra.mrb[0].mxu0 %v958
  %v997 = vpop.f32.mrb[0].mxu0
  %v998 = vadd.f32 0.0, %v997
  %v999 = vpop.f32.mrb[0].mxu0
  %v1000 = vpop.f32.mrb[0].mxu0
  %v1001 = vpop.f32.mrb[0].mxu0
  %1002 = vdwg.mxu0
  %1003 = vrot.lane.b32.xlu0 %v208, 96
  %v1004 = vpop.permute.xlu0 %1003
  %v1006 = vsel %vm371, %v954, 0
  %v1009 = vsel %vm399, %v1004, 0
  %1011 = vmatprep.subr.bf16.mxu0 0
  %1012 = vmatpush1.bf16.msra.mxu0 %v1009
  %1013 = vmatprep.subr.bf16.mxu0 0
  %1014 = vmatpush1.bf16.msra.mxu0 0
  %1015 = vmatprep.subr.bf16.mxu0 0
  %1016 = vmatpush1.bf16.msra.mxu0 0
  %1017 = vmatprep.subr.bf16.mxu0 0
  %1018 = vmatpush1.bf16.msra.mxu0 0
  %1019 = vmatprep.subr.bf16.mxu0 0
  %1020 = vmatpush1.bf16.msra.mxu0 0
  %1021 = vmatprep.subr.bf16.mxu0 0
  %1022 = vmatpush1.bf16.msra.mxu0 0
  %1023 = vmatprep.subr.bf16.mxu0 0
  %1024 = vmatpush1.bf16.msra.mxu0 0
  %1025 = vmatprep.subr.bf16.mxu0 0
  %1026 = vmatpush1.bf16.msra.mxu0 0
  %1027 = vmatprep.subr.bf16.mxu0 0
  %1028 = vmatpush1.bf16.msra.mxu0 0
  %1029 = vmatprep.subr.bf16.mxu0 0
  %1030 = vmatpush1.bf16.msra.mxu0 0
  %1031 = vmatprep.subr.bf16.mxu0 0
  %1032 = vmatpush1.bf16.msra.mxu0 0
  %1033 = vmatprep.subr.bf16.mxu0 0
  %1034 = vmatpush1.bf16.msra.mxu0 0
  %1035 = vmatprep.subr.bf16.mxu0 0
  %1036 = vmatpush1.bf16.msra.mxu0 0
  %1037 = vmatprep.subr.bf16.mxu0 0
  %1038 = vmatpush1.bf16.msra.mxu0 0
  %1039 = vmatprep.subr.bf16.mxu0 0
  %1040 = vmatpush1.bf16.msra.mxu0 0
  %1041 = vmatprep.subr.bf16.mxu0 0
  %1042 = vmatpush1.bf16.msra.mxu0 0
  %1043 = vmatprep.mubr.bf16.mxu0 0
  %1044 = vmatmul.mubr.bf16.gmra.mrb[0].mxu0 %v1006
  %v1045 = vpop.f32.mrb[0].mxu0
  %v1046 = vadd.f32 0.0, %v1045
  %v1047 = vpop.f32.mrb[0].mxu0
  %v1048 = vpop.f32.mrb[0].mxu0
  %v1049 = vpop.f32.mrb[0].mxu0
  %1050 = vdwg.mxu0
  %1051 = vrot.lane.b32.xlu0 %v209, 80
  %v1052 = vpop.permute.xlu0 %1051
  %1053 = vrot.lane.b32.xlu0 %v210, 80
  %v1054 = vpop.permute.xlu0 %1053
  %v1057 = vsel %vm211, %v1052, 0.0
  %1058 = vadd.xlane.f32.xlu0 %v1057
  %v1059 = vpop.xlane.xlu0 %1058
  %v1060 = vsel %vm211, %v1054, 0.0
  %1061 = vadd.xlane.f32.xlu0 %v1060
  %v1062 = vpop.xlane.xlu0 %1061
  %v1063 = vmul.f32 %v1059, %v218
  %v1064 = vmul.f32 %v1062, %v218
  %v1065 = vadd.f32 %v1063, 1e-06
  %v1066 = vadd.f32 %v1064, 1e-06
  %v1067 = vrsqrt.pop %v1065
  %v1068 = vrsqrt.pop %v1066
  %v1069 = vmul.f32 %v197, %v1067
  %v1070 = vmul.f32 %v201, %v1068
  %1071 = vrot.lane.b32.xlu0 %v231, 48
  %v1072 = vpop.permute.xlu0 %1071
  %v1074 = vmul.f32 %v1069, %v1072
  %v1075 = vmul.f32 %v1070, %v1072
  %1076 = vrot.lane.b32.xlu0 %v209, 16
  %v1077 = vpop.permute.xlu0 %1076
  %1078 = vrot.lane.b32.xlu0 %v210, 16
  %v1079 = vpop.permute.xlu0 %1078
  %v1082 = vsel %vm211, %v1077, 0.0
  %1083 = vadd.xlane.f32.xlu0 %v1082
  %v1084 = vpop.xlane.xlu0 %1083
  %v1085 = vsel %vm211, %v1079, 0.0
  %1086 = vadd.xlane.f32.xlu0 %v1085
  %v1087 = vpop.xlane.xlu0 %1086
  %v1088 = vmul.f32 %v1084, %v218
  %v1089 = vmul.f32 %v1087, %v218
  %v1090 = vadd.f32 %v1088, 1e-06
  %v1091 = vadd.f32 %v1089, 1e-06
  %v1092 = vrsqrt.pop %v1090
  %v1093 = vrsqrt.pop %v1091
  %v1094 = vmul.f32 %v197, %v1092
  %v1095 = vmul.f32 %v201, %v1093
  %1096 = vrot.lane.b32.xlu0 %v261, 112
  %v1097 = vpop.permute.xlu0 %1096
  %v1099 = vmul.f32 %v1094, %v1097
  %v1100 = vmul.f32 %v1095, %v1097
  %v1101 = vpack.c.bf16 %v1074, %v1074
  %v1102 = vpack.c.bf16 %v1075, %v1075
  %v1103 = vpack.c.bf16 %v1099, %v1099
  %v1104 = vpack.c.bf16 %v1100, %v1100
  %1106 = vrot.lane.b32.xlu0 %v1101, 80
  %v1107 = vpop.permute.xlu0 %1106
  %1109 = vrot.lane.b32.xlu0 %v1103, 16
  %v1110 = vpop.permute.xlu0 %1109
  %v1112 = vsel %vm211, %v1107, 0
  %v1115 = vsel %vm211, %v1110, 0
  %1117 = vmatprep.subr.bf16.mxu0 0
  %1118 = vmatpush1.bf16.xpose.msra.mxu0 %v1115
  %1119 = vmatprep.subr.bf16.mxu0 0
  %1120 = vmatpush1.bf16.xpose.msra.mxu0 0
  %1121 = vmatprep.subr.bf16.mxu0 0
  %1122 = vmatpush1.bf16.xpose.msra.mxu0 0
  %1123 = vmatprep.subr.bf16.mxu0 0
  %1124 = vmatpush1.bf16.xpose.msra.mxu0 0
  %1125 = vmatprep.subr.bf16.mxu0 0
  %1126 = vmatpush1.bf16.xpose.msra.mxu0 0
  %1127 = vmatprep.subr.bf16.mxu0 0
  %1128 = vmatpush1.bf16.xpose.msra.mxu0 0
  %1129 = vmatprep.subr.bf16.mxu0 0
  %1130 = vmatpush1.bf16.xpose.msra.mxu0 0
  %1131 = vmatprep.subr.bf16.mxu0 0
  %1132 = vmatpush1.bf16.xpose.msra.mxu0 0
  %1133 = vmatprep.subr.bf16.mxu0 0
  %1134 = vmatpush1.bf16.xpose.msra.mxu0 0
  %1135 = vmatprep.subr.bf16.mxu0 0
  %1136 = vmatpush1.bf16.xpose.msra.mxu0 0
  %1137 = vmatprep.subr.bf16.mxu0 0
  %1138 = vmatpush1.bf16.xpose.msra.mxu0 0
  %1139 = vmatprep.subr.bf16.mxu0 0
  %1140 = vmatpush1.bf16.xpose.msra.mxu0 0
  %1141 = vmatprep.subr.bf16.mxu0 0
  %1142 = vmatpush1.bf16.xpose.msra.mxu0 0
  %1143 = vmatprep.subr.bf16.mxu0 0
  %1144 = vmatpush1.bf16.xpose.msra.mxu0 0
  %1145 = vmatprep.subr.bf16.mxu0 0
  %1146 = vmatpush1.bf16.xpose.msra.mxu0 0
  %1147 = vmatprep.subr.bf16.mxu0 0
  %1148 = vmatpush1.bf16.xpose.msra.mxu0 0
  %1149 = vmatprep.mubr.bf16.mxu0 0
  %1150 = vmatmul.mubr.bf16.gmra.mrb[0].mxu0 %v1112
  %v1151 = vpop.f32.mrb[0].mxu0
  %v1152 = vadd.f32 0.0, %v1151
  %v1153 = vpop.f32.mrb[0].mxu0
  %v1154 = vpop.f32.mrb[0].mxu0
  %v1155 = vpop.f32.mrb[0].mxu0
  %1156 = vdwg.mxu0
  %1158 = vrot.lane.b32.xlu0 %v1102, 80
  %v1159 = vpop.permute.xlu0 %1158
  %1161 = vrot.lane.b32.xlu0 %v1104, 16
  %v1162 = vpop.permute.xlu0 %1161
  %v1164 = vsel %vm211, %v1159, 0
  %v1167 = vsel %vm211, %v1162, 0
  %1169 = vmatprep.subr.bf16.mxu0 0
  %1170 = vmatpush1.bf16.xpose.msra.mxu0 %v1167
  %1171 = vmatprep.subr.bf16.mxu0 0
  %1172 = vmatpush1.bf16.xpose.msra.mxu0 0
  %1173 = vmatprep.subr.bf16.mxu0 0
  %1174 = vmatpush1.bf16.xpose.msra.mxu0 0
  %1175 = vmatprep.subr.bf16.mxu0 0
  %1176 = vmatpush1.bf16.xpose.msra.mxu0 0
  %1177 = vmatprep.subr.bf16.mxu0 0
  %1178 = vmatpush1.bf16.xpose.msra.mxu0 0
  %1179 = vmatprep.subr.bf16.mxu0 0
  %1180 = vmatpush1.bf16.xpose.msra.mxu0 0
  %1181 = vmatprep.subr.bf16.mxu0 0
  %1182 = vmatpush1.bf16.xpose.msra.mxu0 0
  %1183 = vmatprep.subr.bf16.mxu0 0
  %1184 = vmatpush1.bf16.xpose.msra.mxu0 0
  %1185 = vmatprep.subr.bf16.mxu0 0
  %1186 = vmatpush1.bf16.xpose.msra.mxu0 0
  %1187 = vmatprep.subr.bf16.mxu0 0
  %1188 = vmatpush1.bf16.xpose.msra.mxu0 0
  %1189 = vmatprep.subr.bf16.mxu0 0
  %1190 = vmatpush1.bf16.xpose.msra.mxu0 0
  %1191 = vmatprep.subr.bf16.mxu0 0
  %1192 = vmatpush1.bf16.xpose.msra.mxu0 0
  %1193 = vmatprep.subr.bf16.mxu0 0
  %1194 = vmatpush1.bf16.xpose.msra.mxu0 0
  %1195 = vmatprep.subr.bf16.mxu0 0
  %1196 = vmatpush1.bf16.xpose.msra.mxu0 0
  %1197 = vmatprep.subr.bf16.mxu0 0
  %1198 = vmatpush1.bf16.xpose.msra.mxu0 0
  %1199 = vmatprep.subr.bf16.mxu0 0
  %1200 = vmatpush1.bf16.xpose.msra.mxu0 0
  %1201 = vmatprep.mubr.bf16.mxu0 0
  %1202 = vmatmul.mubr.bf16.gmra.mrb[0].mxu0 %v1164
  %v1203 = vpop.f32.mrb[0].mxu0
  %v1204 = vadd.f32 0.0, %v1203
  %v1205 = vpop.f32.mrb[0].mxu0
  %v1206 = vpop.f32.mrb[0].mxu0
  %v1207 = vpop.f32.mrb[0].mxu0
  %1208 = vdwg.mxu0
  %v1209 = vmul.f32 %v1152, 0.25
  %v1210 = vmul.f32 %v1204, 0.25
  %v1211 = vsel %vm371, %v1209, -inf
  %1212 = vmax.xlane.f32.xlu0 %v1211
  %v1213 = vpop.xlane.xlu0 %1212
  %v1214 = vsel %vm371, %v1210, -inf
  %1215 = vmax.xlane.f32.xlu0 %v1214
  %v1216 = vpop.xlane.xlu0 %1215
  %v1217 = vsub.f32 %v1209, %v1213
  %v1218 = vsub.f32 %v1210, %v1216
  %v1219 = vmul.f32 %v1217, 1.442695
  %v1220 = vpow.pop %v1219
  %v1221 = vmul.f32 %v1218, 1.442695
  %v1222 = vpow.pop %v1221
  %v1223 = vsel %vm371, %v1220, 0.0
  %1224 = vadd.xlane.f32.xlu0 %v1223
  %v1225 = vpop.xlane.xlu0 %1224
  %v1226 = vsel %vm371, %v1222, 0.0
  %1227 = vadd.xlane.f32.xlu0 %v1226
  %v1228 = vpop.xlane.xlu0 %1227
  %v1229 = vrcp.pop %v1225
  %v1230 = vrcp.pop %v1228
  %v1231 = vmul.f32 %v1220, %v1229
  %v1232 = vmul.f32 %v1222, %v1230
  %v1233 = vpack.c.bf16 %v1231, %v1231
  %v1234 = vpack.c.bf16 %v1232, %v1232
  %1235 = vrot.lane.b32.xlu0 %v207, 80
  %v1236 = vpop.permute.xlu0 %1235
  %v1238 = vsel %vm371, %v1233, 0
  %v1241 = vsel %vm399, %v1236, 0
  %1243 = vmatprep.subr.bf16.mxu0 0
  %1244 = vmatpush1.bf16.msra.mxu0 %v1241
  %1245 = vmatprep.subr.bf16.mxu0 0
  %1246 = vmatpush1.bf16.msra.mxu0 0
  %1247 = vmatprep.subr.bf16.mxu0 0
  %1248 = vmatpush1.bf16.msra.mxu0 0
  %1249 = vmatprep.subr.bf16.mxu0 0
  %1250 = vmatpush1.bf16.msra.mxu0 0
  %1251 = vmatprep.subr.bf16.mxu0 0
  %1252 = vmatpush1.bf16.msra.mxu0 0
  %1253 = vmatprep.subr.bf16.mxu0 0
  %1254 = vmatpush1.bf16.msra.mxu0 0
  %1255 = vmatprep.subr.bf16.mxu0 0
  %1256 = vmatpush1.bf16.msra.mxu0 0
  %1257 = vmatprep.subr.bf16.mxu0 0
  %1258 = vmatpush1.bf16.msra.mxu0 0
  %1259 = vmatprep.subr.bf16.mxu0 0
  %1260 = vmatpush1.bf16.msra.mxu0 0
  %1261 = vmatprep.subr.bf16.mxu0 0
  %1262 = vmatpush1.bf16.msra.mxu0 0
  %1263 = vmatprep.subr.bf16.mxu0 0
  %1264 = vmatpush1.bf16.msra.mxu0 0
  %1265 = vmatprep.subr.bf16.mxu0 0
  %1266 = vmatpush1.bf16.msra.mxu0 0
  %1267 = vmatprep.subr.bf16.mxu0 0
  %1268 = vmatpush1.bf16.msra.mxu0 0
  %1269 = vmatprep.subr.bf16.mxu0 0
  %1270 = vmatpush1.bf16.msra.mxu0 0
  %1271 = vmatprep.subr.bf16.mxu0 0
  %1272 = vmatpush1.bf16.msra.mxu0 0
  %1273 = vmatprep.subr.bf16.mxu0 0
  %1274 = vmatpush1.bf16.msra.mxu0 0
  %1275 = vmatprep.mubr.bf16.mxu0 0
  %1276 = vmatmul.mubr.bf16.gmra.mrb[0].mxu0 %v1238
  %v1277 = vpop.f32.mrb[0].mxu0
  %v1278 = vadd.f32 0.0, %v1277
  %v1279 = vpop.f32.mrb[0].mxu0
  %v1280 = vpop.f32.mrb[0].mxu0
  %v1281 = vpop.f32.mrb[0].mxu0
  %1282 = vdwg.mxu0
  %1283 = vrot.lane.b32.xlu0 %v208, 80
  %v1284 = vpop.permute.xlu0 %1283
  %v1286 = vsel %vm371, %v1234, 0
  %v1289 = vsel %vm399, %v1284, 0
  %1291 = vmatprep.subr.bf16.mxu0 0
  %1292 = vmatpush1.bf16.msra.mxu0 %v1289
  %1293 = vmatprep.subr.bf16.mxu0 0
  %1294 = vmatpush1.bf16.msra.mxu0 0
  %1295 = vmatprep.subr.bf16.mxu0 0
  %1296 = vmatpush1.bf16.msra.mxu0 0
  %1297 = vmatprep.subr.bf16.mxu0 0
  %1298 = vmatpush1.bf16.msra.mxu0 0
  %1299 = vmatprep.subr.bf16.mxu0 0
  %1300 = vmatpush1.bf16.msra.mxu0 0
  %1301 = vmatprep.subr.bf16.mxu0 0
  %1302 = vmatpush1.bf16.msra.mxu0 0
  %1303 = vmatprep.subr.bf16.mxu0 0
  %1304 = vmatpush1.bf16.msra.mxu0 0
  %1305 = vmatprep.subr.bf16.mxu0 0
  %1306 = vmatpush1.bf16.msra.mxu0 0
  %1307 = vmatprep.subr.bf16.mxu0 0
  %1308 = vmatpush1.bf16.msra.mxu0 0
  %1309 = vmatprep.subr.bf16.mxu0 0
  %1310 = vmatpush1.bf16.msra.mxu0 0
  %1311 = vmatprep.subr.bf16.mxu0 0
  %1312 = vmatpush1.bf16.msra.mxu0 0
  %1313 = vmatprep.subr.bf16.mxu0 0
  %1314 = vmatpush1.bf16.msra.mxu0 0
  %1315 = vmatprep.subr.bf16.mxu0 0
  %1316 = vmatpush1.bf16.msra.mxu0 0
  %1317 = vmatprep.subr.bf16.mxu0 0
  %1318 = vmatpush1.bf16.msra.mxu0 0
  %1319 = vmatprep.subr.bf16.mxu0 0
  %1320 = vmatpush1.bf16.msra.mxu0 0
  %1321 = vmatprep.subr.bf16.mxu0 0
  %1322 = vmatpush1.bf16.msra.mxu0 0
  %1323 = vmatprep.mubr.bf16.mxu0 0
  %1324 = vmatmul.mubr.bf16.gmra.mrb[0].mxu0 %v1286
  %v1325 = vpop.f32.mrb[0].mxu0
  %v1326 = vadd.f32 0.0, %v1325
  %v1327 = vpop.f32.mrb[0].mxu0
  %v1328 = vpop.f32.mrb[0].mxu0
  %v1329 = vpop.f32.mrb[0].mxu0
  %1330 = vdwg.mxu0
  %1333 = vrot.lane.b32.xlu0 %v717, 16
  %v1334 = vpop.permute.xlu0 %1333
  %1335 = vrot.lane.b32.xlu0 %v766, 16
  %v1336 = vpop.permute.xlu0 %1335
  %1341 = vrot.lane.b32.xlu0 %v998, 32
  %v1342 = vpop.permute.xlu0 %1341
  %1343 = vrot.lane.b32.xlu0 %v1046, 32
  %v1344 = vpop.permute.xlu0 %1343
  %1349 = vrot.lane.b32.xlu0 %v1278, 48
  %v1350 = vpop.permute.xlu0 %1349
  %1351 = vrot.lane.b32.xlu0 %v1326, 48
  %v1352 = vpop.permute.xlu0 %1351
  %v1355 = vsel %vm211, %v438, %v1334
  %v1356 = vsel %vm211, %v484, %v1336
  %vm1357 = vcmask 261120
  %v1358 = vsel %vm1357, %v1355, %v1342
  %v1359 = vsel %vm1357, %v1356, %v1344
  %vm1360 = vcmask 392192
  %v1361 = vsel %vm1360, %v1358, %v1350
  %v1362 = vsel %vm1360, %v1359, %v1352
  %v1363 = vpack.c.bf16 %v1362, %v1361
  %v1364 = vld [vmem:[%s8] sm:$0xf]
  %v1365 = vld [vmem:[%s8 + $0x4] sm:$0xf]
  %v1366 = vld [vmem:[%s8 + $0x8] sm:$0xf]
  %v1367 = vld [vmem:[%s8 + $0xc] sm:$0xf]
  %v1368 = vld [vmem:[%s8 + $0x10] sm:$0xf]
  %v1369 = vld [vmem:[%s8 + $0x14] sm:$0xf]
  %v1370 = vld [vmem:[%s8 + $0x18] sm:$0xf]
  %v1371 = vld [vmem:[%s8 + $0x1c] sm:$0xf]
  %v1372 = vld [vmem:[%s9] sm:$0x1]
  %v1374 = vlaneseq
  %v1375 = vshrl.u32 %v1374, 7
  %v1376 = vsub.s32 0, %v1375
  %v1377 = vrot.slane %v1372, %v1376
  %v1387 = vunpack.c.l.b16 %v1364
  %v1388 = vunpack.c.l.b16 %v1365
  %v1389 = vunpack.c.l.b16 %v1366
  %v1390 = vunpack.c.l.b16 %v1367
  %v1391 = vunpack.c.l.b16 %v1368
  %v1392 = vunpack.c.l.b16 %v1369
  %v1393 = vunpack.c.l.b16 %v1370
  %v1394 = vunpack.c.l.b16 %v1371
  %v1395 = vpack.c.b16 %v1388, %v1387
  %v1396 = vpack.c.b16 %v1390, %v1389
  %v1397 = vpack.c.b16 %v1392, %v1391
  %v1398 = vpack.c.b16 %v1394, %v1393
  %v1404 = vsel %vm42, %v1363, 0
  %1406 = vmatprep.subr.bf16.mxu0 0
  %1407 = vmatpush1.bf16.msra.mxu0 %v1395
  %1408 = vmatprep.subr.bf16.mxu0 0
  %1409 = vmatpush1.bf16.msra.mxu0 %v1396
  %1410 = vmatprep.subr.bf16.mxu0 0
  %1411 = vmatpush1.bf16.msra.mxu0 %v1397
  %1412 = vmatprep.subr.bf16.mxu0 0
  %1413 = vmatpush1.bf16.msra.mxu0 %v1398
  %1414 = vmatprep.subr.bf16.mxu0 0
  %1415 = vmatpush1.bf16.msra.mxu0 0
  %1416 = vmatprep.subr.bf16.mxu0 0
  %1417 = vmatpush1.bf16.msra.mxu0 0
  %1418 = vmatprep.subr.bf16.mxu0 0
  %1419 = vmatpush1.bf16.msra.mxu0 0
  %1420 = vmatprep.subr.bf16.mxu0 0
  %1421 = vmatpush1.bf16.msra.mxu0 0
  %1422 = vmatprep.subr.bf16.mxu0 0
  %1423 = vmatpush1.bf16.msra.mxu0 0
  %1424 = vmatprep.subr.bf16.mxu0 0
  %1425 = vmatpush1.bf16.msra.mxu0 0
  %1426 = vmatprep.subr.bf16.mxu0 0
  %1427 = vmatpush1.bf16.msra.mxu0 0
  %1428 = vmatprep.subr.bf16.mxu0 0
  %1429 = vmatpush1.bf16.msra.mxu0 0
  %1430 = vmatprep.subr.bf16.mxu0 0
  %1431 = vmatpush1.bf16.msra.mxu0 0
  %1432 = vmatprep.subr.bf16.mxu0 0
  %1433 = vmatpush1.bf16.msra.mxu0 0
  %1434 = vmatprep.subr.bf16.mxu0 0
  %1435 = vmatpush1.bf16.msra.mxu0 0
  %1436 = vmatprep.subr.bf16.mxu0 0
  %1437 = vmatpush1.bf16.msra.mxu0 0
  %1438 = vmatprep.mubr.bf16.mxu0 0
  %1439 = vmatmul.mubr.bf16.gmra.mrb[0].mxu0 %v1404
  %v1440 = vpop.f32.mrb[0].mxu0
  %v1441 = vadd.f32 %v1377, %v1440
  %v1442 = vpop.f32.mrb[0].mxu0
  %v1443 = vpop.f32.mrb[0].mxu0
  %v1444 = vadd.f32 %v1377, %v1443
  %v1445 = vpop.f32.mrb[0].mxu0
  %1446 = vdwg.mxu0
  %v1447 = vld [vmem:[%s3] sm:$0x1]
  %v1448 = vld [vmem:[%s3 + $0x1] sm:$0x1]
  %v1451 = vlaneseq
  %v1452 = vshrl.u32 %v1451, 7
  %v1453 = vsub.s32 0, %v1452
  %v1454 = vrot.slane %v1447, %v1453
  %v1455 = vlaneseq
  %v1456 = vshrl.u32 %v1455, 7
  %v1457 = vsub.s32 0, %v1456
  %v1458 = vrot.slane %v1448, %v1457
  %v1461 = vmul.f32 %v1454, %v1441
  %v1462 = vmul.f32 %v1458, %v1444
  %v1463 = vadd.f32 %v38, %v1461
  %v1464 = vadd.f32 %v39, %v1462
  %v1465 = vpack.c.bf16 %v1463, %v1463
  %v1466 = vpack.c.bf16 %v1464, %v1464
  %vm1467 = vcmask 519168
  %1468 = vst.msk [vmem:[%s10] sm:$0xf] %vm1467, %v1465
  %1469 = vst.msk [vmem:[%s10 + $0x4] sm:$0xf] %vm1467, %v1466
  // Predicated region
  $region42: #{_lambda_.9} parent=0 // pred_check
    _
  $region43: #{_lambda_.9} parent=0 // pred_check_branch
    %1471 = sbr.rel (0) target = $region45
  $region44: #{_lambda_.9} parent=0 // pred_region
    _
  $region45: #{_lambda_.9} parent=0 // pred_fallthru
    _
  // Predicated region
  $region46: #{_lambda_.9} parent=0 // pred_check
    _
  $region47: #{_lambda_.9} parent=0 // pred_check_branch
    %1473 = sbr.rel (0) target = $region49
  $region48: #{_lambda_.9} parent=0 // pred_region
    _
  $region49: #{_lambda_.9} parent=0 // pred_fallthru
    _

// kernel: _lambda_.13
$region0: #{_lambda_.13}
  #allocation0 [shape = 'u32[]', space=smem, size = 0x4, offset = 0x4, fixed_abs, tag = 'smem constant byte address 0x4 - core index']
  #allocation1 [shape = 'u32[144,128]{1,0:T(1,128)}', space=vmem, size = 0x12000, scoped, tag = 'internal scratch']
  %s0 = inlined_call_operand.vmem [shape: bf16[2,8,64], index: 0, kind: input, shape index: {}]
  %s1 = inlined_call_operand.vmem [shape: f32[2,1,64], index: 1, kind: input, shape index: {}]
  %s2 = inlined_call_operand.vmem [shape: f32[2,1,64], index: 2, kind: input, shape index: {}]
  %s3 = inlined_call_operand.vmem [shape: bf16[64,128], index: 3, kind: input, shape index: {}]
  %s4 = inlined_call_operand.vmem [shape: f32[1,128], index: 4, kind: input, shape index: {}]
  %s5 = inlined_call_operand.vmem [shape: f32[2,8,128], index: 5, kind: output, shape index: {}]
  %s6 = sld [smem:[#allocation0]]
  $region30: #{_lambda_.13} parent=0
    _
  %s8 = ssub.s32 1, %s6
  %s9 = scalar_select 0, %s8, %s6
  // Predicated region
  $region2: #{_lambda_.13} parent=0 // pred_check
    _
  $region3: #{_lambda_.13} parent=0 // pred_check_branch
    %11 = sbr.rel (0) target = $region5
  $region4: #{_lambda_.13} parent=0 // pred_region
    _
  $region5: #{_lambda_.13} parent=0 // pred_fallthru
    _
  // Predicated region
  $region6: #{_lambda_.13} parent=0 // pred_check
    _
  $region7: #{_lambda_.13} parent=0 // pred_check_branch
    %13 = sbr.rel (0) target = $region9
  $region8: #{_lambda_.13} parent=0 // pred_region
    _
  $region9: #{_lambda_.13} parent=0 // pred_fallthru
    _
  // Predicated region
  $region10: #{_lambda_.13} parent=0 // pred_check
    _
  $region11: #{_lambda_.13} parent=0 // pred_check_branch
    %15 = sbr.rel (0) target = $region13
  $region12: #{_lambda_.13} parent=0 // pred_region
    _
  $region13: #{_lambda_.13} parent=0 // pred_fallthru
    _
  // Predicated region
  $region14: #{_lambda_.13} parent=0 // pred_check
    _
  $region15: #{_lambda_.13} parent=0 // pred_check_branch
    %17 = sbr.rel (0) target = $region17
  $region16: #{_lambda_.13} parent=0 // pred_region
    _
  $region17: #{_lambda_.13} parent=0 // pred_fallthru
    _
  // Predicated region
  $region18: #{_lambda_.13} parent=0 // pred_check
    _
  $region19: #{_lambda_.13} parent=0 // pred_check_branch
    %19 = sbr.rel (0) target = $region21
  $region20: #{_lambda_.13} parent=0 // pred_region
    _
  $region21: #{_lambda_.13} parent=0 // pred_fallthru
    _
  %v21 = vld [vmem:[%s0] sm:$0xf]
  %v22 = vld [vmem:[%s0 + $0x4] sm:$0xf]
  %v23 = vunpack.c.l.bf16 %v21
  %v24 = vunpack.c.l.bf16 %v22
  %v25 = vmul.f32 %v23, %v23
  %v26 = vmul.f32 %v24, %v24
  %vm27 = vcmask 523264
  %v28 = vsel %vm27, %v25, 0.0
  %29 = vadd.xlane.f32.xlu0 %v28
  %v30 = vpop.xlane.xlu0 %29
  %v31 = vsel %vm27, %v26, 0.0
  %32 = vadd.xlane.f32.xlu0 %v31
  %v33 = vpop.xlane.xlu0 %32
  %v34 = vrcp.pop 64.0
  %v35 = vmul.f32 %v30, %v34
  %v36 = vmul.f32 %v33, %v34
  %v37 = vadd.f32 %v35, 1e-06
  %v38 = vadd.f32 %v36, 1e-06
  %v39 = vrsqrt.pop %v37
  %v40 = vrsqrt.pop %v38
  %v41 = vmul.f32 %v23, %v39
  %v42 = vmul.f32 %v24, %v40
  %v43 = vld [vmem:[%s2] sm:$0x1]
  %v44 = vld [vmem:[%s2 + $0x1] sm:$0x1]
  %v45 = vadd.f32 %v43, 1.0
  %v46 = vadd.f32 %v44, 1.0
  %v49 = vlaneseq
  %v50 = vshrl.u32 %v49, 7
  %v51 = vsub.s32 0, %v50
  %v52 = vrot.slane %v45, %v51
  %v53 = vlaneseq
  %v54 = vshrl.u32 %v53, 7
  %v55 = vsub.s32 0, %v54
  %v56 = vrot.slane %v46, %v55
  %v59 = vmul.f32 %v41, %v52
  %v60 = vmul.f32 %v42, %v56
  %v61 = vld [vmem:[%s1] sm:$0x1]
  %v62 = vld [vmem:[%s1 + $0x1] sm:$0x1]
  %v65 = vlaneseq
  %v66 = vshrl.u32 %v65, 7
  %v67 = vsub.s32 0, %v66
  %v68 = vrot.slane %v61, %v67
  %v69 = vlaneseq
  %v70 = vshrl.u32 %v69, 7
  %v71 = vsub.s32 0, %v70
  %v72 = vrot.slane %v62, %v71
  %v75 = vadd.f32 %v59, %v68
  %v76 = vadd.f32 %v60, %v72
  %v77 = vpack.c.bf16 %v75, %v75
  %v78 = vpack.c.bf16 %v76, %v76
  %v79 = vld [vmem:[%s3] sm:$0xf]
  %v80 = vld [vmem:[%s3 + $0x4] sm:$0xf]
  %v81 = vld [vmem:[%s3 + $0x8] sm:$0xf]
  %v82 = vld [vmem:[%s3 + $0xc] sm:$0xf]
  %v83 = vld [vmem:[%s3 + $0x10] sm:$0xf]
  %v84 = vld [vmem:[%s3 + $0x14] sm:$0xf]
  %v85 = vld [vmem:[%s3 + $0x18] sm:$0xf]
  %v86 = vld [vmem:[%s3 + $0x1c] sm:$0xf]
  %v87 = vld [vmem:[%s4] sm:$0x1]
  %v89 = vlaneseq
  %v90 = vshrl.u32 %v89, 7
  %v91 = vsub.s32 0, %v90
  %v92 = vrot.slane %v87, %v91
  %v96 = vunpack.c.l.b16 %v77
  %v97 = vunpack.c.l.b16 %v78
  %v98 = vpack.c.b16 %v97, %v96
  %v107 = vunpack.c.l.b16 %v79
  %v108 = vunpack.c.l.b16 %v80
  %v109 = vunpack.c.l.b16 %v81
  %v110 = vunpack.c.l.b16 %v82
  %v111 = vunpack.c.l.b16 %v83
  %v112 = vunpack.c.l.b16 %v84
  %v113 = vunpack.c.l.b16 %v85
  %v114 = vunpack.c.l.b16 %v86
  %v115 = vpack.c.b16 %v108, %v107
  %v116 = vpack.c.b16 %v110, %v109
  %v117 = vpack.c.b16 %v112, %v111
  %v118 = vpack.c.b16 %v114, %v113
  %v124 = vsel %vm27, %v98, 0
  %126 = vmatprep.subr.bf16.mxu0 0
  %127 = vmatpush1.bf16.msra.mxu0 %v115
  %128 = vmatprep.subr.bf16.mxu0 0
  %129 = vmatpush1.bf16.msra.mxu0 %v116
  %130 = vmatprep.subr.bf16.mxu0 0
  %131 = vmatpush1.bf16.msra.mxu0 %v117
  %132 = vmatprep.subr.bf16.mxu0 0
  %133 = vmatpush1.bf16.msra.mxu0 %v118
  %134 = vmatprep.subr.bf16.mxu0 0
  %135 = vmatpush1.bf16.msra.mxu0 0
  %136 = vmatprep.subr.bf16.mxu0 0
  %137 = vmatpush1.bf16.msra.mxu0 0
  %138 = vmatprep.subr.bf16.mxu0 0
  %139 = vmatpush1.bf16.msra.mxu0 0
  %140 = vmatprep.subr.bf16.mxu0 0
  %141 = vmatpush1.bf16.msra.mxu0 0
  %142 = vmatprep.subr.bf16.mxu0 0
  %143 = vmatpush1.bf16.msra.mxu0 0
  %144 = vmatprep.subr.bf16.mxu0 0
  %145 = vmatpush1.bf16.msra.mxu0 0
  %146 = vmatprep.subr.bf16.mxu0 0
  %147 = vmatpush1.bf16.msra.mxu0 0
  %148 = vmatprep.subr.bf16.mxu0 0
  %149 = vmatpush1.bf16.msra.mxu0 0
  %150 = vmatprep.subr.bf16.mxu0 0
  %151 = vmatpush1.bf16.msra.mxu0 0
  %152 = vmatprep.subr.bf16.mxu0 0
  %153 = vmatpush1.bf16.msra.mxu0 0
  %154 = vmatprep.subr.bf16.mxu0 0
  %155 = vmatpush1.bf16.msra.mxu0 0
  %156 = vmatprep.subr.bf16.mxu0 0
  %157 = vmatpush1.bf16.msra.mxu0 0
  %158 = vmatprep.mubr.bf16.mxu0 0
  %159 = vmatmul.mubr.bf16.gmra.mrb[0].mxu0 %v124
  %v160 = vpop.f32.mrb[0].mxu0
  %v161 = vadd.f32 %v92, %v160
  %v162 = vpop.f32.mrb[0].mxu0
  %v163 = vpop.f32.mrb[0].mxu0
  %v164 = vadd.f32 %v92, %v163
  %v165 = vpop.f32.mrb[0].mxu0
  %166 = vdwg.mxu0
  %167 = vst [vmem:[%s5] sm:$0xff] %v161
  %168 = vst [vmem:[%s5 + $0x8] sm:$0xff] %v164
  // Predicated region
  $region22: #{_lambda_.13} parent=0 // pred_check
    _
  $region23: #{_lambda_.13} parent=0 // pred_check_branch
    %170 = sbr.rel (0) target = $region25
  $region24: #{_lambda_.13} parent=0 // pred_region
    _
  $region25: #{_lambda_.13} parent=0 // pred_fallthru
    _
  // Predicated region
  $region26: #{_lambda_.13} parent=0 // pred_check
    _
  $region27: #{_lambda_.13} parent=0 // pred_check_branch
    %172 = sbr.rel (0) target = $region29
  $region28: #{_lambda_.13} parent=0 // pred_region
    _
  $region29: #{_lambda_.13} parent=0 // pred_fallthru
    _

</llo_original>
